<compile_context>
chip_gen: v6e
topology: v6e:2x2x1
jax: 0.10.0
libtpu: 0.0.40
codegen_flags: <defaults>
</compile_context>

<pallas_src>
import functools

import jax
import jax.numpy as jnp
from jax import lax
from jax.experimental import pallas as pl
from jax.experimental.pallas import tpu as pltpu


def _resnet_block_kernel(x_ref, w1_ref, b1_ref, g1w_ref, g1b_ref,
                         w2_ref, b2_ref, g2w_ref, g2b_ref,
                         resw_ref, resb_ref, gm_ref,
                         o_ref, *, kernel, seq_len, groups):
    pad = kernel // 2
    rows = x_ref.shape[0]
    c_out = o_ref.shape[1]
    n = seq_len
    tb = rows // n
    eps = jnp.float32(1e-5)

    def stack(parts):
        return parts[0] if len(parts) == 1 else jnp.concatenate(parts, axis=0)

    # Per-sample row position 0..N-1 as a (rows, 1) column: aligned iota +
    # sublane concat (no integer div/mod in the kernel).  Hoisted: reused by
    # both convolutions.
    pos1 = lax.broadcasted_iota(jnp.int32, (n, 1), 0)
    pos = pos1 if tb == 1 else jnp.concatenate([pos1] * tb, axis=0)
    # Halo keep-masks per tap offset d (zero the conv padding rows; these are
    # also exactly the rows that would leak across the batch fold).
    keep_mask = {}
    for d in range(-pad, pad + 1):
        if d < 0:
            keep_mask[d] = pos >= (-d)
        elif d > 0:
            keep_mask[d] = pos < (n - d)

    def conv(src, w_ref_, b_ref_):
        """src: (rows, C) f32.  One deep (rows, K*C) bf16 @ (K*C, C_out) matmul.

        Taps built with pltpu.roll (XLU) + halo mask, no im2col VMEM scratch:
        tap_t[r] = src[r + (t - pad)], zero outside the sample.
        """
        taps = []
        for t in range(kernel):
            d = t - pad
            if d == 0:
                v = src
            else:
                # jnp.roll semantics: out[r] = src[(r - shift) mod rows]
                v = pltpu.roll(src, (-d) % rows, 0)
                v = jnp.where(keep_mask[d], v, 0.0)
            taps.append(v.astype(jnp.bfloat16))
        a = taps[0] if kernel == 1 else jnp.concatenate(taps, axis=1)
        return (jnp.dot(a, w_ref_[...], preferred_element_type=jnp.float32)
                + b_ref_[...])                                     # (rows, C_out) f32

    def groupnorm_silu(h, gw_ref, gb_ref):
        """Per-sample GroupNorm (PyTorch semantics) + SiLU.

        Row reductions are exact-f32 VPU sums per sample; the per-sample (1, C)
        mean / inv-std are broadcast over N rows on the VPU (no one-hot St
        broadcast matmuls).  The channel<->group combine is one tiny one-hot
        (C, C) "same-group" matmul (its operands are already fully reduced
        (TB, C) statistics, so any MXU rounding there is N-independent).
        """
        cnt = jnp.float32(n * (c_out // groups))
        gw, gb = gw_ref[...], gb_ref[...]
        gm = gm_ref[...]                                            # (C_out, C_out)
        hb = [h[b * n:(b + 1) * n, :] for b in range(tb)]           # aligned slices
        sum_c = stack([jnp.sum(v, axis=0, keepdims=True) for v in hb])   # (TB, C)
        mean_c = jnp.dot(sum_c, gm, preferred_element_type=jnp.float32) / cnt
        db = [hb[b] - mean_c[b:b + 1, :] for b in range(tb)]        # centered, f32
        ssq_c = stack([jnp.sum(v * v, axis=0, keepdims=True) for v in db])
        var_c = jnp.dot(ssq_c, gm, preferred_element_type=jnp.float32) / cnt
        inv_c = lax.rsqrt(var_c + eps)                              # (TB, C)
        outs = []
        for b in range(tb):
            y = db[b] * inv_c[b:b + 1, :] * gw + gb
            outs.append(y * jax.nn.sigmoid(y))   # SiLU; Dropout(p=0.0) == identity
        return stack(outs)                                          # (rows, C_out)

    x = x_ref[...]                                                  # (rows, C_in) f32

    a1 = groupnorm_silu(conv(x, w1_ref, b1_ref), g1w_ref, g1b_ref)
    a2 = groupnorm_silu(conv(a1, w2_ref, b2_ref), g2w_ref, g2b_ref)

    # Residual 1x1 conv straight from the unpadded input block.
    res = (jnp.dot(x.astype(jnp.bfloat16), resw_ref[...],
                   preferred_element_type=jnp.float32) + resb_ref[...])

    o_ref[...] = (a2 + res).astype(o_ref.dtype)


def _step_vmem_bytes(rows, c_in, c_out, kernel):
    """Generous per-grid-step VMEM estimate."""
    io = 2 * rows * (c_in + c_out) * 4            # double-buffered x / out blocks
    taps = rows * kernel * (c_in + c_out) * 2     # bf16 conv operands (values)
    temps = 6 * rows * c_out * 4                  # f32 h/a1/a2/res/centered temps
    wts = 2 * ((kernel * (c_in + c_out) + c_in) * c_out * 2    # bf16 weights
               + (7 * c_out + c_out * c_out) * 4)              # f32 vectors + Gm
    return io + taps + temps + wts


def resnet_block_pallas(x, params, *, kernel=3, groups=8, batch_tile=None):
    """x: (B, N, C_in) float32 -> (B, N, C_out) float32."""
    B, N, c_in = x.shape
    c_out = params["w1"].shape[2]
    assert kernel % 2 == 1, "odd kernel required so padding=k//2 keeps length N"
    assert c_out % groups == 0
    assert N % 8 == 0, "sequence length must be a multiple of 8 (sublane tile)"

    # Generation-aware VMEM budget (64 MiB/TC on v7x vs 128 MiB on v5e/v6e).
    try:
        vmem_cap = int(pltpu.get_tpu_info().vmem_capacity_bytes)
    except Exception:
        vmem_cap = 128 * 1024 * 1024
    kind = ""
    try:
        kind = jax.devices()[0].device_kind.lower()
    except Exception:
        pass
    # Chips with 2 TensorCores per device want >= 2 grid steps so both TCs get
    # work; single-TC v5e/v6e run the grid serially, so one big step is best.
    multi_tc = any(tag in kind for tag in ("v4", "v5p", "v7"))
    budget = int(0.40 * vmem_cap)

    if batch_tile is None:
        batch_tile = 1
        for tb_cand in range(1, B + 1):
            if B % tb_cand:
                continue
            if multi_tc and B > 1 and B // tb_cand < 2:
                continue
            if _step_vmem_bytes(tb_cand * N, c_in, c_out, kernel) > budget:
                continue
            batch_tile = tb_cand
    assert B % batch_tile == 0
    tb = batch_tile
    rows = tb * N
    grid = (B // tb,)

    # Conv weights as (K*C, C_out) matrices (== torch weight.permute(2, 1, 0)
    # reshaped), cast to bf16 for the MXU; biases / affine params stay f32.
    w1m = params["w1"].reshape(kernel * c_in, c_out).astype(jnp.bfloat16)
    w2m = params["w2"].reshape(kernel * c_out, c_out).astype(jnp.bfloat16)
    reswm = params["resw"].astype(jnp.bfloat16)

    # One-hot "same group" matrix: Gm[c, c'] = 1 iff group(c) == group(c').
    gid = jnp.arange(c_out) // (c_out // groups)
    Gm = (gid[:, None] == gid[None, :]).astype(jnp.float32)         # (C_out, C_out)

    # Flatten (B, N, C) -> (B*N, C): contiguous reshape, no data movement.
    x2 = x.reshape(B * N, c_in)

    row = lambda v: v.reshape(1, -1).astype(jnp.float32)
    # Grid-invariant inputs; could additionally use pipeline_mode=pl.Buffered(1)
    # to drop their second buffer if VMEM ever gets tight.
    full = lambda shape: pl.BlockSpec(shape, lambda b: (0,) * len(shape))

    est = _step_vmem_bytes(rows, c_in, c_out, kernel)
    vmem_limit_bytes = min(int(0.9 * vmem_cap),
                           max(32 * 1024 * 1024, int(1.3 * est)))

    kern = functools.partial(_resnet_block_kernel,
                             kernel=kernel, seq_len=N, groups=groups)

    out2d = pl.pallas_call(
        kern,
        out_shape=jax.ShapeDtypeStruct((B * N, c_out), x.dtype),
        grid_spec=pltpu.PrefetchScalarGridSpec(
            num_scalar_prefetch=0,
            grid=grid,
            in_specs=[
                pl.BlockSpec((rows, c_in), lambda b: (b, 0)),    # x (unpadded)
                full((kernel * c_in, c_out)),                    # w1 (bf16)
                full((1, c_out)),                                # b1
                full((1, c_out)),                                # gn1 gamma
                full((1, c_out)),                                # gn1 beta
                full((kernel * c_out, c_out)),                   # w2 (bf16)
                full((1, c_out)),                                # b2
                full((1, c_out)),                                # gn2 gamma
                full((1, c_out)),                                # gn2 beta
                full((c_in, c_out)),                             # res_conv w (bf16)
                full((1, c_out)),                                # res_conv b
                full((c_out, c_out)),                            # same-group one-hot
            ],
            out_specs=pl.BlockSpec((rows, c_out), lambda b: (b, 0)),
        ),
        compiler_params=pltpu.CompilerParams(
            dimension_semantics=("parallel",),
            vmem_limit_bytes=vmem_limit_bytes),
    )(x2,
      w1m, row(params["b1"]), row(params["g1w"]), row(params["g1b"]),
      w2m, row(params["b2"]), row(params["g2w"]), row(params["g2b"]),
      reswm, row(params["resb"]), Gm)

    return out2d.reshape(B, N, c_out)


def ref_forward(x, p, *, kernel=3, groups=8, mxu_dtype=None):
    """Pure-JAX reference mirroring the PyTorch module (channels-last).

    With mxu_dtype=jnp.bfloat16 the conv/residual matmul operands are rounded
    the same way the kernel rounds them (f32 accumulation), for a tight check.
    """
    pad = kernel // 2
    B, N, _ = x.shape
    c_out = p["w1"].shape[2]

    def mm(a, w):
        if mxu_dtype is not None:
            a = a.astype(mxu_dtype)
            w = w.astype(mxu_dtype)
        return jnp.einsum("bnc,cd->bnd", a, w, preferred_element_type=jnp.float32)

    def conv(src, w, b):
        srcp = jnp.pad(src, ((0, 0), (pad, pad), (0, 0)))
        out = b[None, None, :].astype(jnp.float32)
        for t in range(kernel):
            out = out + mm(srcp[:, t:t + N, :], w[t])
        return out

    def gn_silu(h, gamma, beta):
        hr = h.reshape(B, N, groups, c_out // groups)
        mean = hr.mean(axis=(1, 3), keepdims=True)
        var = ((hr - mean) ** 2).mean(axis=(1, 3), keepdims=True)
        hn = ((hr - mean) / jnp.sqrt(var + 1e-5)).reshape(B, N, c_out)
        y = hn * gamma[None, None, :] + beta[None, None, :]
        return y * jax.nn.sigmoid(y)

    h = gn_silu(conv(x, p["w1"], p["b1"]), p["g1w"], p["g1b"])
    h = gn_silu(conv(h, p["w2"], p["b2"]), p["g2w"], p["g2b"])
    res = mm(x, p["resw"]) + p["resb"][None, None, :]
    return h + res


if __name__ == "__main__":
    B, N = 4, 64
    dim, dim_out = 64, 128        # dim != dim_out -> res_conv is a real 1x1 conv
    K, groups = 3, 8

    key = jax.random.PRNGKey(0)
    ks = jax.random.split(key, 11)
    scale = 0.1
    params = {
        # conv weights stored (K, C_in, C_out) == torch weight.permute(2, 1, 0)
        "w1": scale * jax.random.normal(ks[0], (K, dim, dim_out), jnp.float32),
        "b1": scale * jax.random.normal(ks[1], (dim_out,), jnp.float32),
        "g1w": 1.0 + scale * jax.random.normal(ks[2], (dim_out,), jnp.float32),
        "g1b": scale * jax.random.normal(ks[3], (dim_out,), jnp.float32),
        "w2": scale * jax.random.normal(ks[4], (K, dim_out, dim_out), jnp.float32),
        "b2": scale * jax.random.normal(ks[5], (dim_out,), jnp.float32),
        "g2w": 1.0 + scale * jax.random.normal(ks[6], (dim_out,), jnp.float32),
        "g2b": scale * jax.random.normal(ks[7], (dim_out,), jnp.float32),
        "resw": scale * jax.random.normal(ks[8], (dim, dim_out), jnp.float32),
        "resb": scale * jax.random.normal(ks[9], (dim_out,), jnp.float32),
    }
    x = jax.random.normal(ks[10], (B, N, dim), jnp.float32)

    out = jax.block_until_ready(
        resnet_block_pallas(x, params, kernel=K, groups=groups))
    assert out.shape == (B, N, dim_out)

    # Tight structural check vs a reference that rounds MXU operands to bf16
    # the same way the kernel does (GroupNorm stats are f32 in both).
    ref_bf16 = ref_forward(x, params, kernel=K, groups=groups,
                           mxu_dtype=jnp.bfloat16)
    assert jnp.allclose(out, ref_bf16, atol=5e-3, rtol=5e-3), \
        "mismatch vs bf16-matched JAX reference"

    # Semantics check vs the full-f32 reference (bf16 MXU rounding tolerance).
    ref_f32 = ref_forward(x, params, kernel=K, groups=groups)
    assert jnp.allclose(out, ref_f32, atol=5e-2, rtol=5e-2), \
        "mismatch vs f32 JAX reference"

    print("KERNEL_OK")
</pallas_src>

<mosaic_0001>
module attributes {stable_mosaic.version = 11 : i64} {
  func.func @_resnet_block_kernel(%arg0: i32, %arg1: memref<256x64xf32, #tpu.memory_space<vmem>>, %arg2: memref<192x128xbf16, #tpu.memory_space<vmem>>, %arg3: memref<1x128xf32, #tpu.memory_space<vmem>>, %arg4: memref<1x128xf32, #tpu.memory_space<vmem>>, %arg5: memref<1x128xf32, #tpu.memory_space<vmem>>, %arg6: memref<384x128xbf16, #tpu.memory_space<vmem>>, %arg7: memref<1x128xf32, #tpu.memory_space<vmem>>, %arg8: memref<1x128xf32, #tpu.memory_space<vmem>>, %arg9: memref<1x128xf32, #tpu.memory_space<vmem>>, %arg10: memref<64x128xbf16, #tpu.memory_space<vmem>>, %arg11: memref<1x128xf32, #tpu.memory_space<vmem>>, %arg12: memref<128x128xf32, #tpu.memory_space<vmem>>, %arg13: memref<256x128xf32, #tpu.memory_space<vmem>>) attributes {dimension_semantics = [#tpu.dimension_semantics<parallel>], iteration_bounds = array<i64: 1>, scalar_prefetch = 0 : i64, scratch_operands = 0 : i64, tpu.core_type = #tpu.core_type<tc>, window_params = [{transform_indices = @transform_0, window_bounds = array<i64: 256, 64>}, {pipeline_mode = #tpu.pipeline_mode<synchronous>, transform_indices = @transform_1, window_bounds = array<i64: 192, 128>}, {pipeline_mode = #tpu.pipeline_mode<synchronous>, transform_indices = @transform_2, window_bounds = array<i64: 1, 128>}, {pipeline_mode = #tpu.pipeline_mode<synchronous>, transform_indices = @transform_3, window_bounds = array<i64: 1, 128>}, {pipeline_mode = #tpu.pipeline_mode<synchronous>, transform_indices = @transform_4, window_bounds = array<i64: 1, 128>}, {pipeline_mode = #tpu.pipeline_mode<synchronous>, transform_indices = @transform_5, window_bounds = array<i64: 384, 128>}, {pipeline_mode = #tpu.pipeline_mode<synchronous>, transform_indices = @transform_6, window_bounds = array<i64: 1, 128>}, {pipeline_mode = #tpu.pipeline_mode<synchronous>, transform_indices = @transform_7, window_bounds = array<i64: 1, 128>}, {pipeline_mode = #tpu.pipeline_mode<synchronous>, transform_indices = @transform_8, window_bounds = array<i64: 1, 128>}, {pipeline_mode = #tpu.pipeline_mode<synchronous>, transform_indices = @transform_9, window_bounds = array<i64: 64, 128>}, {pipeline_mode = #tpu.pipeline_mode<synchronous>, transform_indices = @transform_10, window_bounds = array<i64: 1, 128>}, {pipeline_mode = #tpu.pipeline_mode<synchronous>, transform_indices = @transform_11, window_bounds = array<i64: 128, 128>}, {transform_indices = @transform_12, window_bounds = array<i64: 256, 128>}]} {
    %0 = tpu.iota {dimensions = array<i32: 0>} : vector<64x1xi32>
    %1 = tpu.concatenate %0, %0, %0, %0 in 0 : vector<64x1xi32>, vector<64x1xi32>, vector<64x1xi32>, vector<64x1xi32> -> vector<256x1xi32>
    %c1_i32 = arith.constant 1 : i32
    %2 = vector.broadcast %c1_i32 : i32 to vector<256x1xi32>
    %3 = arith.cmpi sge, %1, %2 : vector<256x1xi32>
    %c63_i32 = arith.constant 63 : i32
    %4 = vector.broadcast %c63_i32 : i32 to vector<256x1xi32>
    %5 = arith.cmpi slt, %1, %4 : vector<256x1xi32>
    %c0 = arith.constant 0 : index
    %c0_0 = arith.constant 0 : index
    %6 = vector.load %arg1[%c0, %c0_0] : memref<256x64xf32, #tpu.memory_space<vmem>>, vector<256x64xf32>
    %c1_i32_1 = arith.constant 1 : i32
    %7 = tpu.dynamic_rotate %6 by %c1_i32_1 dim 0 : vector<256x64xf32>, i32 -> vector<256x64xf32>
    %cst = arith.constant 0.000000e+00 : f32
    %8 = vector.shape_cast %3 : vector<256x1xi1> to vector<256x1xi1>
    %9 = vector.broadcast %8 : vector<256x1xi1> to vector<256x64xi1>
    %10 = vector.broadcast %cst : f32 to vector<256x64xf32>
    %11 = arith.select %9, %7, %10 : vector<256x64xi1>, vector<256x64xf32>
    %12 = arith.truncf %11 : vector<256x64xf32> to vector<256x64xbf16>
    %13 = arith.truncf %6 : vector<256x64xf32> to vector<256x64xbf16>
    %c255_i32 = arith.constant 255 : i32
    %14 = tpu.dynamic_rotate %6 by %c255_i32 dim 0 : vector<256x64xf32>, i32 -> vector<256x64xf32>
    %cst_2 = arith.constant 0.000000e+00 : f32
    %15 = vector.shape_cast %5 : vector<256x1xi1> to vector<256x1xi1>
    %16 = vector.broadcast %15 : vector<256x1xi1> to vector<256x64xi1>
    %17 = vector.broadcast %cst_2 : f32 to vector<256x64xf32>
    %18 = arith.select %16, %14, %17 : vector<256x64xi1>, vector<256x64xf32>
    %19 = arith.truncf %18 : vector<256x64xf32> to vector<256x64xbf16>
    %20 = tpu.concatenate %12, %13, %19 in 1 : vector<256x64xbf16>, vector<256x64xbf16>, vector<256x64xbf16> -> vector<256x192xbf16>
    %c0_3 = arith.constant 0 : index
    %c0_4 = arith.constant 0 : index
    %21 = vector.load %arg2[%c0_3, %c0_4] : memref<192x128xbf16, #tpu.memory_space<vmem>>, vector<192x128xbf16>
    %cst_5 = arith.constant dense<0.000000e+00> : vector<256x128xf32>
    %22 = tpu.matmul %20, %21, %cst_5 {dimension_numbers = #tpu.dot_dimension_numbers<[1], [0], [0], [1], [0, 0, 1, 1], [], []>} : vector<256x192xbf16>, vector<192x128xbf16>, vector<256x128xf32> -> vector<256x128xf32>
    %c0_6 = arith.constant 0 : index
    %c0_7 = arith.constant 0 : index
    %23 = vector.load %arg3[%c0_6, %c0_7] : memref<1x128xf32, #tpu.memory_space<vmem>>, vector<1x128xf32>
    %24 = vector.broadcast %23 : vector<1x128xf32> to vector<256x128xf32>
    %25 = arith.addf %22, %24 : vector<256x128xf32>
    %c0_8 = arith.constant 0 : index
    %c0_9 = arith.constant 0 : index
    %26 = vector.load %arg4[%c0_8, %c0_9] : memref<1x128xf32, #tpu.memory_space<vmem>>, vector<1x128xf32>
    %c0_10 = arith.constant 0 : index
    %c0_11 = arith.constant 0 : index
    %27 = vector.load %arg5[%c0_10, %c0_11] : memref<1x128xf32, #tpu.memory_space<vmem>>, vector<1x128xf32>
    %c0_12 = arith.constant 0 : index
    %c0_13 = arith.constant 0 : index
    %28 = vector.load %arg12[%c0_12, %c0_13] : memref<128x128xf32, #tpu.memory_space<vmem>>, vector<128x128xf32>
    %29 = vector.extract_strided_slice %25 {offsets = [0, 0], sizes = [64, 128], strides = [1, 1]} : vector<256x128xf32> to vector<64x128xf32>
    %30 = vector.extract_strided_slice %25 {offsets = [64, 0], sizes = [64, 128], strides = [1, 1]} : vector<256x128xf32> to vector<64x128xf32>
    %31 = vector.extract_strided_slice %25 {offsets = [128, 0], sizes = [64, 128], strides = [1, 1]} : vector<256x128xf32> to vector<64x128xf32>
    %32 = vector.extract_strided_slice %25 {offsets = [192, 0], sizes = [64, 128], strides = [1, 1]} : vector<256x128xf32> to vector<64x128xf32>
    %cst_14 = arith.constant dense<0.000000e+00> : vector<128xf32>
    %33 = vector.multi_reduction <add>, %29, %cst_14 [0] : vector<64x128xf32> to vector<128xf32>
    %34 = vector.shape_cast %33 : vector<128xf32> to vector<1x128xf32>
    %cst_15 = arith.constant dense<0.000000e+00> : vector<128xf32>
    %35 = vector.multi_reduction <add>, %30, %cst_15 [0] : vector<64x128xf32> to vector<128xf32>
    %36 = vector.shape_cast %35 : vector<128xf32> to vector<1x128xf32>
    %cst_16 = arith.constant dense<0.000000e+00> : vector<128xf32>
    %37 = vector.multi_reduction <add>, %31, %cst_16 [0] : vector<64x128xf32> to vector<128xf32>
    %38 = vector.shape_cast %37 : vector<128xf32> to vector<1x128xf32>
    %cst_17 = arith.constant dense<0.000000e+00> : vector<128xf32>
    %39 = vector.multi_reduction <add>, %32, %cst_17 [0] : vector<64x128xf32> to vector<128xf32>
    %40 = vector.shape_cast %39 : vector<128xf32> to vector<1x128xf32>
    %41 = tpu.concatenate %34, %36, %38, %40 in 0 : vector<1x128xf32>, vector<1x128xf32>, vector<1x128xf32>, vector<1x128xf32> -> vector<4x128xf32>
    %cst_18 = arith.constant dense<0.000000e+00> : vector<4x128xf32>
    %42 = tpu.matmul %41, %28, %cst_18 {dimension_numbers = #tpu.dot_dimension_numbers<[1], [0], [0], [1], [0, 0, 1, 1], [], []>} : vector<4x128xf32>, vector<128x128xf32>, vector<4x128xf32> -> vector<4x128xf32>
    %cst_19 = arith.constant 1.024000e+03 : f32
    %43 = vector.broadcast %cst_19 : f32 to vector<4x128xf32>
    %44 = arith.divf %42, %43 : vector<4x128xf32>
    %45 = vector.extract_strided_slice %44 {offsets = [0, 0], sizes = [1, 128], strides = [1, 1]} : vector<4x128xf32> to vector<1x128xf32>
    %46 = vector.broadcast %45 : vector<1x128xf32> to vector<64x128xf32>
    %47 = arith.subf %29, %46 : vector<64x128xf32>
    %48 = vector.extract_strided_slice %44 {offsets = [1, 0], sizes = [1, 128], strides = [1, 1]} : vector<4x128xf32> to vector<1x128xf32>
    %49 = vector.broadcast %48 : vector<1x128xf32> to vector<64x128xf32>
    %50 = arith.subf %30, %49 : vector<64x128xf32>
    %51 = vector.extract_strided_slice %44 {offsets = [2, 0], sizes = [1, 128], strides = [1, 1]} : vector<4x128xf32> to vector<1x128xf32>
    %52 = vector.broadcast %51 : vector<1x128xf32> to vector<64x128xf32>
    %53 = arith.subf %31, %52 : vector<64x128xf32>
    %54 = vector.extract_strided_slice %44 {offsets = [3, 0], sizes = [1, 128], strides = [1, 1]} : vector<4x128xf32> to vector<1x128xf32>
    %55 = vector.broadcast %54 : vector<1x128xf32> to vector<64x128xf32>
    %56 = arith.subf %32, %55 : vector<64x128xf32>
    %57 = arith.mulf %47, %47 : vector<64x128xf32>
    %cst_20 = arith.constant dense<0.000000e+00> : vector<128xf32>
    %58 = vector.multi_reduction <add>, %57, %cst_20 [0] : vector<64x128xf32> to vector<128xf32>
    %59 = vector.shape_cast %58 : vector<128xf32> to vector<1x128xf32>
    %60 = arith.mulf %50, %50 : vector<64x128xf32>
    %cst_21 = arith.constant dense<0.000000e+00> : vector<128xf32>
    %61 = vector.multi_reduction <add>, %60, %cst_21 [0] : vector<64x128xf32> to vector<128xf32>
    %62 = vector.shape_cast %61 : vector<128xf32> to vector<1x128xf32>
    %63 = arith.mulf %53, %53 : vector<64x128xf32>
    %cst_22 = arith.constant dense<0.000000e+00> : vector<128xf32>
    %64 = vector.multi_reduction <add>, %63, %cst_22 [0] : vector<64x128xf32> to vector<128xf32>
    %65 = vector.shape_cast %64 : vector<128xf32> to vector<1x128xf32>
    %66 = arith.mulf %56, %56 : vector<64x128xf32>
    %cst_23 = arith.constant dense<0.000000e+00> : vector<128xf32>
    %67 = vector.multi_reduction <add>, %66, %cst_23 [0] : vector<64x128xf32> to vector<128xf32>
    %68 = vector.shape_cast %67 : vector<128xf32> to vector<1x128xf32>
    %69 = tpu.concatenate %59, %62, %65, %68 in 0 : vector<1x128xf32>, vector<1x128xf32>, vector<1x128xf32>, vector<1x128xf32> -> vector<4x128xf32>
    %cst_24 = arith.constant dense<0.000000e+00> : vector<4x128xf32>
    %70 = tpu.matmul %69, %28, %cst_24 {dimension_numbers = #tpu.dot_dimension_numbers<[1], [0], [0], [1], [0, 0, 1, 1], [], []>} : vector<4x128xf32>, vector<128x128xf32>, vector<4x128xf32> -> vector<4x128xf32>
    %cst_25 = arith.constant 1.024000e+03 : f32
    %71 = vector.broadcast %cst_25 : f32 to vector<4x128xf32>
    %72 = arith.divf %70, %71 : vector<4x128xf32>
    %cst_26 = arith.constant 9.99999974E-6 : f32
    %73 = vector.broadcast %cst_26 : f32 to vector<4x128xf32>
    %74 = arith.addf %72, %73 : vector<4x128xf32>
    %75 = math.rsqrt %74 : vector<4x128xf32>
    %76 = vector.extract_strided_slice %75 {offsets = [0, 0], sizes = [1, 128], strides = [1, 1]} : vector<4x128xf32> to vector<1x128xf32>
    %77 = vector.broadcast %76 : vector<1x128xf32> to vector<64x128xf32>
    %78 = arith.mulf %47, %77 : vector<64x128xf32>
    %79 = vector.broadcast %26 : vector<1x128xf32> to vector<64x128xf32>
    %80 = arith.mulf %78, %79 : vector<64x128xf32>
    %81 = vector.broadcast %27 : vector<1x128xf32> to vector<64x128xf32>
    %82 = arith.addf %80, %81 : vector<64x128xf32>
    %83 = arith.negf %82 : vector<64x128xf32>
    %84 = math.exp %83 : vector<64x128xf32>
    %cst_27 = arith.constant 1.000000e+00 : f32
    %85 = vector.broadcast %cst_27 : f32 to vector<64x128xf32>
    %86 = arith.addf %85, %84 : vector<64x128xf32>
    %87 = arith.divf %85, %86 : vector<64x128xf32>
    %88 = arith.mulf %82, %87 : vector<64x128xf32>
    %89 = vector.extract_strided_slice %75 {offsets = [1, 0], sizes = [1, 128], strides = [1, 1]} : vector<4x128xf32> to vector<1x128xf32>
    %90 = vector.broadcast %89 : vector<1x128xf32> to vector<64x128xf32>
    %91 = arith.mulf %50, %90 : vector<64x128xf32>
    %92 = vector.broadcast %26 : vector<1x128xf32> to vector<64x128xf32>
    %93 = arith.mulf %91, %92 : vector<64x128xf32>
    %94 = vector.broadcast %27 : vector<1x128xf32> to vector<64x128xf32>
    %95 = arith.addf %93, %94 : vector<64x128xf32>
    %96 = arith.negf %95 : vector<64x128xf32>
    %97 = math.exp %96 : vector<64x128xf32>
    %cst_28 = arith.constant 1.000000e+00 : f32
    %98 = vector.broadcast %cst_28 : f32 to vector<64x128xf32>
    %99 = arith.addf %98, %97 : vector<64x128xf32>
    %100 = arith.divf %98, %99 : vector<64x128xf32>
    %101 = arith.mulf %95, %100 : vector<64x128xf32>
    %102 = vector.extract_strided_slice %75 {offsets = [2, 0], sizes = [1, 128], strides = [1, 1]} : vector<4x128xf32> to vector<1x128xf32>
    %103 = vector.broadcast %102 : vector<1x128xf32> to vector<64x128xf32>
    %104 = arith.mulf %53, %103 : vector<64x128xf32>
    %105 = vector.broadcast %26 : vector<1x128xf32> to vector<64x128xf32>
    %106 = arith.mulf %104, %105 : vector<64x128xf32>
    %107 = vector.broadcast %27 : vector<1x128xf32> to vector<64x128xf32>
    %108 = arith.addf %106, %107 : vector<64x128xf32>
    %109 = arith.negf %108 : vector<64x128xf32>
    %110 = math.exp %109 : vector<64x128xf32>
    %cst_29 = arith.constant 1.000000e+00 : f32
    %111 = vector.broadcast %cst_29 : f32 to vector<64x128xf32>
    %112 = arith.addf %111, %110 : vector<64x128xf32>
    %113 = arith.divf %111, %112 : vector<64x128xf32>
    %114 = arith.mulf %108, %113 : vector<64x128xf32>
    %115 = vector.extract_strided_slice %75 {offsets = [3, 0], sizes = [1, 128], strides = [1, 1]} : vector<4x128xf32> to vector<1x128xf32>
    %116 = vector.broadcast %115 : vector<1x128xf32> to vector<64x128xf32>
    %117 = arith.mulf %56, %116 : vector<64x128xf32>
    %118 = vector.broadcast %26 : vector<1x128xf32> to vector<64x128xf32>
    %119 = arith.mulf %117, %118 : vector<64x128xf32>
    %120 = vector.broadcast %27 : vector<1x128xf32> to vector<64x128xf32>
    %121 = arith.addf %119, %120 : vector<64x128xf32>
    %122 = arith.negf %121 : vector<64x128xf32>
    %123 = math.exp %122 : vector<64x128xf32>
    %cst_30 = arith.constant 1.000000e+00 : f32
    %124 = vector.broadcast %cst_30 : f32 to vector<64x128xf32>
    %125 = arith.addf %124, %123 : vector<64x128xf32>
    %126 = arith.divf %124, %125 : vector<64x128xf32>
    %127 = arith.mulf %121, %126 : vector<64x128xf32>
    %128 = tpu.concatenate %88, %101, %114, %127 in 0 : vector<64x128xf32>, vector<64x128xf32>, vector<64x128xf32>, vector<64x128xf32> -> vector<256x128xf32>
    %c1_i32_31 = arith.constant 1 : i32
    %129 = tpu.dynamic_rotate %128 by %c1_i32_31 dim 0 : vector<256x128xf32>, i32 -> vector<256x128xf32>
    %cst_32 = arith.constant 0.000000e+00 : f32
    %130 = vector.shape_cast %3 : vector<256x1xi1> to vector<256x1xi1>
    %131 = vector.broadcast %130 : vector<256x1xi1> to vector<256x128xi1>
    %132 = vector.broadcast %cst_32 : f32 to vector<256x128xf32>
    %133 = arith.select %131, %129, %132 : vector<256x128xi1>, vector<256x128xf32>
    %134 = arith.truncf %133 : vector<256x128xf32> to vector<256x128xbf16>
    %135 = arith.truncf %128 : vector<256x128xf32> to vector<256x128xbf16>
    %c255_i32_33 = arith.constant 255 : i32
    %136 = tpu.dynamic_rotate %128 by %c255_i32_33 dim 0 : vector<256x128xf32>, i32 -> vector<256x128xf32>
    %cst_34 = arith.constant 0.000000e+00 : f32
    %137 = vector.shape_cast %5 : vector<256x1xi1> to vector<256x1xi1>
    %138 = vector.broadcast %137 : vector<256x1xi1> to vector<256x128xi1>
    %139 = vector.broadcast %cst_34 : f32 to vector<256x128xf32>
    %140 = arith.select %138, %136, %139 : vector<256x128xi1>, vector<256x128xf32>
    %141 = arith.truncf %140 : vector<256x128xf32> to vector<256x128xbf16>
    %142 = tpu.concatenate %134, %135, %141 in 1 : vector<256x128xbf16>, vector<256x128xbf16>, vector<256x128xbf16> -> vector<256x384xbf16>
    %c0_35 = arith.constant 0 : index
    %c0_36 = arith.constant 0 : index
    %143 = vector.load %arg6[%c0_35, %c0_36] : memref<384x128xbf16, #tpu.memory_space<vmem>>, vector<384x128xbf16>
    %cst_37 = arith.constant dense<0.000000e+00> : vector<256x128xf32>
    %144 = tpu.matmul %142, %143, %cst_37 {dimension_numbers = #tpu.dot_dimension_numbers<[1], [0], [0], [1], [0, 0, 1, 1], [], []>} : vector<256x384xbf16>, vector<384x128xbf16>, vector<256x128xf32> -> vector<256x128xf32>
    %c0_38 = arith.constant 0 : index
    %c0_39 = arith.constant 0 : index
    %145 = vector.load %arg7[%c0_38, %c0_39] : memref<1x128xf32, #tpu.memory_space<vmem>>, vector<1x128xf32>
    %146 = vector.broadcast %145 : vector<1x128xf32> to vector<256x128xf32>
    %147 = arith.addf %144, %146 : vector<256x128xf32>
    %c0_40 = arith.constant 0 : index
    %c0_41 = arith.constant 0 : index
    %148 = vector.load %arg8[%c0_40, %c0_41] : memref<1x128xf32, #tpu.memory_space<vmem>>, vector<1x128xf32>
    %c0_42 = arith.constant 0 : index
    %c0_43 = arith.constant 0 : index
    %149 = vector.load %arg9[%c0_42, %c0_43] : memref<1x128xf32, #tpu.memory_space<vmem>>, vector<1x128xf32>
    %c0_44 = arith.constant 0 : index
    %c0_45 = arith.constant 0 : index
    %150 = vector.load %arg12[%c0_44, %c0_45] : memref<128x128xf32, #tpu.memory_space<vmem>>, vector<128x128xf32>
    %151 = vector.extract_strided_slice %147 {offsets = [0, 0], sizes = [64, 128], strides = [1, 1]} : vector<256x128xf32> to vector<64x128xf32>
    %152 = vector.extract_strided_slice %147 {offsets = [64, 0], sizes = [64, 128], strides = [1, 1]} : vector<256x128xf32> to vector<64x128xf32>
    %153 = vector.extract_strided_slice %147 {offsets = [128, 0], sizes = [64, 128], strides = [1, 1]} : vector<256x128xf32> to vector<64x128xf32>
    %154 = vector.extract_strided_slice %147 {offsets = [192, 0], sizes = [64, 128], strides = [1, 1]} : vector<256x128xf32> to vector<64x128xf32>
    %cst_46 = arith.constant dense<0.000000e+00> : vector<128xf32>
    %155 = vector.multi_reduction <add>, %151, %cst_46 [0] : vector<64x128xf32> to vector<128xf32>
    %156 = vector.shape_cast %155 : vector<128xf32> to vector<1x128xf32>
    %cst_47 = arith.constant dense<0.000000e+00> : vector<128xf32>
    %157 = vector.multi_reduction <add>, %152, %cst_47 [0] : vector<64x128xf32> to vector<128xf32>
    %158 = vector.shape_cast %157 : vector<128xf32> to vector<1x128xf32>
    %cst_48 = arith.constant dense<0.000000e+00> : vector<128xf32>
    %159 = vector.multi_reduction <add>, %153, %cst_48 [0] : vector<64x128xf32> to vector<128xf32>
    %160 = vector.shape_cast %159 : vector<128xf32> to vector<1x128xf32>
    %cst_49 = arith.constant dense<0.000000e+00> : vector<128xf32>
    %161 = vector.multi_reduction <add>, %154, %cst_49 [0] : vector<64x128xf32> to vector<128xf32>
    %162 = vector.shape_cast %161 : vector<128xf32> to vector<1x128xf32>
    %163 = tpu.concatenate %156, %158, %160, %162 in 0 : vector<1x128xf32>, vector<1x128xf32>, vector<1x128xf32>, vector<1x128xf32> -> vector<4x128xf32>
    %cst_50 = arith.constant dense<0.000000e+00> : vector<4x128xf32>
    %164 = tpu.matmul %163, %150, %cst_50 {dimension_numbers = #tpu.dot_dimension_numbers<[1], [0], [0], [1], [0, 0, 1, 1], [], []>} : vector<4x128xf32>, vector<128x128xf32>, vector<4x128xf32> -> vector<4x128xf32>
    %cst_51 = arith.constant 1.024000e+03 : f32
    %165 = vector.broadcast %cst_51 : f32 to vector<4x128xf32>
    %166 = arith.divf %164, %165 : vector<4x128xf32>
    %167 = vector.extract_strided_slice %166 {offsets = [0, 0], sizes = [1, 128], strides = [1, 1]} : vector<4x128xf32> to vector<1x128xf32>
    %168 = vector.broadcast %167 : vector<1x128xf32> to vector<64x128xf32>
    %169 = arith.subf %151, %168 : vector<64x128xf32>
    %170 = vector.extract_strided_slice %166 {offsets = [1, 0], sizes = [1, 128], strides = [1, 1]} : vector<4x128xf32> to vector<1x128xf32>
    %171 = vector.broadcast %170 : vector<1x128xf32> to vector<64x128xf32>
    %172 = arith.subf %152, %171 : vector<64x128xf32>
    %173 = vector.extract_strided_slice %166 {offsets = [2, 0], sizes = [1, 128], strides = [1, 1]} : vector<4x128xf32> to vector<1x128xf32>
    %174 = vector.broadcast %173 : vector<1x128xf32> to vector<64x128xf32>
    %175 = arith.subf %153, %174 : vector<64x128xf32>
    %176 = vector.extract_strided_slice %166 {offsets = [3, 0], sizes = [1, 128], strides = [1, 1]} : vector<4x128xf32> to vector<1x128xf32>
    %177 = vector.broadcast %176 : vector<1x128xf32> to vector<64x128xf32>
    %178 = arith.subf %154, %177 : vector<64x128xf32>
    %179 = arith.mulf %169, %169 : vector<64x128xf32>
    %cst_52 = arith.constant dense<0.000000e+00> : vector<128xf32>
    %180 = vector.multi_reduction <add>, %179, %cst_52 [0] : vector<64x128xf32> to vector<128xf32>
    %181 = vector.shape_cast %180 : vector<128xf32> to vector<1x128xf32>
    %182 = arith.mulf %172, %172 : vector<64x128xf32>
    %cst_53 = arith.constant dense<0.000000e+00> : vector<128xf32>
    %183 = vector.multi_reduction <add>, %182, %cst_53 [0] : vector<64x128xf32> to vector<128xf32>
    %184 = vector.shape_cast %183 : vector<128xf32> to vector<1x128xf32>
    %185 = arith.mulf %175, %175 : vector<64x128xf32>
    %cst_54 = arith.constant dense<0.000000e+00> : vector<128xf32>
    %186 = vector.multi_reduction <add>, %185, %cst_54 [0] : vector<64x128xf32> to vector<128xf32>
    %187 = vector.shape_cast %186 : vector<128xf32> to vector<1x128xf32>
    %188 = arith.mulf %178, %178 : vector<64x128xf32>
    %cst_55 = arith.constant dense<0.000000e+00> : vector<128xf32>
    %189 = vector.multi_reduction <add>, %188, %cst_55 [0] : vector<64x128xf32> to vector<128xf32>
    %190 = vector.shape_cast %189 : vector<128xf32> to vector<1x128xf32>
    %191 = tpu.concatenate %181, %184, %187, %190 in 0 : vector<1x128xf32>, vector<1x128xf32>, vector<1x128xf32>, vector<1x128xf32> -> vector<4x128xf32>
    %cst_56 = arith.constant dense<0.000000e+00> : vector<4x128xf32>
    %192 = tpu.matmul %191, %150, %cst_56 {dimension_numbers = #tpu.dot_dimension_numbers<[1], [0], [0], [1], [0, 0, 1, 1], [], []>} : vector<4x128xf32>, vector<128x128xf32>, vector<4x128xf32> -> vector<4x128xf32>
    %cst_57 = arith.constant 1.024000e+03 : f32
    %193 = vector.broadcast %cst_57 : f32 to vector<4x128xf32>
    %194 = arith.divf %192, %193 : vector<4x128xf32>
    %cst_58 = arith.constant 9.99999974E-6 : f32
    %195 = vector.broadcast %cst_58 : f32 to vector<4x128xf32>
    %196 = arith.addf %194, %195 : vector<4x128xf32>
    %197 = math.rsqrt %196 : vector<4x128xf32>
    %198 = vector.extract_strided_slice %197 {offsets = [0, 0], sizes = [1, 128], strides = [1, 1]} : vector<4x128xf32> to vector<1x128xf32>
    %199 = vector.broadcast %198 : vector<1x128xf32> to vector<64x128xf32>
    %200 = arith.mulf %169, %199 : vector<64x128xf32>
    %201 = vector.broadcast %148 : vector<1x128xf32> to vector<64x128xf32>
    %202 = arith.mulf %200, %201 : vector<64x128xf32>
    %203 = vector.broadcast %149 : vector<1x128xf32> to vector<64x128xf32>
    %204 = arith.addf %202, %203 : vector<64x128xf32>
    %205 = arith.negf %204 : vector<64x128xf32>
    %206 = math.exp %205 : vector<64x128xf32>
    %cst_59 = arith.constant 1.000000e+00 : f32
    %207 = vector.broadcast %cst_59 : f32 to vector<64x128xf32>
    %208 = arith.addf %207, %206 : vector<64x128xf32>
    %209 = arith.divf %207, %208 : vector<64x128xf32>
    %210 = arith.mulf %204, %209 : vector<64x128xf32>
    %211 = vector.extract_strided_slice %197 {offsets = [1, 0], sizes = [1, 128], strides = [1, 1]} : vector<4x128xf32> to vector<1x128xf32>
    %212 = vector.broadcast %211 : vector<1x128xf32> to vector<64x128xf32>
    %213 = arith.mulf %172, %212 : vector<64x128xf32>
    %214 = vector.broadcast %148 : vector<1x128xf32> to vector<64x128xf32>
    %215 = arith.mulf %213, %214 : vector<64x128xf32>
    %216 = vector.broadcast %149 : vector<1x128xf32> to vector<64x128xf32>
    %217 = arith.addf %215, %216 : vector<64x128xf32>
    %218 = arith.negf %217 : vector<64x128xf32>
    %219 = math.exp %218 : vector<64x128xf32>
    %cst_60 = arith.constant 1.000000e+00 : f32
    %220 = vector.broadcast %cst_60 : f32 to vector<64x128xf32>
    %221 = arith.addf %220, %219 : vector<64x128xf32>
    %222 = arith.divf %220, %221 : vector<64x128xf32>
    %223 = arith.mulf %217, %222 : vector<64x128xf32>
    %224 = vector.extract_strided_slice %197 {offsets = [2, 0], sizes = [1, 128], strides = [1, 1]} : vector<4x128xf32> to vector<1x128xf32>
    %225 = vector.broadcast %224 : vector<1x128xf32> to vector<64x128xf32>
    %226 = arith.mulf %175, %225 : vector<64x128xf32>
    %227 = vector.broadcast %148 : vector<1x128xf32> to vector<64x128xf32>
    %228 = arith.mulf %226, %227 : vector<64x128xf32>
    %229 = vector.broadcast %149 : vector<1x128xf32> to vector<64x128xf32>
    %230 = arith.addf %228, %229 : vector<64x128xf32>
    %231 = arith.negf %230 : vector<64x128xf32>
    %232 = math.exp %231 : vector<64x128xf32>
    %cst_61 = arith.constant 1.000000e+00 : f32
    %233 = vector.broadcast %cst_61 : f32 to vector<64x128xf32>
    %234 = arith.addf %233, %232 : vector<64x128xf32>
    %235 = arith.divf %233, %234 : vector<64x128xf32>
    %236 = arith.mulf %230, %235 : vector<64x128xf32>
    %237 = vector.extract_strided_slice %197 {offsets = [3, 0], sizes = [1, 128], strides = [1, 1]} : vector<4x128xf32> to vector<1x128xf32>
    %238 = vector.broadcast %237 : vector<1x128xf32> to vector<64x128xf32>
    %239 = arith.mulf %178, %238 : vector<64x128xf32>
    %240 = vector.broadcast %148 : vector<1x128xf32> to vector<64x128xf32>
    %241 = arith.mulf %239, %240 : vector<64x128xf32>
    %242 = vector.broadcast %149 : vector<1x128xf32> to vector<64x128xf32>
    %243 = arith.addf %241, %242 : vector<64x128xf32>
    %244 = arith.negf %243 : vector<64x128xf32>
    %245 = math.exp %244 : vector<64x128xf32>
    %cst_62 = arith.constant 1.000000e+00 : f32
    %246 = vector.broadcast %cst_62 : f32 to vector<64x128xf32>
    %247 = arith.addf %246, %245 : vector<64x128xf32>
    %248 = arith.divf %246, %247 : vector<64x128xf32>
    %249 = arith.mulf %243, %248 : vector<64x128xf32>
    %250 = tpu.concatenate %210, %223, %236, %249 in 0 : vector<64x128xf32>, vector<64x128xf32>, vector<64x128xf32>, vector<64x128xf32> -> vector<256x128xf32>
    %251 = arith.truncf %6 : vector<256x64xf32> to vector<256x64xbf16>
    %c0_63 = arith.constant 0 : index
    %c0_64 = arith.constant 0 : index
    %252 = vector.load %arg10[%c0_63, %c0_64] : memref<64x128xbf16, #tpu.memory_space<vmem>>, vector<64x128xbf16>
    %cst_65 = arith.constant dense<0.000000e+00> : vector<256x128xf32>
    %253 = tpu.matmul %251, %252, %cst_65 {dimension_numbers = #tpu.dot_dimension_numbers<[1], [0], [0], [1], [0, 0, 1, 1], [], []>} : vector<256x64xbf16>, vector<64x128xbf16>, vector<256x128xf32> -> vector<256x128xf32>
    %c0_66 = arith.constant 0 : index
    %c0_67 = arith.constant 0 : index
    %254 = vector.load %arg11[%c0_66, %c0_67] : memref<1x128xf32, #tpu.memory_space<vmem>>, vector<1x128xf32>
    %255 = vector.broadcast %254 : vector<1x128xf32> to vector<256x128xf32>
    %256 = arith.addf %253, %255 : vector<256x128xf32>
    %257 = arith.addf %250, %256 : vector<256x128xf32>
    %c0_68 = arith.constant 0 : index
    %c0_69 = arith.constant 0 : index
    %258 = vector.load %arg13[%c0_68, %c0_69] : memref<256x128xf32, #tpu.memory_space<vmem>>, vector<256x128xf32>
    tpu.vector_store %arg13[%c0_68, %c0_69], %257 {strides = array<i32>} : memref<256x128xf32, #tpu.memory_space<vmem>>, vector<256x128xf32>,
    return
  }
  func.func @transform_0(%arg0: i32) -> (i32, i32) {
    %c0_i32 = arith.constant 0 : i32
    %c0_i32_0 = arith.constant 0 : i32
    return %arg0, %c0_i32 : i32, i32
  }
  func.func @transform_1(%arg0: i32) -> (i32, i32) {
    %c0_i32 = arith.constant 0 : i32
    %c0_i32_0 = arith.constant 0 : i32
    %c0_i32_1 = arith.constant 0 : i32
    return %c0_i32, %c0_i32_0 : i32, i32
  }
  func.func @transform_2(%arg0: i32) -> (i32, i32) {
    %c0_i32 = arith.constant 0 : i32
    %c0_i32_0 = arith.constant 0 : i32
    %c0_i32_1 = arith.constant 0 : i32
    return %c0_i32, %c0_i32_0 : i32, i32
  }
  func.func @transform_3(%arg0: i32) -> (i32, i32) {
    %c0_i32 = arith.constant 0 : i32
    %c0_i32_0 = arith.constant 0 : i32
    %c0_i32_1 = arith.constant 0 : i32
    return %c0_i32, %c0_i32_0 : i32, i32
  }
  func.func @transform_4(%arg0: i32) -> (i32, i32) {
    %c0_i32 = arith.constant 0 : i32
    %c0_i32_0 = arith.constant 0 : i32
    %c0_i32_1 = arith.constant 0 : i32
    return %c0_i32, %c0_i32_0 : i32, i32
  }
  func.func @transform_5(%arg0: i32) -> (i32, i32) {
    %c0_i32 = arith.constant 0 : i32
    %c0_i32_0 = arith.constant 0 : i32
    %c0_i32_1 = arith.constant 0 : i32
    return %c0_i32, %c0_i32_0 : i32, i32
  }
  func.func @transform_6(%arg0: i32) -> (i32, i32) {
    %c0_i32 = arith.constant 0 : i32
    %c0_i32_0 = arith.constant 0 : i32
    %c0_i32_1 = arith.constant 0 : i32
    return %c0_i32, %c0_i32_0 : i32, i32
  }
  func.func @transform_7(%arg0: i32) -> (i32, i32) {
    %c0_i32 = arith.constant 0 : i32
    %c0_i32_0 = arith.constant 0 : i32
    %c0_i32_1 = arith.constant 0 : i32
    return %c0_i32, %c0_i32_0 : i32, i32
  }
  func.func @transform_8(%arg0: i32) -> (i32, i32) {
    %c0_i32 = arith.constant 0 : i32
    %c0_i32_0 = arith.constant 0 : i32
    %c0_i32_1 = arith.constant 0 : i32
    return %c0_i32, %c0_i32_0 : i32, i32
  }
  func.func @transform_9(%arg0: i32) -> (i32, i32) {
    %c0_i32 = arith.constant 0 : i32
    %c0_i32_0 = arith.constant 0 : i32
    %c0_i32_1 = arith.constant 0 : i32
    return %c0_i32, %c0_i32_0 : i32, i32
  }
  func.func @transform_10(%arg0: i32) -> (i32, i32) {
    %c0_i32 = arith.constant 0 : i32
    %c0_i32_0 = arith.constant 0 : i32
    %c0_i32_1 = arith.constant 0 : i32
    return %c0_i32, %c0_i32_0 : i32, i32
  }
  func.func @transform_11(%arg0: i32) -> (i32, i32) {
    %c0_i32 = arith.constant 0 : i32
    %c0_i32_0 = arith.constant 0 : i32
    %c0_i32_1 = arith.constant 0 : i32
    return %c0_i32, %c0_i32_0 : i32, i32
  }
  func.func @transform_12(%arg0: i32) -> (i32, i32) {
    %c0_i32 = arith.constant 0 : i32
    %c0_i32_0 = arith.constant 0 : i32
    return %arg0, %c0_i32 : i32, i32
  }
}

</mosaic_0001>

<llo_original>
// kernel: tpu_custom_call.1
$region0: #{tpu_custom_call.1}
  #allocation0 [shape = 'u32[]', space=smem, size = 0x4, offset = 0x4, fixed_abs, tag = 'smem constant byte address 0x4 - core index']
  #allocation1 [shape = 'u32[144,128]{1,0:T(1,128)}', space=vmem, size = 0x12000, scoped, tag = 'internal scratch']
  %s0 = inlined_call_operand.vmem [shape: f32[256,64], index: 0, kind: input, shape index: {}]
  %s1 = inlined_call_operand.hbm [shape: bf16[192,128], index: 1, kind: input, shape index: {}]
  %s2 = inlined_call_operand.vmem [shape: f32[1,128], index: 2, kind: input, shape index: {}]
  %s3 = inlined_call_operand.vmem [shape: f32[1,128], index: 3, kind: input, shape index: {}]
  %s4 = inlined_call_operand.vmem [shape: f32[1,128], index: 4, kind: input, shape index: {}]
  %s5 = inlined_call_operand.vmem [shape: bf16[384,128], index: 5, kind: input, shape index: {}]
  %s6 = inlined_call_operand.vmem [shape: f32[1,128], index: 6, kind: input, shape index: {}]
  %s7 = inlined_call_operand.vmem [shape: f32[1,128], index: 7, kind: input, shape index: {}]
  %s8 = inlined_call_operand.vmem [shape: f32[1,128], index: 8, kind: input, shape index: {}]
  %s9 = inlined_call_operand.vmem [shape: bf16[64,128], index: 9, kind: input, shape index: {}]
  %s10 = inlined_call_operand.vmem [shape: f32[1,128], index: 10, kind: input, shape index: {}]
  %s11 = inlined_call_operand.vmem [shape: f32[128,128], index: 11, kind: input, shape index: {}]
  %s12 = inlined_call_operand.hbm [shape: f32[256,128], index: 12, kind: output, shape index: {}]
  %s13 = sld [smem:[#allocation0]]
  $region62: #{tpu_custom_call.1} parent=0
    _
  %s15 = ssub.s32 1, %s13
  %s16 = scalar_select 0, %s15, %s13
  $region1: #{tpu_custom_call.1} parent=0
    #allocation2 [shape = 'u8[49152]{0}', space=vmem, size = 0xc000, scoped, tag = 'input window, operand 1, single buffered']
    #allocation3 [shape = 's32[1]{0}', space=sflag, size = 0x4, scoped, tag = 'scoped memory for tpu_custom_call.1']
    #allocation4 [shape = 's32[1]{0}', space=sflag, size = 0x4, scoped, tag = 'scoped memory for tpu_custom_call.1']
    #allocation5 [shape = 'u8[131072]{0}', space=vmem, size = 0x20000, scoped, tag = 'output window, operand 0, single buffered']
    %17 = vsyncpa [#allocation3], 0
    %18 = vsyncpa [#allocation4], 0
    // Predicated region
    $region2: #{tpu_custom_call.1} parent=1 // pred_check
      _
    $region3: #{tpu_custom_call.1} parent=1 // pred_check_branch
      %20 = sbr.rel (0) target = $region5
    $region4: #{tpu_custom_call.1} parent=1 // pred_region
      _
    $region5: #{tpu_custom_call.1} parent=1 // pred_fallthru
      _
    // Predicated region
    $region6: #{tpu_custom_call.1} parent=1 // pred_check
      _
    $region7: #{tpu_custom_call.1} parent=1 // pred_check_branch
      %22 = sbr.rel (0) target = $region9
    $region8: #{tpu_custom_call.1} parent=1 // pred_region
      %s24 = ssub.s32 1536, 1536
      %25 = vsyncadd [#allocation3], %s24
      %s26 = sshll.u32 [#allocation2], 4
      %s27 = int_to_ptr.vmem [resolvable:$true] %s26
      %32 = dma.hbm_to_vmem [thread:$0]  %s1, 1536, %s27, [#allocation3], 64, 64, 4
    $region9: #{tpu_custom_call.1} parent=1 // pred_fallthru
      _
    // Predicated region
    $region10: #{tpu_custom_call.1} parent=1 // pred_check
      _
    $region11: #{tpu_custom_call.1} parent=1 // pred_check_branch
      %34 = sbr.rel (0) target = $region13
    $region12: #{tpu_custom_call.1} parent=1 // pred_region
      _
    $region13: #{tpu_custom_call.1} parent=1 // pred_fallthru
      _
    // Predicated region
    $region14: #{tpu_custom_call.1} parent=1 // pred_check
      _
    $region15: #{tpu_custom_call.1} parent=1 // pred_check_branch
      %36 = sbr.rel (0) target = $region17
    $region16: #{tpu_custom_call.1} parent=1 // pred_region
      _
    $region17: #{tpu_custom_call.1} parent=1 // pred_fallthru
      _
    // Predicated region
    $region18: #{tpu_custom_call.1} parent=1 // pred_check
      _
    $region19: #{tpu_custom_call.1} parent=1 // pred_check_branch
      %38 = sbr.rel (0) target = $region21
    $region20: #{tpu_custom_call.1} parent=1 // pred_region
      _
    $region21: #{tpu_custom_call.1} parent=1 // pred_fallthru
      _
    // Predicated region
    $region22: #{tpu_custom_call.1} parent=1 // pred_check
      _
    $region23: #{tpu_custom_call.1} parent=1 // pred_check_branch
      %40 = sbr.rel (0) target = $region25
    $region24: #{tpu_custom_call.1} parent=1 // pred_region
      _
    $region25: #{tpu_custom_call.1} parent=1 // pred_fallthru
      _
    // Predicated region
    $region26: #{tpu_custom_call.1} parent=1 // pred_check
      _
    $region27: #{tpu_custom_call.1} parent=1 // pred_check_branch
      %42 = sbr.rel (0) target = $region29
    $region28: #{tpu_custom_call.1} parent=1 // pred_region
      _
    $region29: #{tpu_custom_call.1} parent=1 // pred_fallthru
      _
    // Predicated region
    $region30: #{tpu_custom_call.1} parent=1 // pred_check
      _
    $region31: #{tpu_custom_call.1} parent=1 // pred_check_branch
      %44 = sbr.rel (0) target = $region33
    $region32: #{tpu_custom_call.1} parent=1 // pred_region
      _
    $region33: #{tpu_custom_call.1} parent=1 // pred_fallthru
      _
    // Predicated region
    $region34: #{tpu_custom_call.1} parent=1 // pred_check
      _
    $region35: #{tpu_custom_call.1} parent=1 // pred_check_branch
      %46 = sbr.rel (0) target = $region37
    $region36: #{tpu_custom_call.1} parent=1 // pred_region
      _
    $region37: #{tpu_custom_call.1} parent=1 // pred_fallthru
      _
    // Predicated region
    $region38: #{tpu_custom_call.1} parent=1 // pred_check
      _
    $region39: #{tpu_custom_call.1} parent=1 // pred_check_branch
      %48 = sbr.rel (0) target = $region41
    $region40: #{tpu_custom_call.1} parent=1 // pred_region
      _
    $region41: #{tpu_custom_call.1} parent=1 // pred_fallthru
      _
    // Predicated region
    $region42: #{tpu_custom_call.1} parent=1 // pred_check
      _
    $region43: #{tpu_custom_call.1} parent=1 // pred_check_branch
      %50 = sbr.rel (0) target = $region45
    $region44: #{tpu_custom_call.1} parent=1 // pred_region
      _
    $region45: #{tpu_custom_call.1} parent=1 // pred_fallthru
      _
    // Predicated region
    $region46: #{tpu_custom_call.1} parent=1 // pred_check
      _
    $region47: #{tpu_custom_call.1} parent=1 // pred_check_branch
      %52 = sbr.rel (0) target = $region49
    $region48: #{tpu_custom_call.1} parent=1 // pred_region
      _
    $region49: #{tpu_custom_call.1} parent=1 // pred_fallthru
      _
    // Predicated region
    $region50: #{tpu_custom_call.1} parent=1 // pred_check
      _
    $region51: #{tpu_custom_call.1} parent=1 // pred_check_branch
      %54 = sbr.rel (0) target = $region53
    $region52: #{tpu_custom_call.1} parent=1 // pred_region
      %55 = dma.done [#allocation3], 1536
    $region53: #{tpu_custom_call.1} parent=1 // pred_fallthru
      _
    %v57 = vlaneseq
    %v58 = vshrl.u32 %v57, 7
    %v59 = vadd.s32 %v58, 8
    %v60 = vadd.s32 %v58, 16
    %v61 = vadd.s32 %v58, 24
    %v62 = vadd.s32 %v58, 32
    %v63 = vadd.s32 %v58, 40
    %v64 = vadd.s32 %v58, 48
    %v65 = vadd.s32 %v58, 56
    %vm66 = vcmp.ge.s32.totalorder %v58, 1
    %vm67 = vcmp.ge.s32.totalorder %v59, 1
    %vm68 = vcmp.ge.s32.totalorder %v60, 1
    %vm69 = vcmp.ge.s32.totalorder %v61, 1
    %vm70 = vcmp.ge.s32.totalorder %v62, 1
    %vm71 = vcmp.ge.s32.totalorder %v63, 1
    %vm72 = vcmp.ge.s32.totalorder %v64, 1
    %vm73 = vcmp.ge.s32.totalorder %v65, 1
    %vm74 = vcmp.lt.s32.totalorder %v58, 63
    %vm75 = vcmp.lt.s32.totalorder %v59, 63
    %vm76 = vcmp.lt.s32.totalorder %v60, 63
    %vm77 = vcmp.lt.s32.totalorder %v61, 63
    %vm78 = vcmp.lt.s32.totalorder %v62, 63
    %vm79 = vcmp.lt.s32.totalorder %v63, 63
    %vm80 = vcmp.lt.s32.totalorder %v64, 63
    %vm81 = vcmp.lt.s32.totalorder %v65, 63
    %v82 = vld [vmem:[%s0] sm:$0xff]
    %v83 = vld [vmem:[%s0 + $0x8] sm:$0xff]
    %v84 = vld [vmem:[%s0 + $0x10] sm:$0xff]
    %v85 = vld [vmem:[%s0 + $0x18] sm:$0xff]
    %v86 = vld [vmem:[%s0 + $0x20] sm:$0xff]
    %v87 = vld [vmem:[%s0 + $0x28] sm:$0xff]
    %v88 = vld [vmem:[%s0 + $0x30] sm:$0xff]
    %v89 = vld [vmem:[%s0 + $0x38] sm:$0xff]
    %v90 = vld [vmem:[%s0 + $0x40] sm:$0xff]
    %v91 = vld [vmem:[%s0 + $0x48] sm:$0xff]
    %v92 = vld [vmem:[%s0 + $0x50] sm:$0xff]
    %v93 = vld [vmem:[%s0 + $0x58] sm:$0xff]
    %v94 = vld [vmem:[%s0 + $0x60] sm:$0xff]
    %v95 = vld [vmem:[%s0 + $0x68] sm:$0xff]
    %v96 = vld [vmem:[%s0 + $0x70] sm:$0xff]
    %v97 = vld [vmem:[%s0 + $0x78] sm:$0xff]
    %v98 = vld [vmem:[%s0 + $0x80] sm:$0xff]
    %v99 = vld [vmem:[%s0 + $0x88] sm:$0xff]
    %v100 = vld [vmem:[%s0 + $0x90] sm:$0xff]
    %v101 = vld [vmem:[%s0 + $0x98] sm:$0xff]
    %v102 = vld [vmem:[%s0 + $0xa0] sm:$0xff]
    %v103 = vld [vmem:[%s0 + $0xa8] sm:$0xff]
    %v104 = vld [vmem:[%s0 + $0xb0] sm:$0xff]
    %v105 = vld [vmem:[%s0 + $0xb8] sm:$0xff]
    %v106 = vld [vmem:[%s0 + $0xc0] sm:$0xff]
    %v107 = vld [vmem:[%s0 + $0xc8] sm:$0xff]
    %v108 = vld [vmem:[%s0 + $0xd0] sm:$0xff]
    %v109 = vld [vmem:[%s0 + $0xd8] sm:$0xff]
    %v110 = vld [vmem:[%s0 + $0xe0] sm:$0xff]
    %v111 = vld [vmem:[%s0 + $0xe8] sm:$0xff]
    %v112 = vld [vmem:[%s0 + $0xf0] sm:$0xff]
    %v113 = vld [vmem:[%s0 + $0xf8] sm:$0xff]
    %v114 = vrot.slane %v82, 7
    %v115 = vrot.slane %v83, 7
    %v116 = vrot.slane %v84, 7
    %v117 = vrot.slane %v85, 7
    %v118 = vrot.slane %v86, 7
    %v119 = vrot.slane %v87, 7
    %v120 = vrot.slane %v88, 7
    %v121 = vrot.slane %v89, 7
    %v122 = vrot.slane %v90, 7
    %v123 = vrot.slane %v91, 7
    %v124 = vrot.slane %v92, 7
    %v125 = vrot.slane %v93, 7
    %v126 = vrot.slane %v94, 7
    %v127 = vrot.slane %v95, 7
    %v128 = vrot.slane %v96, 7
    %v129 = vrot.slane %v97, 7
    %v130 = vrot.slane %v98, 7
    %v131 = vrot.slane %v99, 7
    %v132 = vrot.slane %v100, 7
    %v133 = vrot.slane %v101, 7
    %v134 = vrot.slane %v102, 7
    %v135 = vrot.slane %v103, 7
    %v136 = vrot.slane %v104, 7
    %v137 = vrot.slane %v105, 7
    %v138 = vrot.slane %v106, 7
    %v139 = vrot.slane %v107, 7
    %v140 = vrot.slane %v108, 7
    %v141 = vrot.slane %v109, 7
    %v142 = vrot.slane %v110, 7
    %v143 = vrot.slane %v111, 7
    %v144 = vrot.slane %v112, 7
    %v145 = vrot.slane %v113, 7
    %vm146 = vcmp.lt.s32.totalorder %v58, 1
    %v147 = vsel %vm146, %v144, %v145
    %v148 = vsel %vm146, %v143, %v144
    %v149 = vsel %vm146, %v142, %v143
    %v150 = vsel %vm146, %v141, %v142
    %v151 = vsel %vm146, %v140, %v141
    %v152 = vsel %vm146, %v139, %v140
    %v153 = vsel %vm146, %v138, %v139
    %v154 = vsel %vm146, %v137, %v138
    %v155 = vsel %vm146, %v136, %v137
    %v156 = vsel %vm146, %v135, %v136
    %v157 = vsel %vm146, %v134, %v135
    %v158 = vsel %vm146, %v133, %v134
    %v159 = vsel %vm146, %v132, %v133
    %v160 = vsel %vm146, %v131, %v132
    %v161 = vsel %vm146, %v130, %v131
    %v162 = vsel %vm146, %v129, %v130
    %v163 = vsel %vm146, %v128, %v129
    %v164 = vsel %vm146, %v127, %v128
    %v165 = vsel %vm146, %v126, %v127
    %v166 = vsel %vm146, %v125, %v126
    %v167 = vsel %vm146, %v124, %v125
    %v168 = vsel %vm146, %v123, %v124
    %v169 = vsel %vm146, %v122, %v123
    %v170 = vsel %vm146, %v121, %v122
    %v171 = vsel %vm146, %v120, %v121
    %v172 = vsel %vm146, %v119, %v120
    %v173 = vsel %vm146, %v118, %v119
    %v174 = vsel %vm146, %v117, %v118
    %v175 = vsel %vm146, %v116, %v117
    %v176 = vsel %vm146, %v115, %v116
    %v177 = vsel %vm146, %v114, %v115
    %v178 = vsel %vm146, %v145, %v114
    %v179 = vsel %vm66, 1, 0
    %v180 = vsel %vm67, 1, 0
    %v181 = vsel %vm68, 1, 0
    %v182 = vsel %vm69, 1, 0
    %v183 = vsel %vm70, 1, 0
    %v184 = vsel %vm71, 1, 0
    %v185 = vsel %vm72, 1, 0
    %v186 = vsel %vm73, 1, 0
    %187 = vset.pattern.permute.xlu0 0
    %188 = vperm.xlu0 %187, %v179
    %v189 = vpop.permute.xlu0 %188
    %190 = vset.pattern.permute.xlu0 0
    %191 = vperm.xlu0 %190, %v180
    %v192 = vpop.permute.xlu0 %191
    %193 = vset.pattern.permute.xlu0 0
    %194 = vperm.xlu0 %193, %v181
    %v195 = vpop.permute.xlu0 %194
    %196 = vset.pattern.permute.xlu0 0
    %197 = vperm.xlu0 %196, %v182
    %v198 = vpop.permute.xlu0 %197
    %199 = vset.pattern.permute.xlu0 0
    %200 = vperm.xlu0 %199, %v183
    %v201 = vpop.permute.xlu0 %200
    %202 = vset.pattern.permute.xlu0 0
    %203 = vperm.xlu0 %202, %v184
    %v204 = vpop.permute.xlu0 %203
    %205 = vset.pattern.permute.xlu0 0
    %206 = vperm.xlu0 %205, %v185
    %v207 = vpop.permute.xlu0 %206
    %208 = vset.pattern.permute.xlu0 0
    %209 = vperm.xlu0 %208, %v186
    %v210 = vpop.permute.xlu0 %209
    %vm211 = vcmp.eq.s32.totalorder %v189, 1
    %vm212 = vcmp.eq.s32.totalorder %v192, 1
    %vm213 = vcmp.eq.s32.totalorder %v195, 1
    %vm214 = vcmp.eq.s32.totalorder %v198, 1
    %vm215 = vcmp.eq.s32.totalorder %v201, 1
    %vm216 = vcmp.eq.s32.totalorder %v204, 1
    %vm217 = vcmp.eq.s32.totalorder %v207, 1
    %vm218 = vcmp.eq.s32.totalorder %v210, 1
    %v219 = vsel %vm211, %v178, 0.0
    %v220 = vsel %vm212, %v177, 0.0
    %v221 = vsel %vm213, %v176, 0.0
    %v222 = vsel %vm214, %v175, 0.0
    %v223 = vsel %vm215, %v174, 0.0
    %v224 = vsel %vm216, %v173, 0.0
    %v225 = vsel %vm217, %v172, 0.0
    %v226 = vsel %vm218, %v171, 0.0
    %v227 = vsel %vm211, %v170, 0.0
    %v228 = vsel %vm212, %v169, 0.0
    %v229 = vsel %vm213, %v168, 0.0
    %v230 = vsel %vm214, %v167, 0.0
    %v231 = vsel %vm215, %v166, 0.0
    %v232 = vsel %vm216, %v165, 0.0
    %v233 = vsel %vm217, %v164, 0.0
    %v234 = vsel %vm218, %v163, 0.0
    %v235 = vsel %vm211, %v162, 0.0
    %v236 = vsel %vm212, %v161, 0.0
    %v237 = vsel %vm213, %v160, 0.0
    %v238 = vsel %vm214, %v159, 0.0
    %v239 = vsel %vm215, %v158, 0.0
    %v240 = vsel %vm216, %v157, 0.0
    %v241 = vsel %vm217, %v156, 0.0
    %v242 = vsel %vm218, %v155, 0.0
    %v243 = vsel %vm211, %v154, 0.0
    %v244 = vsel %vm212, %v153, 0.0
    %v245 = vsel %vm213, %v152, 0.0
    %v246 = vsel %vm214, %v151, 0.0
    %v247 = vsel %vm215, %v150, 0.0
    %v248 = vsel %vm216, %v149, 0.0
    %v249 = vsel %vm217, %v148, 0.0
    %v250 = vsel %vm218, %v147, 0.0
    %v251 = vpack.c.bf16 %v220, %v219
    %v252 = vpack.c.bf16 %v222, %v221
    %v253 = vpack.c.bf16 %v224, %v223
    %v254 = vpack.c.bf16 %v226, %v225
    %v255 = vpack.c.bf16 %v228, %v227
    %v256 = vpack.c.bf16 %v230, %v229
    %v257 = vpack.c.bf16 %v232, %v231
    %v258 = vpack.c.bf16 %v234, %v233
    %v259 = vpack.c.bf16 %v236, %v235
    %v260 = vpack.c.bf16 %v238, %v237
    %v261 = vpack.c.bf16 %v240, %v239
    %v262 = vpack.c.bf16 %v242, %v241
    %v263 = vpack.c.bf16 %v244, %v243
    %v264 = vpack.c.bf16 %v246, %v245
    %v265 = vpack.c.bf16 %v248, %v247
    %v266 = vpack.c.bf16 %v250, %v249
    %v267 = vpack.c.bf16 %v83, %v82
    %v268 = vpack.c.bf16 %v85, %v84
    %v269 = vpack.c.bf16 %v87, %v86
    %v270 = vpack.c.bf16 %v89, %v88
    %v271 = vpack.c.bf16 %v91, %v90
    %v272 = vpack.c.bf16 %v93, %v92
    %v273 = vpack.c.bf16 %v95, %v94
    %v274 = vpack.c.bf16 %v97, %v96
    %v275 = vpack.c.bf16 %v99, %v98
    %v276 = vpack.c.bf16 %v101, %v100
    %v277 = vpack.c.bf16 %v103, %v102
    %v278 = vpack.c.bf16 %v105, %v104
    %v279 = vpack.c.bf16 %v107, %v106
    %v280 = vpack.c.bf16 %v109, %v108
    %v281 = vpack.c.bf16 %v111, %v110
    %v282 = vpack.c.bf16 %v113, %v112
    %v283 = vrot.slane %v82, 1
    %v284 = vrot.slane %v83, 1
    %v285 = vrot.slane %v84, 1
    %v286 = vrot.slane %v85, 1
    %v287 = vrot.slane %v86, 1
    %v288 = vrot.slane %v87, 1
    %v289 = vrot.slane %v88, 1
    %v290 = vrot.slane %v89, 1
    %v291 = vrot.slane %v90, 1
    %v292 = vrot.slane %v91, 1
    %v293 = vrot.slane %v92, 1
    %v294 = vrot.slane %v93, 1
    %v295 = vrot.slane %v94, 1
    %v296 = vrot.slane %v95, 1
    %v297 = vrot.slane %v96, 1
    %v298 = vrot.slane %v97, 1
    %v299 = vrot.slane %v98, 1
    %v300 = vrot.slane %v99, 1
    %v301 = vrot.slane %v100, 1
    %v302 = vrot.slane %v101, 1
    %v303 = vrot.slane %v102, 1
    %v304 = vrot.slane %v103, 1
    %v305 = vrot.slane %v104, 1
    %v306 = vrot.slane %v105, 1
    %v307 = vrot.slane %v106, 1
    %v308 = vrot.slane %v107, 1
    %v309 = vrot.slane %v108, 1
    %v310 = vrot.slane %v109, 1
    %v311 = vrot.slane %v110, 1
    %v312 = vrot.slane %v111, 1
    %v313 = vrot.slane %v112, 1
    %v314 = vrot.slane %v113, 1
    %vm315 = vcmp.lt.s32.totalorder %v58, 7
    %v316 = vsel %vm315, %v313, %v314
    %v317 = vsel %vm315, %v312, %v313
    %v318 = vsel %vm315, %v311, %v312
    %v319 = vsel %vm315, %v310, %v311
    %v320 = vsel %vm315, %v309, %v310
    %v321 = vsel %vm315, %v308, %v309
    %v322 = vsel %vm315, %v307, %v308
    %v323 = vsel %vm315, %v306, %v307
    %v324 = vsel %vm315, %v305, %v306
    %v325 = vsel %vm315, %v304, %v305
    %v326 = vsel %vm315, %v303, %v304
    %v327 = vsel %vm315, %v302, %v303
    %v328 = vsel %vm315, %v301, %v302
    %v329 = vsel %vm315, %v300, %v301
    %v330 = vsel %vm315, %v299, %v300
    %v331 = vsel %vm315, %v298, %v299
    %v332 = vsel %vm315, %v297, %v298
    %v333 = vsel %vm315, %v296, %v297
    %v334 = vsel %vm315, %v295, %v296
    %v335 = vsel %vm315, %v294, %v295
    %v336 = vsel %vm315, %v293, %v294
    %v337 = vsel %vm315, %v292, %v293
    %v338 = vsel %vm315, %v291, %v292
    %v339 = vsel %vm315, %v290, %v291
    %v340 = vsel %vm315, %v289, %v290
    %v341 = vsel %vm315, %v288, %v289
    %v342 = vsel %vm315, %v287, %v288
    %v343 = vsel %vm315, %v286, %v287
    %v344 = vsel %vm315, %v285, %v286
    %v345 = vsel %vm315, %v284, %v285
    %v346 = vsel %vm315, %v283, %v284
    %v347 = vsel %vm315, %v314, %v283
    %v348 = vsel %vm74, 1, 0
    %v349 = vsel %vm75, 1, 0
    %v350 = vsel %vm76, 1, 0
    %v351 = vsel %vm77, 1, 0
    %v352 = vsel %vm78, 1, 0
    %v353 = vsel %vm79, 1, 0
    %v354 = vsel %vm80, 1, 0
    %v355 = vsel %vm81, 1, 0
    %356 = vset.pattern.permute.xlu0 0
    %357 = vperm.xlu0 %356, %v348
    %v358 = vpop.permute.xlu0 %357
    %359 = vset.pattern.permute.xlu0 0
    %360 = vperm.xlu0 %359, %v349
    %v361 = vpop.permute.xlu0 %360
    %362 = vset.pattern.permute.xlu0 0
    %363 = vperm.xlu0 %362, %v350
    %v364 = vpop.permute.xlu0 %363
    %365 = vset.pattern.permute.xlu0 0
    %366 = vperm.xlu0 %365, %v351
    %v367 = vpop.permute.xlu0 %366
    %368 = vset.pattern.permute.xlu0 0
    %369 = vperm.xlu0 %368, %v352
    %v370 = vpop.permute.xlu0 %369
    %371 = vset.pattern.permute.xlu0 0
    %372 = vperm.xlu0 %371, %v353
    %v373 = vpop.permute.xlu0 %372
    %374 = vset.pattern.permute.xlu0 0
    %375 = vperm.xlu0 %374, %v354
    %v376 = vpop.permute.xlu0 %375
    %377 = vset.pattern.permute.xlu0 0
    %378 = vperm.xlu0 %377, %v355
    %v379 = vpop.permute.xlu0 %378
    %vm380 = vcmp.eq.s32.totalorder %v358, 1
    %vm381 = vcmp.eq.s32.totalorder %v361, 1
    %vm382 = vcmp.eq.s32.totalorder %v364, 1
    %vm383 = vcmp.eq.s32.totalorder %v367, 1
    %vm384 = vcmp.eq.s32.totalorder %v370, 1
    %vm385 = vcmp.eq.s32.totalorder %v373, 1
    %vm386 = vcmp.eq.s32.totalorder %v376, 1
    %vm387 = vcmp.eq.s32.totalorder %v379, 1
    %v388 = vsel %vm380, %v346, 0.0
    %v389 = vsel %vm381, %v345, 0.0
    %v390 = vsel %vm382, %v344, 0.0
    %v391 = vsel %vm383, %v343, 0.0
    %v392 = vsel %vm384, %v342, 0.0
    %v393 = vsel %vm385, %v341, 0.0
    %v394 = vsel %vm386, %v340, 0.0
    %v395 = vsel %vm387, %v339, 0.0
    %v396 = vsel %vm380, %v338, 0.0
    %v397 = vsel %vm381, %v337, 0.0
    %v398 = vsel %vm382, %v336, 0.0
    %v399 = vsel %vm383, %v335, 0.0
    %v400 = vsel %vm384, %v334, 0.0
    %v401 = vsel %vm385, %v333, 0.0
    %v402 = vsel %vm386, %v332, 0.0
    %v403 = vsel %vm387, %v331, 0.0
    %v404 = vsel %vm380, %v330, 0.0
    %v405 = vsel %vm381, %v329, 0.0
    %v406 = vsel %vm382, %v328, 0.0
    %v407 = vsel %vm383, %v327, 0.0
    %v408 = vsel %vm384, %v326, 0.0
    %v409 = vsel %vm385, %v325, 0.0
    %v410 = vsel %vm386, %v324, 0.0
    %v411 = vsel %vm387, %v323, 0.0
    %v412 = vsel %vm380, %v322, 0.0
    %v413 = vsel %vm381, %v321, 0.0
    %v414 = vsel %vm382, %v320, 0.0
    %v415 = vsel %vm383, %v319, 0.0
    %v416 = vsel %vm384, %v318, 0.0
    %v417 = vsel %vm385, %v317, 0.0
    %v418 = vsel %vm386, %v316, 0.0
    %v419 = vsel %vm387, %v347, 0.0
    %v420 = vpack.c.bf16 %v389, %v388
    %v421 = vpack.c.bf16 %v391, %v390
    %v422 = vpack.c.bf16 %v393, %v392
    %v423 = vpack.c.bf16 %v395, %v394
    %v424 = vpack.c.bf16 %v397, %v396
    %v425 = vpack.c.bf16 %v399, %v398
    %v426 = vpack.c.bf16 %v401, %v400
    %v427 = vpack.c.bf16 %v403, %v402
    %v428 = vpack.c.bf16 %v405, %v404
    %v429 = vpack.c.bf16 %v407, %v406
    %v430 = vpack.c.bf16 %v409, %v408
    %v431 = vpack.c.bf16 %v411, %v410
    %v432 = vpack.c.bf16 %v413, %v412
    %v433 = vpack.c.bf16 %v415, %v414
    %v434 = vpack.c.bf16 %v417, %v416
    %v435 = vpack.c.bf16 %v419, %v418
    %452 = vrot.lane.b32.xlu0 %v267, 64
    %v453 = vpop.permute.xlu0 %452
    %454 = vrot.lane.b32.xlu0 %v268, 64
    %v455 = vpop.permute.xlu0 %454
    %456 = vrot.lane.b32.xlu0 %v269, 64
    %v457 = vpop.permute.xlu0 %456
    %458 = vrot.lane.b32.xlu0 %v270, 64
    %v459 = vpop.permute.xlu0 %458
    %460 = vrot.lane.b32.xlu0 %v271, 64
    %v461 = vpop.permute.xlu0 %460
    %462 = vrot.lane.b32.xlu0 %v272, 64
    %v463 = vpop.permute.xlu0 %462
    %464 = vrot.lane.b32.xlu0 %v273, 64
    %v465 = vpop.permute.xlu0 %464
    %466 = vrot.lane.b32.xlu0 %v274, 64
    %v467 = vpop.permute.xlu0 %466
    %468 = vrot.lane.b32.xlu0 %v275, 64
    %v469 = vpop.permute.xlu0 %468
    %470 = vrot.lane.b32.xlu0 %v276, 64
    %v471 = vpop.permute.xlu0 %470
    %472 = vrot.lane.b32.xlu0 %v277, 64
    %v473 = vpop.permute.xlu0 %472
    %474 = vrot.lane.b32.xlu0 %v278, 64
    %v475 = vpop.permute.xlu0 %474
    %476 = vrot.lane.b32.xlu0 %v279, 64
    %v477 = vpop.permute.xlu0 %476
    %478 = vrot.lane.b32.xlu0 %v280, 64
    %v479 = vpop.permute.xlu0 %478
    %480 = vrot.lane.b32.xlu0 %v281, 64
    %v481 = vpop.permute.xlu0 %480
    %482 = vrot.lane.b32.xlu0 %v282, 64
    %v483 = vpop.permute.xlu0 %482
    %vm484 = vcmask 523264
    %v487 = vsel %vm484, %v251, %v453
    %v491 = vsel %vm484, %v252, %v455
    %v495 = vsel %vm484, %v253, %v457
    %v499 = vsel %vm484, %v254, %v459
    %v503 = vsel %vm484, %v255, %v461
    %v507 = vsel %vm484, %v256, %v463
    %v511 = vsel %vm484, %v257, %v465
    %v515 = vsel %vm484, %v258, %v467
    %v519 = vsel %vm484, %v259, %v469
    %v523 = vsel %vm484, %v260, %v471
    %v527 = vsel %vm484, %v261, %v473
    %v531 = vsel %vm484, %v262, %v475
    %v535 = vsel %vm484, %v263, %v477
    %v539 = vsel %vm484, %v264, %v479
    %v543 = vsel %vm484, %v265, %v481
    %v547 = vsel %vm484, %v266, %v483
    %v549 = vld [vmem:[#allocation2] sm:$0xf]
    %v550 = vld [vmem:[#allocation2 + $0x4] sm:$0xf]
    %v551 = vld [vmem:[#allocation2 + $0x8] sm:$0xf]
    %v552 = vld [vmem:[#allocation2 + $0xc] sm:$0xf]
    %v553 = vld [vmem:[#allocation2 + $0x10] sm:$0xf]
    %v554 = vld [vmem:[#allocation2 + $0x14] sm:$0xf]
    %v555 = vld [vmem:[#allocation2 + $0x18] sm:$0xf]
    %v556 = vld [vmem:[#allocation2 + $0x1c] sm:$0xf]
    %v557 = vld [vmem:[#allocation2 + $0x20] sm:$0xf]
    %v558 = vld [vmem:[#allocation2 + $0x24] sm:$0xf]
    %v559 = vld [vmem:[#allocation2 + $0x28] sm:$0xf]
    %v560 = vld [vmem:[#allocation2 + $0x2c] sm:$0xf]
    %v561 = vld [vmem:[#allocation2 + $0x30] sm:$0xf]
    %v562 = vld [vmem:[#allocation2 + $0x34] sm:$0xf]
    %v563 = vld [vmem:[#allocation2 + $0x38] sm:$0xf]
    %v564 = vld [vmem:[#allocation2 + $0x3c] sm:$0xf]
    %v565 = vld [vmem:[#allocation2 + $0x40] sm:$0xf]
    %v566 = vld [vmem:[#allocation2 + $0x44] sm:$0xf]
    %v567 = vld [vmem:[#allocation2 + $0x48] sm:$0xf]
    %v568 = vld [vmem:[#allocation2 + $0x4c] sm:$0xf]
    %v569 = vld [vmem:[#allocation2 + $0x50] sm:$0xf]
    %v570 = vld [vmem:[#allocation2 + $0x54] sm:$0xf]
    %v571 = vld [vmem:[#allocation2 + $0x58] sm:$0xf]
    %v572 = vld [vmem:[#allocation2 + $0x5c] sm:$0xf]
    %v573 = vld [vmem:[%s2] sm:$0x1]
    %v575 = vlaneseq
    %v576 = vshrl.u32 %v575, 7
    %v577 = vsub.s32 0, %v576
    %v578 = vrot.slane %v573, %v577
    %v604 = vunpack.c.l.b16 %v549
    %v605 = vunpack.c.l.b16 %v550
    %v606 = vunpack.c.l.b16 %v551
    %v607 = vunpack.c.l.b16 %v552
    %v608 = vunpack.c.l.b16 %v553
    %v609 = vunpack.c.l.b16 %v554
    %v610 = vunpack.c.l.b16 %v555
    %v611 = vunpack.c.l.b16 %v556
    %v612 = vunpack.c.l.b16 %v557
    %v613 = vunpack.c.l.b16 %v558
    %v614 = vunpack.c.l.b16 %v559
    %v615 = vunpack.c.l.b16 %v560
    %v616 = vunpack.c.l.b16 %v561
    %v617 = vunpack.c.l.b16 %v562
    %v618 = vunpack.c.l.b16 %v563
    %v619 = vunpack.c.l.b16 %v564
    %v620 = vunpack.c.l.b16 %v565
    %v621 = vunpack.c.l.b16 %v566
    %v622 = vunpack.c.l.b16 %v567
    %v623 = vunpack.c.l.b16 %v568
    %v624 = vunpack.c.l.b16 %v569
    %v625 = vunpack.c.l.b16 %v570
    %v626 = vunpack.c.l.b16 %v571
    %v627 = vunpack.c.l.b16 %v572
    %v628 = vpack.c.b16 %v605, %v604
    %v629 = vpack.c.b16 %v607, %v606
    %v630 = vpack.c.b16 %v609, %v608
    %v631 = vpack.c.b16 %v611, %v610
    %v632 = vpack.c.b16 %v613, %v612
    %v633 = vpack.c.b16 %v615, %v614
    %v634 = vpack.c.b16 %v617, %v616
    %v635 = vpack.c.b16 %v619, %v618
    %v636 = vpack.c.b16 %v621, %v620
    %v637 = vpack.c.b16 %v623, %v622
    %v638 = vpack.c.b16 %v625, %v624
    %v639 = vpack.c.b16 %v627, %v626
    %v653 = vsel %vm484, %v420, 0
    %v656 = vsel %vm484, %v421, 0
    %v659 = vsel %vm484, %v422, 0
    %v662 = vsel %vm484, %v423, 0
    %v665 = vsel %vm484, %v424, 0
    %v668 = vsel %vm484, %v425, 0
    %v671 = vsel %vm484, %v426, 0
    %v674 = vsel %vm484, %v427, 0
    %v677 = vsel %vm484, %v428, 0
    %v680 = vsel %vm484, %v429, 0
    %v683 = vsel %vm484, %v430, 0
    %v686 = vsel %vm484, %v431, 0
    %v689 = vsel %vm484, %v432, 0
    %v692 = vsel %vm484, %v433, 0
    %v695 = vsel %vm484, %v434, 0
    %v698 = vsel %vm484, %v435, 0
    %700 = vmatprep.subr.bf16.mxu0 0
    %701 = vmatpush1.bf16.msra.mxu0 %v635
    %702 = vmatprep.subr.bf16.mxu0 0
    %703 = vmatpush1.bf16.msra.mxu0 %v634
    %704 = vmatprep.subr.bf16.mxu0 0
    %705 = vmatpush1.bf16.msra.mxu0 %v633
    %706 = vmatprep.subr.bf16.mxu0 0
    %707 = vmatpush1.bf16.msra.mxu0 %v632
    %708 = vmatprep.subr.bf16.mxu0 0
    %709 = vmatpush1.bf16.msra.mxu0 %v631
    %710 = vmatprep.subr.bf16.mxu0 0
    %711 = vmatpush1.bf16.msra.mxu0 %v630
    %712 = vmatprep.subr.bf16.mxu0 0
    %713 = vmatpush1.bf16.msra.mxu0 %v629
    %714 = vmatprep.subr.bf16.mxu0 0
    %715 = vmatpush1.bf16.msra.mxu0 %v628
    %716 = vmatprep.subr.bf16.mxu0 0
    %717 = vmatpush2.bf16.msra.mxu0 0
    %718 = vmatprep.subr.bf16.mxu0 0
    %719 = vmatpush2.bf16.msra.mxu0 0
    %720 = vmatprep.subr.bf16.mxu0 0
    %721 = vmatpush2.bf16.msra.mxu0 0
    %722 = vmatprep.subr.bf16.mxu0 0
    %723 = vmatpush2.bf16.msra.mxu0 0
    %724 = vmatprep.subr.bf16.mxu0 0
    %725 = vmatpush2.bf16.msra.mxu0 %v639
    %726 = vmatprep.subr.bf16.mxu0 0
    %727 = vmatpush2.bf16.msra.mxu0 %v638
    %728 = vmatprep.subr.bf16.mxu0 0
    %729 = vmatpush2.bf16.msra.mxu0 %v637
    %730 = vmatprep.subr.bf16.mxu0 0
    %731 = vmatpush2.bf16.msra.mxu0 %v636
    %732 = vmatprep.mubr.bf16.mxu0 %v653
    %733 = vmatmul.mubr.bf16.gmra.mxu0 %v487
    %v734 = vpop.f32.mrf.mxu0
    %v735 = vadd.f32 %v578, %v734
    %v736 = vpop.f32.mrf.mxu0
    %v737 = vpop.f32.mrf.mxu0
    %v738 = vadd.f32 %v578, %v737
    %v739 = vpop.f32.mrf.mxu0
    %740 = vmatprep.mubr.bf16.mxu0 %v656
    %741 = vmatmul.mubr.bf16.gmra.mxu0 %v491
    %v742 = vpop.f32.mrf.mxu0
    %v743 = vadd.f32 %v578, %v742
    %v744 = vpop.f32.mrf.mxu0
    %v745 = vpop.f32.mrf.mxu0
    %v746 = vadd.f32 %v578, %v745
    %v747 = vpop.f32.mrf.mxu0
    %748 = vmatprep.mubr.bf16.mxu0 %v659
    %749 = vmatmul.mubr.bf16.gmra.mxu0 %v495
    %v750 = vpop.f32.mrf.mxu0
    %v751 = vadd.f32 %v578, %v750
    %v752 = vpop.f32.mrf.mxu0
    %v753 = vpop.f32.mrf.mxu0
    %v754 = vadd.f32 %v578, %v753
    %v755 = vpop.f32.mrf.mxu0
    %756 = vmatprep.mubr.bf16.mxu0 %v662
    %757 = vmatmul.mubr.bf16.gmra.mxu0 %v499
    %v758 = vpop.f32.mrf.mxu0
    %v759 = vadd.f32 %v578, %v758
    %v760 = vpop.f32.mrf.mxu0
    %v761 = vpop.f32.mrf.mxu0
    %v762 = vadd.f32 %v578, %v761
    %v763 = vpop.f32.mrf.mxu0
    %764 = vmatprep.mubr.bf16.mxu0 %v665
    %765 = vmatmul.mubr.bf16.gmra.mxu0 %v503
    %v766 = vpop.f32.mrf.mxu0
    %v767 = vadd.f32 %v578, %v766
    %v768 = vpop.f32.mrf.mxu0
    %v769 = vpop.f32.mrf.mxu0
    %v770 = vadd.f32 %v578, %v769
    %v771 = vpop.f32.mrf.mxu0
    %772 = vmatprep.mubr.bf16.mxu0 %v668
    %773 = vmatmul.mubr.bf16.gmra.mxu0 %v507
    %v774 = vpop.f32.mrf.mxu0
    %v775 = vadd.f32 %v578, %v774
    %v776 = vpop.f32.mrf.mxu0
    %v777 = vpop.f32.mrf.mxu0
    %v778 = vadd.f32 %v578, %v777
    %v779 = vpop.f32.mrf.mxu0
    %780 = vmatprep.mubr.bf16.mxu0 %v671
    %781 = vmatmul.mubr.bf16.gmra.mxu0 %v511
    %v782 = vpop.f32.mrf.mxu0
    %v783 = vadd.f32 %v578, %v782
    %v784 = vpop.f32.mrf.mxu0
    %v785 = vpop.f32.mrf.mxu0
    %v786 = vadd.f32 %v578, %v785
    %v787 = vpop.f32.mrf.mxu0
    %788 = vmatprep.mubr.bf16.mxu0 %v674
    %789 = vmatmul.mubr.bf16.gmra.mxu0 %v515
    %v790 = vpop.f32.mrf.mxu0
    %v791 = vadd.f32 %v578, %v790
    %v792 = vpop.f32.mrf.mxu0
    %v793 = vpop.f32.mrf.mxu0
    %v794 = vadd.f32 %v578, %v793
    %v795 = vpop.f32.mrf.mxu0
    %796 = vmatprep.mubr.bf16.mxu0 %v677
    %797 = vmatmul.mubr.bf16.gmra.mxu0 %v519
    %v798 = vpop.f32.mrf.mxu0
    %v799 = vadd.f32 %v578, %v798
    %v800 = vpop.f32.mrf.mxu0
    %v801 = vpop.f32.mrf.mxu0
    %v802 = vadd.f32 %v578, %v801
    %v803 = vpop.f32.mrf.mxu0
    %804 = vmatprep.mubr.bf16.mxu0 %v680
    %805 = vmatmul.mubr.bf16.gmra.mxu0 %v523
    %v806 = vpop.f32.mrf.mxu0
    %v807 = vadd.f32 %v578, %v806
    %v808 = vpop.f32.mrf.mxu0
    %v809 = vpop.f32.mrf.mxu0
    %v810 = vadd.f32 %v578, %v809
    %v811 = vpop.f32.mrf.mxu0
    %812 = vmatprep.mubr.bf16.mxu0 %v683
    %813 = vmatmul.mubr.bf16.gmra.mxu0 %v527
    %v814 = vpop.f32.mrf.mxu0
    %v815 = vadd.f32 %v578, %v814
    %v816 = vpop.f32.mrf.mxu0
    %v817 = vpop.f32.mrf.mxu0
    %v818 = vadd.f32 %v578, %v817
    %v819 = vpop.f32.mrf.mxu0
    %820 = vmatprep.mubr.bf16.mxu0 %v686
    %821 = vmatmul.mubr.bf16.gmra.mxu0 %v531
    %v822 = vpop.f32.mrf.mxu0
    %v823 = vadd.f32 %v578, %v822
    %v824 = vpop.f32.mrf.mxu0
    %v825 = vpop.f32.mrf.mxu0
    %v826 = vadd.f32 %v578, %v825
    %v827 = vpop.f32.mrf.mxu0
    %828 = vmatprep.mubr.bf16.mxu0 %v689
    %829 = vmatmul.mubr.bf16.gmra.mxu0 %v535
    %v830 = vpop.f32.mrf.mxu0
    %v831 = vadd.f32 %v578, %v830
    %v832 = vpop.f32.mrf.mxu0
    %v833 = vpop.f32.mrf.mxu0
    %v834 = vadd.f32 %v578, %v833
    %v835 = vpop.f32.mrf.mxu0
    %836 = vmatprep.mubr.bf16.mxu0 %v692
    %837 = vmatmul.mubr.bf16.gmra.mxu0 %v539
    %v838 = vpop.f32.mrf.mxu0
    %v839 = vadd.f32 %v578, %v838
    %v840 = vpop.f32.mrf.mxu0
    %v841 = vpop.f32.mrf.mxu0
    %v842 = vadd.f32 %v578, %v841
    %v843 = vpop.f32.mrf.mxu0
    %844 = vmatprep.mubr.bf16.mxu0 %v695
    %845 = vmatmul.mubr.bf16.gmra.mxu0 %v543
    %v846 = vpop.f32.mrf.mxu0
    %v847 = vadd.f32 %v578, %v846
    %v848 = vpop.f32.mrf.mxu0
    %v849 = vpop.f32.mrf.mxu0
    %v850 = vadd.f32 %v578, %v849
    %v851 = vpop.f32.mrf.mxu0
    %852 = vmatprep.mubr.bf16.mxu0 %v698
    %853 = vmatmul.mubr.bf16.gmra.mxu0 %v547
    %v854 = vpop.f32.mrf.mxu0
    %v855 = vadd.f32 %v578, %v854
    %v856 = vpop.f32.mrf.mxu0
    %v857 = vpop.f32.mrf.mxu0
    %v858 = vadd.f32 %v578, %v857
    %v859 = vpop.f32.mrf.mxu0
    %860 = vdwg.mxu0
    %v861 = vld [vmem:[%s3] sm:$0x1]
    %v862 = vld [vmem:[%s4] sm:$0x1]
    %v863 = vld [vmem:[%s11] sm:$0xff]
    %v864 = vld [vmem:[%s11 + $0x8] sm:$0xff]
    %v865 = vld [vmem:[%s11 + $0x10] sm:$0xff]
    %v866 = vld [vmem:[%s11 + $0x18] sm:$0xff]
    %v867 = vld [vmem:[%s11 + $0x20] sm:$0xff]
    %v868 = vld [vmem:[%s11 + $0x28] sm:$0xff]
    %v869 = vld [vmem:[%s11 + $0x30] sm:$0xff]
    %v870 = vld [vmem:[%s11 + $0x38] sm:$0xff]
    %v871 = vld [vmem:[%s11 + $0x40] sm:$0xff]
    %v872 = vld [vmem:[%s11 + $0x48] sm:$0xff]
    %v873 = vld [vmem:[%s11 + $0x50] sm:$0xff]
    %v874 = vld [vmem:[%s11 + $0x58] sm:$0xff]
    %v875 = vld [vmem:[%s11 + $0x60] sm:$0xff]
    %v876 = vld [vmem:[%s11 + $0x68] sm:$0xff]
    %v877 = vld [vmem:[%s11 + $0x70] sm:$0xff]
    %v878 = vld [vmem:[%s11 + $0x78] sm:$0xff]
    %v879 = vadd.f32 %v735, %v738
    %v880 = vadd.f32 %v879, %v743
    %v881 = vadd.f32 %v880, %v746
    %v882 = vadd.f32 %v881, %v751
    %v883 = vadd.f32 %v882, %v754
    %v884 = vadd.f32 %v883, %v759
    %v885 = vadd.f32 %v884, %v762
    %v886 = vrot.slane %v885, 4
    %v887 = vadd.f32 %v885, %v886
    %v888 = vrot.slane %v887, 2
    %v889 = vadd.f32 %v887, %v888
    %v890 = vrot.slane %v889, 1
    %v891 = vadd.f32 %v889, %v890
    %v892 = vadd.f32 %v767, %v770
    %v893 = vadd.f32 %v892, %v775
    %v894 = vadd.f32 %v893, %v778
    %v895 = vadd.f32 %v894, %v783
    %v896 = vadd.f32 %v895, %v786
    %v897 = vadd.f32 %v896, %v791
    %v898 = vadd.f32 %v897, %v794
    %v899 = vrot.slane %v898, 4
    %v900 = vadd.f32 %v898, %v899
    %v901 = vrot.slane %v900, 2
    %v902 = vadd.f32 %v900, %v901
    %v903 = vrot.slane %v902, 1
    %v904 = vadd.f32 %v902, %v903
    %v905 = vadd.f32 %v799, %v802
    %v906 = vadd.f32 %v905, %v807
    %v907 = vadd.f32 %v906, %v810
    %v908 = vadd.f32 %v907, %v815
    %v909 = vadd.f32 %v908, %v818
    %v910 = vadd.f32 %v909, %v823
    %v911 = vadd.f32 %v910, %v826
    %v912 = vrot.slane %v911, 4
    %v913 = vadd.f32 %v911, %v912
    %v914 = vrot.slane %v913, 2
    %v915 = vadd.f32 %v913, %v914
    %v916 = vrot.slane %v915, 1
    %v917 = vadd.f32 %v915, %v916
    %v918 = vadd.f32 %v831, %v834
    %v919 = vadd.f32 %v918, %v839
    %v920 = vadd.f32 %v919, %v842
    %v921 = vadd.f32 %v920, %v847
    %v922 = vadd.f32 %v921, %v850
    %v923 = vadd.f32 %v922, %v855
    %v924 = vadd.f32 %v923, %v858
    %v925 = vrot.slane %v924, 4
    %v926 = vadd.f32 %v924, %v925
    %v927 = vrot.slane %v926, 2
    %v928 = vadd.f32 %v926, %v927
    %v929 = vrot.slane %v928, 1
    %v930 = vadd.f32 %v928, %v929
    %vm931 = vcmask 1040384
    %v932 = vsel %vm931, %v891, %v904
    %vm933 = vcmask 1041408
    %v934 = vsel %vm933, %v932, %v917
    %vm935 = vcmask 1042432
    %v936 = vsel %vm935, %v934, %v930
    %937 = vmatprep.subr.mxu0 0.0
    %938 = vmatpush1.msra.mxu0 %v878
    %939 = vmatprep.subr.mxu0 0.0
    %940 = vmatpush1.msra.mxu0 %v877
    %941 = vmatprep.subr.mxu0 0.0
    %942 = vmatpush1.msra.mxu0 %v876
    %943 = vmatprep.subr.mxu0 0.0
    %944 = vmatpush1.msra.mxu0 %v875
    %945 = vmatprep.subr.mxu0 0.0
    %946 = vmatpush1.msra.mxu0 %v874
    %947 = vmatprep.subr.mxu0 0.0
    %948 = vmatpush1.msra.mxu0 %v873
    %949 = vmatprep.subr.mxu0 0.0
    %950 = vmatpush1.msra.mxu0 %v872
    %951 = vmatprep.subr.mxu0 0.0
    %952 = vmatpush1.msra.mxu0 %v871
    %953 = vmatprep.subr.mxu0 0.0
    %954 = vmatpush1.msra.mxu0 %v870
    %955 = vmatprep.subr.mxu0 0.0
    %956 = vmatpush1.msra.mxu0 %v869
    %957 = vmatprep.subr.mxu0 0.0
    %958 = vmatpush1.msra.mxu0 %v868
    %959 = vmatprep.subr.mxu0 0.0
    %960 = vmatpush1.msra.mxu0 %v867
    %961 = vmatprep.subr.mxu0 0.0
    %962 = vmatpush1.msra.mxu0 %v866
    %963 = vmatprep.subr.mxu0 0.0
    %964 = vmatpush1.msra.mxu0 %v865
    %965 = vmatprep.subr.mxu0 0.0
    %966 = vmatpush1.msra.mxu0 %v864
    %967 = vmatprep.subr.mxu0 0.0
    %968 = vmatpush1.msra.mxu0 %v863
    %969 = vmatprep.subr.mxu0 0.0
    %970 = vmatpush2.msra.mxu0 0.0
    %971 = vmatprep.subr.mxu0 0.0
    %972 = vmatpush2.msra.mxu0 0.0
    %973 = vmatprep.subr.mxu0 0.0
    %974 = vmatpush2.msra.mxu0 0.0
    %975 = vmatprep.subr.mxu0 0.0
    %976 = vmatpush2.msra.mxu0 0.0
    %977 = vmatprep.subr.mxu0 0.0
    %978 = vmatpush2.msra.mxu0 0.0
    %979 = vmatprep.subr.mxu0 0.0
    %980 = vmatpush2.msra.mxu0 0.0
    %981 = vmatprep.subr.mxu0 0.0
    %982 = vmatpush2.msra.mxu0 0.0
    %983 = vmatprep.subr.mxu0 0.0
    %984 = vmatpush2.msra.mxu0 0.0
    %985 = vmatprep.subr.mxu0 0.0
    %986 = vmatpush2.msra.mxu0 0.0
    %987 = vmatprep.subr.mxu0 0.0
    %988 = vmatpush2.msra.mxu0 0.0
    %989 = vmatprep.subr.mxu0 0.0
    %990 = vmatpush2.msra.mxu0 0.0
    %991 = vmatprep.subr.mxu0 0.0
    %992 = vmatpush2.msra.mxu0 0.0
    %993 = vmatprep.subr.mxu0 0.0
    %994 = vmatpush2.msra.mxu0 0.0
    %995 = vmatprep.subr.mxu0 0.0
    %996 = vmatpush2.msra.mxu0 0.0
    %997 = vmatprep.subr.mxu0 0.0
    %998 = vmatpush2.msra.mxu0 0.0
    %999 = vmatprep.subr.mxu0 0.0
    %1000 = vmatpush2.msra.mxu0 0.0
    %1001 = vmatprep.mubr.f32.mxu0 0.0
    %1002 = vmatmul.mubr.f32.gmra.mxu0 %v936
    %v1003 = vpop.f32.mrf.mxu0
    %v1004 = vadd.f32 0.0, %v1003
    %v1005 = vpop.f32.mrf.mxu0
    %1006 = vdwg.mxu0
    %v1007 = vrcp.pop 1024.0
    %v1008 = vmul.f32 %v1004, %v1007
    %v1009 = vlaneseq
    %v1010 = vshrl.u32 %v1009, 7
    %v1011 = vsub.s32 0, %v1010
    %v1012 = vrot.slane %v1008, %v1011
    %v1013 = vsub.f32 %v735, %v1012
    %v1014 = vsub.f32 %v738, %v1012
    %v1015 = vsub.f32 %v743, %v1012
    %v1016 = vsub.f32 %v746, %v1012
    %v1017 = vsub.f32 %v751, %v1012
    %v1018 = vsub.f32 %v754, %v1012
    %v1019 = vsub.f32 %v759, %v1012
    %v1020 = vsub.f32 %v762, %v1012
    %v1021 = vlaneseq
    %v1022 = vshrl.u32 %v1021, 7
    %v1023 = vsub.s32 1, %v1022
    %v1024 = vrot.slane %v1008, %v1023
    %v1025 = vsub.f32 %v767, %v1024
    %v1026 = vsub.f32 %v770, %v1024
    %v1027 = vsub.f32 %v775, %v1024
    %v1028 = vsub.f32 %v778, %v1024
    %v1029 = vsub.f32 %v783, %v1024
    %v1030 = vsub.f32 %v786, %v1024
    %v1031 = vsub.f32 %v791, %v1024
    %v1032 = vsub.f32 %v794, %v1024
    %v1033 = vlaneseq
    %v1034 = vshrl.u32 %v1033, 7
    %v1035 = vsub.s32 2, %v1034
    %v1036 = vrot.slane %v1008, %v1035
    %v1037 = vsub.f32 %v799, %v1036
    %v1038 = vsub.f32 %v802, %v1036
    %v1039 = vsub.f32 %v807, %v1036
    %v1040 = vsub.f32 %v810, %v1036
    %v1041 = vsub.f32 %v815, %v1036
    %v1042 = vsub.f32 %v818, %v1036
    %v1043 = vsub.f32 %v823, %v1036
    %v1044 = vsub.f32 %v826, %v1036
    %v1045 = vlaneseq
    %v1046 = vshrl.u32 %v1045, 7
    %v1047 = vsub.s32 3, %v1046
    %v1048 = vrot.slane %v1008, %v1047
    %v1049 = vsub.f32 %v831, %v1048
    %v1050 = vsub.f32 %v834, %v1048
    %v1051 = vsub.f32 %v839, %v1048
    %v1052 = vsub.f32 %v842, %v1048
    %v1053 = vsub.f32 %v847, %v1048
    %v1054 = vsub.f32 %v850, %v1048
    %v1055 = vsub.f32 %v855, %v1048
    %v1056 = vsub.f32 %v858, %v1048
    %v1057 = vmul.f32 %v1013, %v1013
    %v1058 = vmul.f32 %v1014, %v1014
    %v1059 = vmul.f32 %v1015, %v1015
    %v1060 = vmul.f32 %v1016, %v1016
    %v1061 = vmul.f32 %v1017, %v1017
    %v1062 = vmul.f32 %v1018, %v1018
    %v1063 = vmul.f32 %v1019, %v1019
    %v1064 = vmul.f32 %v1020, %v1020
    %v1065 = vadd.f32 %v1057, %v1058
    %v1066 = vadd.f32 %v1065, %v1059
    %v1067 = vadd.f32 %v1066, %v1060
    %v1068 = vadd.f32 %v1067, %v1061
    %v1069 = vadd.f32 %v1068, %v1062
    %v1070 = vadd.f32 %v1069, %v1063
    %v1071 = vadd.f32 %v1070, %v1064
    %v1072 = vrot.slane %v1071, 4
    %v1073 = vadd.f32 %v1071, %v1072
    %v1074 = vrot.slane %v1073, 2
    %v1075 = vadd.f32 %v1073, %v1074
    %v1076 = vrot.slane %v1075, 1
    %v1077 = vadd.f32 %v1075, %v1076
    %v1078 = vmul.f32 %v1025, %v1025
    %v1079 = vmul.f32 %v1026, %v1026
    %v1080 = vmul.f32 %v1027, %v1027
    %v1081 = vmul.f32 %v1028, %v1028
    %v1082 = vmul.f32 %v1029, %v1029
    %v1083 = vmul.f32 %v1030, %v1030
    %v1084 = vmul.f32 %v1031, %v1031
    %v1085 = vmul.f32 %v1032, %v1032
    %v1086 = vadd.f32 %v1078, %v1079
    %v1087 = vadd.f32 %v1086, %v1080
    %v1088 = vadd.f32 %v1087, %v1081
    %v1089 = vadd.f32 %v1088, %v1082
    %v1090 = vadd.f32 %v1089, %v1083
    %v1091 = vadd.f32 %v1090, %v1084
    %v1092 = vadd.f32 %v1091, %v1085
    %v1093 = vrot.slane %v1092, 4
    %v1094 = vadd.f32 %v1092, %v1093
    %v1095 = vrot.slane %v1094, 2
    %v1096 = vadd.f32 %v1094, %v1095
    %v1097 = vrot.slane %v1096, 1
    %v1098 = vadd.f32 %v1096, %v1097
    %v1099 = vmul.f32 %v1037, %v1037
    %v1100 = vmul.f32 %v1038, %v1038
    %v1101 = vmul.f32 %v1039, %v1039
    %v1102 = vmul.f32 %v1040, %v1040
    %v1103 = vmul.f32 %v1041, %v1041
    %v1104 = vmul.f32 %v1042, %v1042
    %v1105 = vmul.f32 %v1043, %v1043
    %v1106 = vmul.f32 %v1044, %v1044
    %v1107 = vadd.f32 %v1099, %v1100
    %v1108 = vadd.f32 %v1107, %v1101
    %v1109 = vadd.f32 %v1108, %v1102
    %v1110 = vadd.f32 %v1109, %v1103
    %v1111 = vadd.f32 %v1110, %v1104
    %v1112 = vadd.f32 %v1111, %v1105
    %v1113 = vadd.f32 %v1112, %v1106
    %v1114 = vrot.slane %v1113, 4
    %v1115 = vadd.f32 %v1113, %v1114
    %v1116 = vrot.slane %v1115, 2
    %v1117 = vadd.f32 %v1115, %v1116
    %v1118 = vrot.slane %v1117, 1
    %v1119 = vadd.f32 %v1117, %v1118
    %v1120 = vmul.f32 %v1049, %v1049
    %v1121 = vmul.f32 %v1050, %v1050
    %v1122 = vmul.f32 %v1051, %v1051
    %v1123 = vmul.f32 %v1052, %v1052
    %v1124 = vmul.f32 %v1053, %v1053
    %v1125 = vmul.f32 %v1054, %v1054
    %v1126 = vmul.f32 %v1055, %v1055
    %v1127 = vmul.f32 %v1056, %v1056
    %v1128 = vadd.f32 %v1120, %v1121
    %v1129 = vadd.f32 %v1128, %v1122
    %v1130 = vadd.f32 %v1129, %v1123
    %v1131 = vadd.f32 %v1130, %v1124
    %v1132 = vadd.f32 %v1131, %v1125
    %v1133 = vadd.f32 %v1132, %v1126
    %v1134 = vadd.f32 %v1133, %v1127
    %v1135 = vrot.slane %v1134, 4
    %v1136 = vadd.f32 %v1134, %v1135
    %v1137 = vrot.slane %v1136, 2
    %v1138 = vadd.f32 %v1136, %v1137
    %v1139 = vrot.slane %v1138, 1
    %v1140 = vadd.f32 %v1138, %v1139
    %v1141 = vsel %vm931, %v1077, %v1098
    %v1142 = vsel %vm933, %v1141, %v1119
    %v1143 = vsel %vm935, %v1142, %v1140
    %1144 = vmatprep.subr.mxu0 0.0
    %1145 = vmatpush1.msra.mxu0 %v878
    %1146 = vmatprep.subr.mxu0 0.0
    %1147 = vmatpush1.msra.mxu0 %v877
    %1148 = vmatprep.subr.mxu0 0.0
    %1149 = vmatpush1.msra.mxu0 %v876
    %1150 = vmatprep.subr.mxu0 0.0
    %1151 = vmatpush1.msra.mxu0 %v875
    %1152 = vmatprep.subr.mxu0 0.0
    %1153 = vmatpush1.msra.mxu0 %v874
    %1154 = vmatprep.subr.mxu0 0.0
    %1155 = vmatpush1.msra.mxu0 %v873
    %1156 = vmatprep.subr.mxu0 0.0
    %1157 = vmatpush1.msra.mxu0 %v872
    %1158 = vmatprep.subr.mxu0 0.0
    %1159 = vmatpush1.msra.mxu0 %v871
    %1160 = vmatprep.subr.mxu0 0.0
    %1161 = vmatpush1.msra.mxu0 %v870
    %1162 = vmatprep.subr.mxu0 0.0
    %1163 = vmatpush1.msra.mxu0 %v869
    %1164 = vmatprep.subr.mxu0 0.0
    %1165 = vmatpush1.msra.mxu0 %v868
    %1166 = vmatprep.subr.mxu0 0.0
    %1167 = vmatpush1.msra.mxu0 %v867
    %1168 = vmatprep.subr.mxu0 0.0
    %1169 = vmatpush1.msra.mxu0 %v866
    %1170 = vmatprep.subr.mxu0 0.0
    %1171 = vmatpush1.msra.mxu0 %v865
    %1172 = vmatprep.subr.mxu0 0.0
    %1173 = vmatpush1.msra.mxu0 %v864
    %1174 = vmatprep.subr.mxu0 0.0
    %1175 = vmatpush1.msra.mxu0 %v863
    %1176 = vmatprep.subr.mxu0 0.0
    %1177 = vmatpush2.msra.mxu0 0.0
    %1178 = vmatprep.subr.mxu0 0.0
    %1179 = vmatpush2.msra.mxu0 0.0
    %1180 = vmatprep.subr.mxu0 0.0
    %1181 = vmatpush2.msra.mxu0 0.0
    %1182 = vmatprep.subr.mxu0 0.0
    %1183 = vmatpush2.msra.mxu0 0.0
    %1184 = vmatprep.subr.mxu0 0.0
    %1185 = vmatpush2.msra.mxu0 0.0
    %1186 = vmatprep.subr.mxu0 0.0
    %1187 = vmatpush2.msra.mxu0 0.0
    %1188 = vmatprep.subr.mxu0 0.0
    %1189 = vmatpush2.msra.mxu0 0.0
    %1190 = vmatprep.subr.mxu0 0.0
    %1191 = vmatpush2.msra.mxu0 0.0
    %1192 = vmatprep.subr.mxu0 0.0
    %1193 = vmatpush2.msra.mxu0 0.0
    %1194 = vmatprep.subr.mxu0 0.0
    %1195 = vmatpush2.msra.mxu0 0.0
    %1196 = vmatprep.subr.mxu0 0.0
    %1197 = vmatpush2.msra.mxu0 0.0
    %1198 = vmatprep.subr.mxu0 0.0
    %1199 = vmatpush2.msra.mxu0 0.0
    %1200 = vmatprep.subr.mxu0 0.0
    %1201 = vmatpush2.msra.mxu0 0.0
    %1202 = vmatprep.subr.mxu0 0.0
    %1203 = vmatpush2.msra.mxu0 0.0
    %1204 = vmatprep.subr.mxu0 0.0
    %1205 = vmatpush2.msra.mxu0 0.0
    %1206 = vmatprep.subr.mxu0 0.0
    %1207 = vmatpush2.msra.mxu0 0.0
    %1208 = vmatprep.mubr.f32.mxu0 0.0
    %1209 = vmatmul.mubr.f32.gmra.mxu0 %v1143
    %v1210 = vpop.f32.mrf.mxu0
    %v1211 = vadd.f32 0.0, %v1210
    %v1212 = vpop.f32.mrf.mxu0
    %1213 = vdwg.mxu0
    %v1214 = vmul.f32 %v1211, %v1007
    %v1215 = vadd.f32 %v1214, 1e-05
    %v1216 = vrsqrt.pop %v1215
    %v1217 = vlaneseq
    %v1218 = vshrl.u32 %v1217, 7
    %v1219 = vsub.s32 0, %v1218
    %v1220 = vrot.slane %v1216, %v1219
    %v1221 = vmul.f32 %v1013, %v1220
    %v1222 = vmul.f32 %v1014, %v1220
    %v1223 = vmul.f32 %v1015, %v1220
    %v1224 = vmul.f32 %v1016, %v1220
    %v1225 = vmul.f32 %v1017, %v1220
    %v1226 = vmul.f32 %v1018, %v1220
    %v1227 = vmul.f32 %v1019, %v1220
    %v1228 = vmul.f32 %v1020, %v1220
    %v1230 = vlaneseq
    %v1231 = vshrl.u32 %v1230, 7
    %v1232 = vsub.s32 0, %v1231
    %v1233 = vrot.slane %v861, %v1232
    %v1235 = vmul.f32 %v1221, %v1233
    %v1236 = vmul.f32 %v1222, %v1233
    %v1237 = vmul.f32 %v1223, %v1233
    %v1238 = vmul.f32 %v1224, %v1233
    %v1239 = vmul.f32 %v1225, %v1233
    %v1240 = vmul.f32 %v1226, %v1233
    %v1241 = vmul.f32 %v1227, %v1233
    %v1242 = vmul.f32 %v1228, %v1233
    %v1244 = vlaneseq
    %v1245 = vshrl.u32 %v1244, 7
    %v1246 = vsub.s32 0, %v1245
    %v1247 = vrot.slane %v862, %v1246
    %v1249 = vadd.f32 %v1235, %v1247
    %v1250 = vadd.f32 %v1236, %v1247
    %v1251 = vadd.f32 %v1237, %v1247
    %v1252 = vadd.f32 %v1238, %v1247
    %v1253 = vadd.f32 %v1239, %v1247
    %v1254 = vadd.f32 %v1240, %v1247
    %v1255 = vadd.f32 %v1241, %v1247
    %v1256 = vadd.f32 %v1242, %v1247
    %v1257 = vxor.u32 %v1249, 2147483648
    %v1258 = vxor.u32 %v1250, 2147483648
    %v1259 = vxor.u32 %v1251, 2147483648
    %v1260 = vxor.u32 %v1252, 2147483648
    %v1261 = vxor.u32 %v1253, 2147483648
    %v1262 = vxor.u32 %v1254, 2147483648
    %v1263 = vxor.u32 %v1255, 2147483648
    %v1264 = vxor.u32 %v1256, 2147483648
    %v1265 = vmul.f32 %v1257, 1.442695
    %v1266 = vpow.pop %v1265
    %v1267 = vmul.f32 %v1258, 1.442695
    %v1268 = vpow.pop %v1267
    %v1269 = vmul.f32 %v1259, 1.442695
    %v1270 = vpow.pop %v1269
    %v1271 = vmul.f32 %v1260, 1.442695
    %v1272 = vpow.pop %v1271
    %v1273 = vmul.f32 %v1261, 1.442695
    %v1274 = vpow.pop %v1273
    %v1275 = vmul.f32 %v1262, 1.442695
    %v1276 = vpow.pop %v1275
    %v1277 = vmul.f32 %v1263, 1.442695
    %v1278 = vpow.pop %v1277
    %v1279 = vmul.f32 %v1264, 1.442695
    %v1280 = vpow.pop %v1279
    %v1281 = vadd.f32 %v1266, 1.0
    %v1282 = vadd.f32 %v1268, 1.0
    %v1283 = vadd.f32 %v1270, 1.0
    %v1284 = vadd.f32 %v1272, 1.0
    %v1285 = vadd.f32 %v1274, 1.0
    %v1286 = vadd.f32 %v1276, 1.0
    %v1287 = vadd.f32 %v1278, 1.0
    %v1288 = vadd.f32 %v1280, 1.0
    %v1289 = vrcp.pop %v1281
    %v1290 = vmul.f32 1.0, %v1289
    %v1291 = vrcp.pop %v1282
    %v1292 = vmul.f32 1.0, %v1291
    %v1293 = vrcp.pop %v1283
    %v1294 = vmul.f32 1.0, %v1293
    %v1295 = vrcp.pop %v1284
    %v1296 = vmul.f32 1.0, %v1295
    %v1297 = vrcp.pop %v1285
    %v1298 = vmul.f32 1.0, %v1297
    %v1299 = vrcp.pop %v1286
    %v1300 = vmul.f32 1.0, %v1299
    %v1301 = vrcp.pop %v1287
    %v1302 = vmul.f32 1.0, %v1301
    %v1303 = vrcp.pop %v1288
    %v1304 = vmul.f32 1.0, %v1303
    %v1305 = vmul.f32 %v1249, %v1290
    %v1306 = vmul.f32 %v1250, %v1292
    %v1307 = vmul.f32 %v1251, %v1294
    %v1308 = vmul.f32 %v1252, %v1296
    %v1309 = vmul.f32 %v1253, %v1298
    %v1310 = vmul.f32 %v1254, %v1300
    %v1311 = vmul.f32 %v1255, %v1302
    %v1312 = vmul.f32 %v1256, %v1304
    %v1313 = vlaneseq
    %v1314 = vshrl.u32 %v1313, 7
    %v1315 = vsub.s32 1, %v1314
    %v1316 = vrot.slane %v1216, %v1315
    %v1317 = vmul.f32 %v1025, %v1316
    %v1318 = vmul.f32 %v1026, %v1316
    %v1319 = vmul.f32 %v1027, %v1316
    %v1320 = vmul.f32 %v1028, %v1316
    %v1321 = vmul.f32 %v1029, %v1316
    %v1322 = vmul.f32 %v1030, %v1316
    %v1323 = vmul.f32 %v1031, %v1316
    %v1324 = vmul.f32 %v1032, %v1316
    %v1325 = vmul.f32 %v1317, %v1233
    %v1326 = vmul.f32 %v1318, %v1233
    %v1327 = vmul.f32 %v1319, %v1233
    %v1328 = vmul.f32 %v1320, %v1233
    %v1329 = vmul.f32 %v1321, %v1233
    %v1330 = vmul.f32 %v1322, %v1233
    %v1331 = vmul.f32 %v1323, %v1233
    %v1332 = vmul.f32 %v1324, %v1233
    %v1333 = vadd.f32 %v1325, %v1247
    %v1334 = vadd.f32 %v1326, %v1247
    %v1335 = vadd.f32 %v1327, %v1247
    %v1336 = vadd.f32 %v1328, %v1247
    %v1337 = vadd.f32 %v1329, %v1247
    %v1338 = vadd.f32 %v1330, %v1247
    %v1339 = vadd.f32 %v1331, %v1247
    %v1340 = vadd.f32 %v1332, %v1247
    %v1341 = vxor.u32 %v1333, 2147483648
    %v1342 = vxor.u32 %v1334, 2147483648
    %v1343 = vxor.u32 %v1335, 2147483648
    %v1344 = vxor.u32 %v1336, 2147483648
    %v1345 = vxor.u32 %v1337, 2147483648
    %v1346 = vxor.u32 %v1338, 2147483648
    %v1347 = vxor.u32 %v1339, 2147483648
    %v1348 = vxor.u32 %v1340, 2147483648
    %v1349 = vmul.f32 %v1341, 1.442695
    %v1350 = vpow.pop %v1349
    %v1351 = vmul.f32 %v1342, 1.442695
    %v1352 = vpow.pop %v1351
    %v1353 = vmul.f32 %v1343, 1.442695
    %v1354 = vpow.pop %v1353
    %v1355 = vmul.f32 %v1344, 1.442695
    %v1356 = vpow.pop %v1355
    %v1357 = vmul.f32 %v1345, 1.442695
    %v1358 = vpow.pop %v1357
    %v1359 = vmul.f32 %v1346, 1.442695
    %v1360 = vpow.pop %v1359
    %v1361 = vmul.f32 %v1347, 1.442695
    %v1362 = vpow.pop %v1361
    %v1363 = vmul.f32 %v1348, 1.442695
    %v1364 = vpow.pop %v1363
    %v1365 = vadd.f32 %v1350, 1.0
    %v1366 = vadd.f32 %v1352, 1.0
    %v1367 = vadd.f32 %v1354, 1.0
    %v1368 = vadd.f32 %v1356, 1.0
    %v1369 = vadd.f32 %v1358, 1.0
    %v1370 = vadd.f32 %v1360, 1.0
    %v1371 = vadd.f32 %v1362, 1.0
    %v1372 = vadd.f32 %v1364, 1.0
    %v1373 = vrcp.pop %v1365
    %v1374 = vmul.f32 1.0, %v1373
    %v1375 = vrcp.pop %v1366
    %v1376 = vmul.f32 1.0, %v1375
    %v1377 = vrcp.pop %v1367
    %v1378 = vmul.f32 1.0, %v1377
    %v1379 = vrcp.pop %v1368
    %v1380 = vmul.f32 1.0, %v1379
    %v1381 = vrcp.pop %v1369
    %v1382 = vmul.f32 1.0, %v1381
    %v1383 = vrcp.pop %v1370
    %v1384 = vmul.f32 1.0, %v1383
    %v1385 = vrcp.pop %v1371
    %v1386 = vmul.f32 1.0, %v1385
    %v1387 = vrcp.pop %v1372
    %v1388 = vmul.f32 1.0, %v1387
    %v1389 = vmul.f32 %v1333, %v1374
    %v1390 = vmul.f32 %v1334, %v1376
    %v1391 = vmul.f32 %v1335, %v1378
    %v1392 = vmul.f32 %v1336, %v1380
    %v1393 = vmul.f32 %v1337, %v1382
    %v1394 = vmul.f32 %v1338, %v1384
    %v1395 = vmul.f32 %v1339, %v1386
    %v1396 = vmul.f32 %v1340, %v1388
    %v1397 = vlaneseq
    %v1398 = vshrl.u32 %v1397, 7
    %v1399 = vsub.s32 2, %v1398
    %v1400 = vrot.slane %v1216, %v1399
    %v1401 = vmul.f32 %v1037, %v1400
    %v1402 = vmul.f32 %v1038, %v1400
    %v1403 = vmul.f32 %v1039, %v1400
    %v1404 = vmul.f32 %v1040, %v1400
    %v1405 = vmul.f32 %v1041, %v1400
    %v1406 = vmul.f32 %v1042, %v1400
    %v1407 = vmul.f32 %v1043, %v1400
    %v1408 = vmul.f32 %v1044, %v1400
    %v1409 = vmul.f32 %v1401, %v1233
    %v1410 = vmul.f32 %v1402, %v1233
    %v1411 = vmul.f32 %v1403, %v1233
    %v1412 = vmul.f32 %v1404, %v1233
    %v1413 = vmul.f32 %v1405, %v1233
    %v1414 = vmul.f32 %v1406, %v1233
    %v1415 = vmul.f32 %v1407, %v1233
    %v1416 = vmul.f32 %v1408, %v1233
    %v1417 = vadd.f32 %v1409, %v1247
    %v1418 = vadd.f32 %v1410, %v1247
    %v1419 = vadd.f32 %v1411, %v1247
    %v1420 = vadd.f32 %v1412, %v1247
    %v1421 = vadd.f32 %v1413, %v1247
    %v1422 = vadd.f32 %v1414, %v1247
    %v1423 = vadd.f32 %v1415, %v1247
    %v1424 = vadd.f32 %v1416, %v1247
    %v1425 = vxor.u32 %v1417, 2147483648
    %v1426 = vxor.u32 %v1418, 2147483648
    %v1427 = vxor.u32 %v1419, 2147483648
    %v1428 = vxor.u32 %v1420, 2147483648
    %v1429 = vxor.u32 %v1421, 2147483648
    %v1430 = vxor.u32 %v1422, 2147483648
    %v1431 = vxor.u32 %v1423, 2147483648
    %v1432 = vxor.u32 %v1424, 2147483648
    %v1433 = vmul.f32 %v1425, 1.442695
    %v1434 = vpow.pop %v1433
    %v1435 = vmul.f32 %v1426, 1.442695
    %v1436 = vpow.pop %v1435
    %v1437 = vmul.f32 %v1427, 1.442695
    %v1438 = vpow.pop %v1437
    %v1439 = vmul.f32 %v1428, 1.442695
    %v1440 = vpow.pop %v1439
    %v1441 = vmul.f32 %v1429, 1.442695
    %v1442 = vpow.pop %v1441
    %v1443 = vmul.f32 %v1430, 1.442695
    %v1444 = vpow.pop %v1443
    %v1445 = vmul.f32 %v1431, 1.442695
    %v1446 = vpow.pop %v1445
    %v1447 = vmul.f32 %v1432, 1.442695
    %v1448 = vpow.pop %v1447
    %v1449 = vadd.f32 %v1434, 1.0
    %v1450 = vadd.f32 %v1436, 1.0
    %v1451 = vadd.f32 %v1438, 1.0
    %v1452 = vadd.f32 %v1440, 1.0
    %v1453 = vadd.f32 %v1442, 1.0
    %v1454 = vadd.f32 %v1444, 1.0
    %v1455 = vadd.f32 %v1446, 1.0
    %v1456 = vadd.f32 %v1448, 1.0
    %v1457 = vrcp.pop %v1449
    %v1458 = vmul.f32 1.0, %v1457
    %v1459 = vrcp.pop %v1450
    %v1460 = vmul.f32 1.0, %v1459
    %v1461 = vrcp.pop %v1451
    %v1462 = vmul.f32 1.0, %v1461
    %v1463 = vrcp.pop %v1452
    %v1464 = vmul.f32 1.0, %v1463
    %v1465 = vrcp.pop %v1453
    %v1466 = vmul.f32 1.0, %v1465
    %v1467 = vrcp.pop %v1454
    %v1468 = vmul.f32 1.0, %v1467
    %v1469 = vrcp.pop %v1455
    %v1470 = vmul.f32 1.0, %v1469
    %v1471 = vrcp.pop %v1456
    %v1472 = vmul.f32 1.0, %v1471
    %v1473 = vmul.f32 %v1417, %v1458
    %v1474 = vmul.f32 %v1418, %v1460
    %v1475 = vmul.f32 %v1419, %v1462
    %v1476 = vmul.f32 %v1420, %v1464
    %v1477 = vmul.f32 %v1421, %v1466
    %v1478 = vmul.f32 %v1422, %v1468
    %v1479 = vmul.f32 %v1423, %v1470
    %v1480 = vmul.f32 %v1424, %v1472
    %v1481 = vlaneseq
    %v1482 = vshrl.u32 %v1481, 7
    %v1483 = vsub.s32 3, %v1482
    %v1484 = vrot.slane %v1216, %v1483
    %v1485 = vmul.f32 %v1049, %v1484
    %v1486 = vmul.f32 %v1050, %v1484
    %v1487 = vmul.f32 %v1051, %v1484
    %v1488 = vmul.f32 %v1052, %v1484
    %v1489 = vmul.f32 %v1053, %v1484
    %v1490 = vmul.f32 %v1054, %v1484
    %v1491 = vmul.f32 %v1055, %v1484
    %v1492 = vmul.f32 %v1056, %v1484
    %v1493 = vmul.f32 %v1485, %v1233
    %v1494 = vmul.f32 %v1486, %v1233
    %v1495 = vmul.f32 %v1487, %v1233
    %v1496 = vmul.f32 %v1488, %v1233
    %v1497 = vmul.f32 %v1489, %v1233
    %v1498 = vmul.f32 %v1490, %v1233
    %v1499 = vmul.f32 %v1491, %v1233
    %v1500 = vmul.f32 %v1492, %v1233
    %v1501 = vadd.f32 %v1493, %v1247
    %v1502 = vadd.f32 %v1494, %v1247
    %v1503 = vadd.f32 %v1495, %v1247
    %v1504 = vadd.f32 %v1496, %v1247
    %v1505 = vadd.f32 %v1497, %v1247
    %v1506 = vadd.f32 %v1498, %v1247
    %v1507 = vadd.f32 %v1499, %v1247
    %v1508 = vadd.f32 %v1500, %v1247
    %v1509 = vxor.u32 %v1501, 2147483648
    %v1510 = vxor.u32 %v1502, 2147483648
    %v1511 = vxor.u32 %v1503, 2147483648
    %v1512 = vxor.u32 %v1504, 2147483648
    %v1513 = vxor.u32 %v1505, 2147483648
    %v1514 = vxor.u32 %v1506, 2147483648
    %v1515 = vxor.u32 %v1507, 2147483648
    %v1516 = vxor.u32 %v1508, 2147483648
    %v1517 = vmul.f32 %v1509, 1.442695
    %v1518 = vpow.pop %v1517
    %v1519 = vmul.f32 %v1510, 1.442695
    %v1520 = vpow.pop %v1519
    %v1521 = vmul.f32 %v1511, 1.442695
    %v1522 = vpow.pop %v1521
    %v1523 = vmul.f32 %v1512, 1.442695
    %v1524 = vpow.pop %v1523
    %v1525 = vmul.f32 %v1513, 1.442695
    %v1526 = vpow.pop %v1525
    %v1527 = vmul.f32 %v1514, 1.442695
    %v1528 = vpow.pop %v1527
    %v1529 = vmul.f32 %v1515, 1.442695
    %v1530 = vpow.pop %v1529
    %v1531 = vmul.f32 %v1516, 1.442695
    %v1532 = vpow.pop %v1531
    %v1533 = vadd.f32 %v1518, 1.0
    %v1534 = vadd.f32 %v1520, 1.0
    %v1535 = vadd.f32 %v1522, 1.0
    %v1536 = vadd.f32 %v1524, 1.0
    %v1537 = vadd.f32 %v1526, 1.0
    %v1538 = vadd.f32 %v1528, 1.0
    %v1539 = vadd.f32 %v1530, 1.0
    %v1540 = vadd.f32 %v1532, 1.0
    %v1541 = vrcp.pop %v1533
    %v1542 = vmul.f32 1.0, %v1541
    %v1543 = vrcp.pop %v1534
    %v1544 = vmul.f32 1.0, %v1543
    %v1545 = vrcp.pop %v1535
    %v1546 = vmul.f32 1.0, %v1545
    %v1547 = vrcp.pop %v1536
    %v1548 = vmul.f32 1.0, %v1547
    %v1549 = vrcp.pop %v1537
    %v1550 = vmul.f32 1.0, %v1549
    %v1551 = vrcp.pop %v1538
    %v1552 = vmul.f32 1.0, %v1551
    %v1553 = vrcp.pop %v1539
    %v1554 = vmul.f32 1.0, %v1553
    %v1555 = vrcp.pop %v1540
    %v1556 = vmul.f32 1.0, %v1555
    %v1557 = vmul.f32 %v1501, %v1542
    %v1558 = vmul.f32 %v1502, %v1544
    %v1559 = vmul.f32 %v1503, %v1546
    %v1560 = vmul.f32 %v1504, %v1548
    %v1561 = vmul.f32 %v1505, %v1550
    %v1562 = vmul.f32 %v1506, %v1552
    %v1563 = vmul.f32 %v1507, %v1554
    %v1564 = vmul.f32 %v1508, %v1556
    %v1565 = vrot.slane %v1305, 7
    %v1566 = vrot.slane %v1306, 7
    %v1567 = vrot.slane %v1307, 7
    %v1568 = vrot.slane %v1308, 7
    %v1569 = vrot.slane %v1309, 7
    %v1570 = vrot.slane %v1310, 7
    %v1571 = vrot.slane %v1311, 7
    %v1572 = vrot.slane %v1312, 7
    %v1573 = vrot.slane %v1389, 7
    %v1574 = vrot.slane %v1390, 7
    %v1575 = vrot.slane %v1391, 7
    %v1576 = vrot.slane %v1392, 7
    %v1577 = vrot.slane %v1393, 7
    %v1578 = vrot.slane %v1394, 7
    %v1579 = vrot.slane %v1395, 7
    %v1580 = vrot.slane %v1396, 7
    %v1581 = vrot.slane %v1473, 7
    %v1582 = vrot.slane %v1474, 7
    %v1583 = vrot.slane %v1475, 7
    %v1584 = vrot.slane %v1476, 7
    %v1585 = vrot.slane %v1477, 7
    %v1586 = vrot.slane %v1478, 7
    %v1587 = vrot.slane %v1479, 7
    %v1588 = vrot.slane %v1480, 7
    %v1589 = vrot.slane %v1557, 7
    %v1590 = vrot.slane %v1558, 7
    %v1591 = vrot.slane %v1559, 7
    %v1592 = vrot.slane %v1560, 7
    %v1593 = vrot.slane %v1561, 7
    %v1594 = vrot.slane %v1562, 7
    %v1595 = vrot.slane %v1563, 7
    %v1596 = vrot.slane %v1564, 7
    %v1597 = vsel %vm146, %v1595, %v1596
    %v1598 = vsel %vm146, %v1594, %v1595
    %v1599 = vsel %vm146, %v1593, %v1594
    %v1600 = vsel %vm146, %v1592, %v1593
    %v1601 = vsel %vm146, %v1591, %v1592
    %v1602 = vsel %vm146, %v1590, %v1591
    %v1603 = vsel %vm146, %v1589, %v1590
    %v1604 = vsel %vm146, %v1588, %v1589
    %v1605 = vsel %vm146, %v1587, %v1588
    %v1606 = vsel %vm146, %v1586, %v1587
    %v1607 = vsel %vm146, %v1585, %v1586
    %v1608 = vsel %vm146, %v1584, %v1585
    %v1609 = vsel %vm146, %v1583, %v1584
    %v1610 = vsel %vm146, %v1582, %v1583
    %v1611 = vsel %vm146, %v1581, %v1582
    %v1612 = vsel %vm146, %v1580, %v1581
    %v1613 = vsel %vm146, %v1579, %v1580
    %v1614 = vsel %vm146, %v1578, %v1579
    %v1615 = vsel %vm146, %v1577, %v1578
    %v1616 = vsel %vm146, %v1576, %v1577
    %v1617 = vsel %vm146, %v1575, %v1576
    %v1618 = vsel %vm146, %v1574, %v1575
    %v1619 = vsel %vm146, %v1573, %v1574
    %v1620 = vsel %vm146, %v1572, %v1573
    %v1621 = vsel %vm146, %v1571, %v1572
    %v1622 = vsel %vm146, %v1570, %v1571
    %v1623 = vsel %vm146, %v1569, %v1570
    %v1624 = vsel %vm146, %v1568, %v1569
    %v1625 = vsel %vm146, %v1567, %v1568
    %v1626 = vsel %vm146, %v1566, %v1567
    %v1627 = vsel %vm146, %v1565, %v1566
    %v1628 = vsel %vm146, %v1596, %v1565
    %v1629 = vsel %vm211, %v1628, 0.0
    %v1630 = vsel %vm212, %v1627, 0.0
    %v1631 = vsel %vm213, %v1626, 0.0
    %v1632 = vsel %vm214, %v1625, 0.0
    %v1633 = vsel %vm215, %v1624, 0.0
    %v1634 = vsel %vm216, %v1623, 0.0
    %v1635 = vsel %vm217, %v1622, 0.0
    %v1636 = vsel %vm218, %v1621, 0.0
    %v1637 = vsel %vm211, %v1620, 0.0
    %v1638 = vsel %vm212, %v1619, 0.0
    %v1639 = vsel %vm213, %v1618, 0.0
    %v1640 = vsel %vm214, %v1617, 0.0
    %v1641 = vsel %vm215, %v1616, 0.0
    %v1642 = vsel %vm216, %v1615, 0.0
    %v1643 = vsel %vm217, %v1614, 0.0
    %v1644 = vsel %vm218, %v1613, 0.0
    %v1645 = vsel %vm211, %v1612, 0.0
    %v1646 = vsel %vm212, %v1611, 0.0
    %v1647 = vsel %vm213, %v1610, 0.0
    %v1648 = vsel %vm214, %v1609, 0.0
    %v1649 = vsel %vm215, %v1608, 0.0
    %v1650 = vsel %vm216, %v1607, 0.0
    %v1651 = vsel %vm217, %v1606, 0.0
    %v1652 = vsel %vm218, %v1605, 0.0
    %v1653 = vsel %vm211, %v1604, 0.0
    %v1654 = vsel %vm212, %v1603, 0.0
    %v1655 = vsel %vm213, %v1602, 0.0
    %v1656 = vsel %vm214, %v1601, 0.0
    %v1657 = vsel %vm215, %v1600, 0.0
    %v1658 = vsel %vm216, %v1599, 0.0
    %v1659 = vsel %vm217, %v1598, 0.0
    %v1660 = vsel %vm218, %v1597, 0.0
    %v1661 = vpack.c.bf16 %v1630, %v1629
    %v1662 = vpack.c.bf16 %v1632, %v1631
    %v1663 = vpack.c.bf16 %v1634, %v1633
    %v1664 = vpack.c.bf16 %v1636, %v1635
    %v1665 = vpack.c.bf16 %v1638, %v1637
    %v1666 = vpack.c.bf16 %v1640, %v1639
    %v1667 = vpack.c.bf16 %v1642, %v1641
    %v1668 = vpack.c.bf16 %v1644, %v1643
    %v1669 = vpack.c.bf16 %v1646, %v1645
    %v1670 = vpack.c.bf16 %v1648, %v1647
    %v1671 = vpack.c.bf16 %v1650, %v1649
    %v1672 = vpack.c.bf16 %v1652, %v1651
    %v1673 = vpack.c.bf16 %v1654, %v1653
    %v1674 = vpack.c.bf16 %v1656, %v1655
    %v1675 = vpack.c.bf16 %v1658, %v1657
    %v1676 = vpack.c.bf16 %v1660, %v1659
    %v1677 = vpack.c.bf16 %v1306, %v1305
    %v1678 = vpack.c.bf16 %v1308, %v1307
    %v1679 = vpack.c.bf16 %v1310, %v1309
    %v1680 = vpack.c.bf16 %v1312, %v1311
    %v1681 = vpack.c.bf16 %v1390, %v1389
    %v1682 = vpack.c.bf16 %v1392, %v1391
    %v1683 = vpack.c.bf16 %v1394, %v1393
    %v1684 = vpack.c.bf16 %v1396, %v1395
    %v1685 = vpack.c.bf16 %v1474, %v1473
    %v1686 = vpack.c.bf16 %v1476, %v1475
    %v1687 = vpack.c.bf16 %v1478, %v1477
    %v1688 = vpack.c.bf16 %v1480, %v1479
    %v1689 = vpack.c.bf16 %v1558, %v1557
    %v1690 = vpack.c.bf16 %v1560, %v1559
    %v1691 = vpack.c.bf16 %v1562, %v1561
    %v1692 = vpack.c.bf16 %v1564, %v1563
    %v1693 = vrot.slane %v1305, 1
    %v1694 = vrot.slane %v1306, 1
    %v1695 = vrot.slane %v1307, 1
    %v1696 = vrot.slane %v1308, 1
    %v1697 = vrot.slane %v1309, 1
    %v1698 = vrot.slane %v1310, 1
    %v1699 = vrot.slane %v1311, 1
    %v1700 = vrot.slane %v1312, 1
    %v1701 = vrot.slane %v1389, 1
    %v1702 = vrot.slane %v1390, 1
    %v1703 = vrot.slane %v1391, 1
    %v1704 = vrot.slane %v1392, 1
    %v1705 = vrot.slane %v1393, 1
    %v1706 = vrot.slane %v1394, 1
    %v1707 = vrot.slane %v1395, 1
    %v1708 = vrot.slane %v1396, 1
    %v1709 = vrot.slane %v1473, 1
    %v1710 = vrot.slane %v1474, 1
    %v1711 = vrot.slane %v1475, 1
    %v1712 = vrot.slane %v1476, 1
    %v1713 = vrot.slane %v1477, 1
    %v1714 = vrot.slane %v1478, 1
    %v1715 = vrot.slane %v1479, 1
    %v1716 = vrot.slane %v1480, 1
    %v1717 = vrot.slane %v1557, 1
    %v1718 = vrot.slane %v1558, 1
    %v1719 = vrot.slane %v1559, 1
    %v1720 = vrot.slane %v1560, 1
    %v1721 = vrot.slane %v1561, 1
    %v1722 = vrot.slane %v1562, 1
    %v1723 = vrot.slane %v1563, 1
    %v1724 = vrot.slane %v1564, 1
    %v1725 = vsel %vm315, %v1723, %v1724
    %v1726 = vsel %vm315, %v1722, %v1723
    %v1727 = vsel %vm315, %v1721, %v1722
    %v1728 = vsel %vm315, %v1720, %v1721
    %v1729 = vsel %vm315, %v1719, %v1720
    %v1730 = vsel %vm315, %v1718, %v1719
    %v1731 = vsel %vm315, %v1717, %v1718
    %v1732 = vsel %vm315, %v1716, %v1717
    %v1733 = vsel %vm315, %v1715, %v1716
    %v1734 = vsel %vm315, %v1714, %v1715
    %v1735 = vsel %vm315, %v1713, %v1714
    %v1736 = vsel %vm315, %v1712, %v1713
    %v1737 = vsel %vm315, %v1711, %v1712
    %v1738 = vsel %vm315, %v1710, %v1711
    %v1739 = vsel %vm315, %v1709, %v1710
    %v1740 = vsel %vm315, %v1708, %v1709
    %v1741 = vsel %vm315, %v1707, %v1708
    %v1742 = vsel %vm315, %v1706, %v1707
    %v1743 = vsel %vm315, %v1705, %v1706
    %v1744 = vsel %vm315, %v1704, %v1705
    %v1745 = vsel %vm315, %v1703, %v1704
    %v1746 = vsel %vm315, %v1702, %v1703
    %v1747 = vsel %vm315, %v1701, %v1702
    %v1748 = vsel %vm315, %v1700, %v1701
    %v1749 = vsel %vm315, %v1699, %v1700
    %v1750 = vsel %vm315, %v1698, %v1699
    %v1751 = vsel %vm315, %v1697, %v1698
    %v1752 = vsel %vm315, %v1696, %v1697
    %v1753 = vsel %vm315, %v1695, %v1696
    %v1754 = vsel %vm315, %v1694, %v1695
    %v1755 = vsel %vm315, %v1693, %v1694
    %v1756 = vsel %vm315, %v1724, %v1693
    %v1757 = vsel %vm380, %v1755, 0.0
    %v1758 = vsel %vm381, %v1754, 0.0
    %v1759 = vsel %vm382, %v1753, 0.0
    %v1760 = vsel %vm383, %v1752, 0.0
    %v1761 = vsel %vm384, %v1751, 0.0
    %v1762 = vsel %vm385, %v1750, 0.0
    %v1763 = vsel %vm386, %v1749, 0.0
    %v1764 = vsel %vm387, %v1748, 0.0
    %v1765 = vsel %vm380, %v1747, 0.0
    %v1766 = vsel %vm381, %v1746, 0.0
    %v1767 = vsel %vm382, %v1745, 0.0
    %v1768 = vsel %vm383, %v1744, 0.0
    %v1769 = vsel %vm384, %v1743, 0.0
    %v1770 = vsel %vm385, %v1742, 0.0
    %v1771 = vsel %vm386, %v1741, 0.0
    %v1772 = vsel %vm387, %v1740, 0.0
    %v1773 = vsel %vm380, %v1739, 0.0
    %v1774 = vsel %vm381, %v1738, 0.0
    %v1775 = vsel %vm382, %v1737, 0.0
    %v1776 = vsel %vm383, %v1736, 0.0
    %v1777 = vsel %vm384, %v1735, 0.0
    %v1778 = vsel %vm385, %v1734, 0.0
    %v1779 = vsel %vm386, %v1733, 0.0
    %v1780 = vsel %vm387, %v1732, 0.0
    %v1781 = vsel %vm380, %v1731, 0.0
    %v1782 = vsel %vm381, %v1730, 0.0
    %v1783 = vsel %vm382, %v1729, 0.0
    %v1784 = vsel %vm383, %v1728, 0.0
    %v1785 = vsel %vm384, %v1727, 0.0
    %v1786 = vsel %vm385, %v1726, 0.0
    %v1787 = vsel %vm386, %v1725, 0.0
    %v1788 = vsel %vm387, %v1756, 0.0
    %v1789 = vpack.c.bf16 %v1758, %v1757
    %v1790 = vpack.c.bf16 %v1760, %v1759
    %v1791 = vpack.c.bf16 %v1762, %v1761
    %v1792 = vpack.c.bf16 %v1764, %v1763
    %v1793 = vpack.c.bf16 %v1766, %v1765
    %v1794 = vpack.c.bf16 %v1768, %v1767
    %v1795 = vpack.c.bf16 %v1770, %v1769
    %v1796 = vpack.c.bf16 %v1772, %v1771
    %v1797 = vpack.c.bf16 %v1774, %v1773
    %v1798 = vpack.c.bf16 %v1776, %v1775
    %v1799 = vpack.c.bf16 %v1778, %v1777
    %v1800 = vpack.c.bf16 %v1780, %v1779
    %v1801 = vpack.c.bf16 %v1782, %v1781
    %v1802 = vpack.c.bf16 %v1784, %v1783
    %v1803 = vpack.c.bf16 %v1786, %v1785
    %v1804 = vpack.c.bf16 %v1788, %v1787
    %v1805 = vld [vmem:[%s5] sm:$0xf]
    %v1806 = vld [vmem:[%s5 + $0x4] sm:$0xf]
    %v1807 = vld [vmem:[%s5 + $0x8] sm:$0xf]
    %v1808 = vld [vmem:[%s5 + $0xc] sm:$0xf]
    %v1809 = vld [vmem:[%s5 + $0x10] sm:$0xf]
    %v1810 = vld [vmem:[%s5 + $0x14] sm:$0xf]
    %v1811 = vld [vmem:[%s5 + $0x18] sm:$0xf]
    %v1812 = vld [vmem:[%s5 + $0x1c] sm:$0xf]
    %v1813 = vld [vmem:[%s5 + $0x20] sm:$0xf]
    %v1814 = vld [vmem:[%s5 + $0x24] sm:$0xf]
    %v1815 = vld [vmem:[%s5 + $0x28] sm:$0xf]
    %v1816 = vld [vmem:[%s5 + $0x2c] sm:$0xf]
    %v1817 = vld [vmem:[%s5 + $0x30] sm:$0xf]
    %v1818 = vld [vmem:[%s5 + $0x34] sm:$0xf]
    %v1819 = vld [vmem:[%s5 + $0x38] sm:$0xf]
    %v1820 = vld [vmem:[%s5 + $0x3c] sm:$0xf]
    %v1821 = vld [vmem:[%s5 + $0x40] sm:$0xf]
    %v1822 = vld [vmem:[%s5 + $0x44] sm:$0xf]
    %v1823 = vld [vmem:[%s5 + $0x48] sm:$0xf]
    %v1824 = vld [vmem:[%s5 + $0x4c] sm:$0xf]
    %v1825 = vld [vmem:[%s5 + $0x50] sm:$0xf]
    %v1826 = vld [vmem:[%s5 + $0x54] sm:$0xf]
    %v1827 = vld [vmem:[%s5 + $0x58] sm:$0xf]
    %v1828 = vld [vmem:[%s5 + $0x5c] sm:$0xf]
    %v1829 = vld [vmem:[%s5 + $0x60] sm:$0xf]
    %v1830 = vld [vmem:[%s5 + $0x64] sm:$0xf]
    %v1831 = vld [vmem:[%s5 + $0x68] sm:$0xf]
    %v1832 = vld [vmem:[%s5 + $0x6c] sm:$0xf]
    %v1833 = vld [vmem:[%s5 + $0x70] sm:$0xf]
    %v1834 = vld [vmem:[%s5 + $0x74] sm:$0xf]
    %v1835 = vld [vmem:[%s5 + $0x78] sm:$0xf]
    %v1836 = vld [vmem:[%s5 + $0x7c] sm:$0xf]
    %v1837 = vld [vmem:[%s5 + $0x80] sm:$0xf]
    %v1838 = vld [vmem:[%s5 + $0x84] sm:$0xf]
    %v1839 = vld [vmem:[%s5 + $0x88] sm:$0xf]
    %v1840 = vld [vmem:[%s5 + $0x8c] sm:$0xf]
    %v1841 = vld [vmem:[%s5 + $0x90] sm:$0xf]
    %v1842 = vld [vmem:[%s5 + $0x94] sm:$0xf]
    %v1843 = vld [vmem:[%s5 + $0x98] sm:$0xf]
    %v1844 = vld [vmem:[%s5 + $0x9c] sm:$0xf]
    %v1845 = vld [vmem:[%s5 + $0xa0] sm:$0xf]
    %v1846 = vld [vmem:[%s5 + $0xa4] sm:$0xf]
    %v1847 = vld [vmem:[%s5 + $0xa8] sm:$0xf]
    %v1848 = vld [vmem:[%s5 + $0xac] sm:$0xf]
    %v1849 = vld [vmem:[%s5 + $0xb0] sm:$0xf]
    %v1850 = vld [vmem:[%s5 + $0xb4] sm:$0xf]
    %v1851 = vld [vmem:[%s5 + $0xb8] sm:$0xf]
    %v1852 = vld [vmem:[%s5 + $0xbc] sm:$0xf]
    %v1853 = vld [vmem:[%s6] sm:$0x1]
    %v1855 = vlaneseq
    %v1856 = vshrl.u32 %v1855, 7
    %v1857 = vsub.s32 0, %v1856
    %v1858 = vrot.slane %v1853, %v1857
    %v1908 = vunpack.c.l.b16 %v1805
    %v1909 = vunpack.c.l.b16 %v1806
    %v1910 = vunpack.c.l.b16 %v1807
    %v1911 = vunpack.c.l.b16 %v1808
    %v1912 = vunpack.c.l.b16 %v1809
    %v1913 = vunpack.c.l.b16 %v1810
    %v1914 = vunpack.c.l.b16 %v1811
    %v1915 = vunpack.c.l.b16 %v1812
    %v1916 = vunpack.c.l.b16 %v1813
    %v1917 = vunpack.c.l.b16 %v1814
    %v1918 = vunpack.c.l.b16 %v1815
    %v1919 = vunpack.c.l.b16 %v1816
    %v1920 = vunpack.c.l.b16 %v1817
    %v1921 = vunpack.c.l.b16 %v1818
    %v1922 = vunpack.c.l.b16 %v1819
    %v1923 = vunpack.c.l.b16 %v1820
    %v1924 = vunpack.c.l.b16 %v1821
    %v1925 = vunpack.c.l.b16 %v1822
    %v1926 = vunpack.c.l.b16 %v1823
    %v1927 = vunpack.c.l.b16 %v1824
    %v1928 = vunpack.c.l.b16 %v1825
    %v1929 = vunpack.c.l.b16 %v1826
    %v1930 = vunpack.c.l.b16 %v1827
    %v1931 = vunpack.c.l.b16 %v1828
    %v1932 = vunpack.c.l.b16 %v1829
    %v1933 = vunpack.c.l.b16 %v1830
    %v1934 = vunpack.c.l.b16 %v1831
    %v1935 = vunpack.c.l.b16 %v1832
    %v1936 = vunpack.c.l.b16 %v1833
    %v1937 = vunpack.c.l.b16 %v1834
    %v1938 = vunpack.c.l.b16 %v1835
    %v1939 = vunpack.c.l.b16 %v1836
    %v1940 = vunpack.c.l.b16 %v1837
    %v1941 = vunpack.c.l.b16 %v1838
    %v1942 = vunpack.c.l.b16 %v1839
    %v1943 = vunpack.c.l.b16 %v1840
    %v1944 = vunpack.c.l.b16 %v1841
    %v1945 = vunpack.c.l.b16 %v1842
    %v1946 = vunpack.c.l.b16 %v1843
    %v1947 = vunpack.c.l.b16 %v1844
    %v1948 = vunpack.c.l.b16 %v1845
    %v1949 = vunpack.c.l.b16 %v1846
    %v1950 = vunpack.c.l.b16 %v1847
    %v1951 = vunpack.c.l.b16 %v1848
    %v1952 = vunpack.c.l.b16 %v1849
    %v1953 = vunpack.c.l.b16 %v1850
    %v1954 = vunpack.c.l.b16 %v1851
    %v1955 = vunpack.c.l.b16 %v1852
    %v1956 = vpack.c.b16 %v1909, %v1908
    %v1957 = vpack.c.b16 %v1911, %v1910
    %v1958 = vpack.c.b16 %v1913, %v1912
    %v1959 = vpack.c.b16 %v1915, %v1914
    %v1960 = vpack.c.b16 %v1917, %v1916
    %v1961 = vpack.c.b16 %v1919, %v1918
    %v1962 = vpack.c.b16 %v1921, %v1920
    %v1963 = vpack.c.b16 %v1923, %v1922
    %v1964 = vpack.c.b16 %v1925, %v1924
    %v1965 = vpack.c.b16 %v1927, %v1926
    %v1966 = vpack.c.b16 %v1929, %v1928
    %v1967 = vpack.c.b16 %v1931, %v1930
    %v1968 = vpack.c.b16 %v1933, %v1932
    %v1969 = vpack.c.b16 %v1935, %v1934
    %v1970 = vpack.c.b16 %v1937, %v1936
    %v1971 = vpack.c.b16 %v1939, %v1938
    %v1972 = vpack.c.b16 %v1941, %v1940
    %v1973 = vpack.c.b16 %v1943, %v1942
    %v1974 = vpack.c.b16 %v1945, %v1944
    %v1975 = vpack.c.b16 %v1947, %v1946
    %v1976 = vpack.c.b16 %v1949, %v1948
    %v1977 = vpack.c.b16 %v1951, %v1950
    %v1978 = vpack.c.b16 %v1953, %v1952
    %v1979 = vpack.c.b16 %v1955, %v1954
    %2004 = vmatprep.subr.bf16.mxu0 0
    %2005 = vmatpush1.bf16.msra.mxu0 %v1963
    %2006 = vmatprep.subr.bf16.mxu0 0
    %2007 = vmatpush1.bf16.msra.mxu0 %v1962
    %2008 = vmatprep.subr.bf16.mxu0 0
    %2009 = vmatpush1.bf16.msra.mxu0 %v1961
    %2010 = vmatprep.subr.bf16.mxu0 0
    %2011 = vmatpush1.bf16.msra.mxu0 %v1960
    %2012 = vmatprep.subr.bf16.mxu0 0
    %2013 = vmatpush1.bf16.msra.mxu0 %v1959
    %2014 = vmatprep.subr.bf16.mxu0 0
    %2015 = vmatpush1.bf16.msra.mxu0 %v1958
    %2016 = vmatprep.subr.bf16.mxu0 0
    %2017 = vmatpush1.bf16.msra.mxu0 %v1957
    %2018 = vmatprep.subr.bf16.mxu0 0
    %2019 = vmatpush1.bf16.msra.mxu0 %v1956
    %2020 = vmatprep.subr.bf16.mxu0 0
    %2021 = vmatpush2.bf16.msra.mxu0 %v1971
    %2022 = vmatprep.subr.bf16.mxu0 0
    %2023 = vmatpush2.bf16.msra.mxu0 %v1970
    %2024 = vmatprep.subr.bf16.mxu0 0
    %2025 = vmatpush2.bf16.msra.mxu0 %v1969
    %2026 = vmatprep.subr.bf16.mxu0 0
    %2027 = vmatpush2.bf16.msra.mxu0 %v1968
    %2028 = vmatprep.subr.bf16.mxu0 0
    %2029 = vmatpush2.bf16.msra.mxu0 %v1967
    %2030 = vmatprep.subr.bf16.mxu0 0
    %2031 = vmatpush2.bf16.msra.mxu0 %v1966
    %2032 = vmatprep.subr.bf16.mxu0 0
    %2033 = vmatpush2.bf16.msra.mxu0 %v1965
    %2034 = vmatprep.subr.bf16.mxu0 0
    %2035 = vmatpush2.bf16.msra.mxu0 %v1964
    %2036 = vmatprep.mubr.bf16.mxu0 %v1677
    %2037 = vmatmul.mubr.bf16.gmra.mxu0 %v1661
    %v2038 = vpop.f32.mrf.mxu0
    %v2039 = vadd.f32 %v1858, %v2038
    %v2040 = vpop.f32.mrf.mxu0
    %v2041 = vpop.f32.mrf.mxu0
    %v2042 = vadd.f32 %v1858, %v2041
    %v2043 = vpop.f32.mrf.mxu0
    %2044 = vmatprep.mubr.bf16.mxu0 %v1678
    %2045 = vmatmul.mubr.bf16.gmra.mxu0 %v1662
    %v2046 = vpop.f32.mrf.mxu0
    %v2047 = vadd.f32 %v1858, %v2046
    %v2048 = vpop.f32.mrf.mxu0
    %v2049 = vpop.f32.mrf.mxu0
    %v2050 = vadd.f32 %v1858, %v2049
    %v2051 = vpop.f32.mrf.mxu0
    %2052 = vmatprep.mubr.bf16.mxu0 %v1679
    %2053 = vmatmul.mubr.bf16.gmra.mxu0 %v1663
    %v2054 = vpop.f32.mrf.mxu0
    %v2055 = vadd.f32 %v1858, %v2054
    %v2056 = vpop.f32.mrf.mxu0
    %v2057 = vpop.f32.mrf.mxu0
    %v2058 = vadd.f32 %v1858, %v2057
    %v2059 = vpop.f32.mrf.mxu0
    %2060 = vmatprep.mubr.bf16.mxu0 %v1680
    %2061 = vmatmul.mubr.bf16.gmra.mxu0 %v1664
    %v2062 = vpop.f32.mrf.mxu0
    %v2063 = vadd.f32 %v1858, %v2062
    %v2064 = vpop.f32.mrf.mxu0
    %v2065 = vpop.f32.mrf.mxu0
    %v2066 = vadd.f32 %v1858, %v2065
    %v2067 = vpop.f32.mrf.mxu0
    %2068 = vmatprep.mubr.bf16.mxu0 %v1681
    %2069 = vmatmul.mubr.bf16.gmra.mxu0 %v1665
    %v2070 = vpop.f32.mrf.mxu0
    %v2071 = vadd.f32 %v1858, %v2070
    %v2072 = vpop.f32.mrf.mxu0
    %v2073 = vpop.f32.mrf.mxu0
    %v2074 = vadd.f32 %v1858, %v2073
    %v2075 = vpop.f32.mrf.mxu0
    %2076 = vmatprep.mubr.bf16.mxu0 %v1682
    %2077 = vmatmul.mubr.bf16.gmra.mxu0 %v1666
    %v2078 = vpop.f32.mrf.mxu0
    %v2079 = vadd.f32 %v1858, %v2078
    %v2080 = vpop.f32.mrf.mxu0
    %v2081 = vpop.f32.mrf.mxu0
    %v2082 = vadd.f32 %v1858, %v2081
    %v2083 = vpop.f32.mrf.mxu0
    %2084 = vmatprep.mubr.bf16.mxu0 %v1683
    %2085 = vmatmul.mubr.bf16.gmra.mxu0 %v1667
    %v2086 = vpop.f32.mrf.mxu0
    %v2087 = vadd.f32 %v1858, %v2086
    %v2088 = vpop.f32.mrf.mxu0
    %v2089 = vpop.f32.mrf.mxu0
    %v2090 = vadd.f32 %v1858, %v2089
    %v2091 = vpop.f32.mrf.mxu0
    %2092 = vmatprep.mubr.bf16.mxu0 %v1684
    %2093 = vmatmul.mubr.bf16.gmra.mxu0 %v1668
    %v2094 = vpop.f32.mrf.mxu0
    %v2095 = vadd.f32 %v1858, %v2094
    %v2096 = vpop.f32.mrf.mxu0
    %v2097 = vpop.f32.mrf.mxu0
    %v2098 = vadd.f32 %v1858, %v2097
    %v2099 = vpop.f32.mrf.mxu0
    %2100 = vmatprep.mubr.bf16.mxu0 %v1685
    %2101 = vmatmul.mubr.bf16.gmra.mxu0 %v1669
    %v2102 = vpop.f32.mrf.mxu0
    %v2103 = vadd.f32 %v1858, %v2102
    %v2104 = vpop.f32.mrf.mxu0
    %v2105 = vpop.f32.mrf.mxu0
    %v2106 = vadd.f32 %v1858, %v2105
    %v2107 = vpop.f32.mrf.mxu0
    %2108 = vmatprep.mubr.bf16.mxu0 %v1686
    %2109 = vmatmul.mubr.bf16.gmra.mxu0 %v1670
    %v2110 = vpop.f32.mrf.mxu0
    %v2111 = vadd.f32 %v1858, %v2110
    %v2112 = vpop.f32.mrf.mxu0
    %v2113 = vpop.f32.mrf.mxu0
    %v2114 = vadd.f32 %v1858, %v2113
    %v2115 = vpop.f32.mrf.mxu0
    %2116 = vmatprep.mubr.bf16.mxu0 %v1687
    %2117 = vmatmul.mubr.bf16.gmra.mxu0 %v1671
    %v2118 = vpop.f32.mrf.mxu0
    %v2119 = vadd.f32 %v1858, %v2118
    %v2120 = vpop.f32.mrf.mxu0
    %v2121 = vpop.f32.mrf.mxu0
    %v2122 = vadd.f32 %v1858, %v2121
    %v2123 = vpop.f32.mrf.mxu0
    %2124 = vmatprep.mubr.bf16.mxu0 %v1688
    %2125 = vmatmul.mubr.bf16.gmra.mxu0 %v1672
    %v2126 = vpop.f32.mrf.mxu0
    %v2127 = vadd.f32 %v1858, %v2126
    %v2128 = vpop.f32.mrf.mxu0
    %v2129 = vpop.f32.mrf.mxu0
    %v2130 = vadd.f32 %v1858, %v2129
    %v2131 = vpop.f32.mrf.mxu0
    %2132 = vmatprep.mubr.bf16.mxu0 %v1689
    %2133 = vmatmul.mubr.bf16.gmra.mxu0 %v1673
    %v2134 = vpop.f32.mrf.mxu0
    %v2135 = vadd.f32 %v1858, %v2134
    %v2136 = vpop.f32.mrf.mxu0
    %v2137 = vpop.f32.mrf.mxu0
    %v2138 = vadd.f32 %v1858, %v2137
    %v2139 = vpop.f32.mrf.mxu0
    %2140 = vmatprep.mubr.bf16.mxu0 %v1690
    %2141 = vmatmul.mubr.bf16.gmra.mxu0 %v1674
    %v2142 = vpop.f32.mrf.mxu0
    %v2143 = vadd.f32 %v1858, %v2142
    %v2144 = vpop.f32.mrf.mxu0
    %v2145 = vpop.f32.mrf.mxu0
    %v2146 = vadd.f32 %v1858, %v2145
    %v2147 = vpop.f32.mrf.mxu0
    %2148 = vmatprep.mubr.bf16.mxu0 %v1691
    %2149 = vmatmul.mubr.bf16.gmra.mxu0 %v1675
    %v2150 = vpop.f32.mrf.mxu0
    %v2151 = vadd.f32 %v1858, %v2150
    %v2152 = vpop.f32.mrf.mxu0
    %v2153 = vpop.f32.mrf.mxu0
    %v2154 = vadd.f32 %v1858, %v2153
    %v2155 = vpop.f32.mrf.mxu0
    %2156 = vmatprep.mubr.bf16.mxu0 %v1692
    %2157 = vmatmul.mubr.bf16.gmra.mxu0 %v1676
    %v2158 = vpop.f32.mrf.mxu0
    %v2159 = vadd.f32 %v1858, %v2158
    %v2160 = vpop.f32.mrf.mxu0
    %v2161 = vpop.f32.mrf.mxu0
    %v2162 = vadd.f32 %v1858, %v2161
    %v2163 = vpop.f32.mrf.mxu0
    %2164 = vdwg.mxu0
    %2165 = vmatprep.subr.bf16.mxu0 0
    %2166 = vmatpush1.bf16.msra.mxu0 %v1979
    %2167 = vmatprep.subr.bf16.mxu0 0
    %2168 = vmatpush1.bf16.msra.mxu0 %v1978
    %2169 = vmatprep.subr.bf16.mxu0 0
    %2170 = vmatpush1.bf16.msra.mxu0 %v1977
    %2171 = vmatprep.subr.bf16.mxu0 0
    %2172 = vmatpush1.bf16.msra.mxu0 %v1976
    %2173 = vmatprep.subr.bf16.mxu0 0
    %2174 = vmatpush1.bf16.msra.mxu0 %v1975
    %2175 = vmatprep.subr.bf16.mxu0 0
    %2176 = vmatpush1.bf16.msra.mxu0 %v1974
    %2177 = vmatprep.subr.bf16.mxu0 0
    %2178 = vmatpush1.bf16.msra.mxu0 %v1973
    %2179 = vmatprep.subr.bf16.mxu0 0
    %2180 = vmatpush1.bf16.msra.mxu0 %v1972
    %2181 = vmatprep.subr.bf16.mxu0 0
    %2182 = vmatpush2.bf16.msra.mxu0 0
    %2183 = vmatprep.subr.bf16.mxu0 0
    %2184 = vmatpush2.bf16.msra.mxu0 0
    %2185 = vmatprep.subr.bf16.mxu0 0
    %2186 = vmatpush2.bf16.msra.mxu0 0
    %2187 = vmatprep.subr.bf16.mxu0 0
    %2188 = vmatpush2.bf16.msra.mxu0 0
    %2189 = vmatprep.subr.bf16.mxu0 0
    %2190 = vmatpush2.bf16.msra.mxu0 0
    %2191 = vmatprep.subr.bf16.mxu0 0
    %2192 = vmatpush2.bf16.msra.mxu0 0
    %2193 = vmatprep.subr.bf16.mxu0 0
    %2194 = vmatpush2.bf16.msra.mxu0 0
    %2195 = vmatprep.subr.bf16.mxu0 0
    %2196 = vmatpush2.bf16.msra.mxu0 0
    %2197 = vmatprep.mubr.bf16.mxu0 0
    %2198 = vmatmul.mubr.bf16.gmra.mxu0 %v1789
    %v2199 = vpop.f32.mrf.mxu0
    %v2200 = vadd.f32 %v2039, %v2199
    %v2201 = vpop.f32.mrf.mxu0
    %v2202 = vpop.f32.mrf.mxu0
    %v2203 = vadd.f32 %v2042, %v2202
    %v2204 = vpop.f32.mrf.mxu0
    %2205 = vmatprep.mubr.bf16.mxu0 0
    %2206 = vmatmul.mubr.bf16.gmra.mxu0 %v1790
    %v2207 = vpop.f32.mrf.mxu0
    %v2208 = vadd.f32 %v2047, %v2207
    %v2209 = vpop.f32.mrf.mxu0
    %v2210 = vpop.f32.mrf.mxu0
    %v2211 = vadd.f32 %v2050, %v2210
    %v2212 = vpop.f32.mrf.mxu0
    %2213 = vmatprep.mubr.bf16.mxu0 0
    %2214 = vmatmul.mubr.bf16.gmra.mxu0 %v1791
    %v2215 = vpop.f32.mrf.mxu0
    %v2216 = vadd.f32 %v2055, %v2215
    %v2217 = vpop.f32.mrf.mxu0
    %v2218 = vpop.f32.mrf.mxu0
    %v2219 = vadd.f32 %v2058, %v2218
    %v2220 = vpop.f32.mrf.mxu0
    %2221 = vmatprep.mubr.bf16.mxu0 0
    %2222 = vmatmul.mubr.bf16.gmra.mxu0 %v1792
    %v2223 = vpop.f32.mrf.mxu0
    %v2224 = vadd.f32 %v2063, %v2223
    %v2225 = vpop.f32.mrf.mxu0
    %v2226 = vpop.f32.mrf.mxu0
    %v2227 = vadd.f32 %v2066, %v2226
    %v2228 = vpop.f32.mrf.mxu0
    %2229 = vmatprep.mubr.bf16.mxu0 0
    %2230 = vmatmul.mubr.bf16.gmra.mxu0 %v1793
    %v2231 = vpop.f32.mrf.mxu0
    %v2232 = vadd.f32 %v2071, %v2231
    %v2233 = vpop.f32.mrf.mxu0
    %v2234 = vpop.f32.mrf.mxu0
    %v2235 = vadd.f32 %v2074, %v2234
    %v2236 = vpop.f32.mrf.mxu0
    %2237 = vmatprep.mubr.bf16.mxu0 0
    %2238 = vmatmul.mubr.bf16.gmra.mxu0 %v1794
    %v2239 = vpop.f32.mrf.mxu0
    %v2240 = vadd.f32 %v2079, %v2239
    %v2241 = vpop.f32.mrf.mxu0
    %v2242 = vpop.f32.mrf.mxu0
    %v2243 = vadd.f32 %v2082, %v2242
    %v2244 = vpop.f32.mrf.mxu0
    %2245 = vmatprep.mubr.bf16.mxu0 0
    %2246 = vmatmul.mubr.bf16.gmra.mxu0 %v1795
    %v2247 = vpop.f32.mrf.mxu0
    %v2248 = vadd.f32 %v2087, %v2247
    %v2249 = vpop.f32.mrf.mxu0
    %v2250 = vpop.f32.mrf.mxu0
    %v2251 = vadd.f32 %v2090, %v2250
    %v2252 = vpop.f32.mrf.mxu0
    %2253 = vmatprep.mubr.bf16.mxu0 0
    %2254 = vmatmul.mubr.bf16.gmra.mxu0 %v1796
    %v2255 = vpop.f32.mrf.mxu0
    %v2256 = vadd.f32 %v2095, %v2255
    %v2257 = vpop.f32.mrf.mxu0
    %v2258 = vpop.f32.mrf.mxu0
    %v2259 = vadd.f32 %v2098, %v2258
    %v2260 = vpop.f32.mrf.mxu0
    %2261 = vmatprep.mubr.bf16.mxu0 0
    %2262 = vmatmul.mubr.bf16.gmra.mxu0 %v1797
    %v2263 = vpop.f32.mrf.mxu0
    %v2264 = vadd.f32 %v2103, %v2263
    %v2265 = vpop.f32.mrf.mxu0
    %v2266 = vpop.f32.mrf.mxu0
    %v2267 = vadd.f32 %v2106, %v2266
    %v2268 = vpop.f32.mrf.mxu0
    %2269 = vmatprep.mubr.bf16.mxu0 0
    %2270 = vmatmul.mubr.bf16.gmra.mxu0 %v1798
    %v2271 = vpop.f32.mrf.mxu0
    %v2272 = vadd.f32 %v2111, %v2271
    %v2273 = vpop.f32.mrf.mxu0
    %v2274 = vpop.f32.mrf.mxu0
    %v2275 = vadd.f32 %v2114, %v2274
    %v2276 = vpop.f32.mrf.mxu0
    %2277 = vmatprep.mubr.bf16.mxu0 0
    %2278 = vmatmul.mubr.bf16.gmra.mxu0 %v1799
    %v2279 = vpop.f32.mrf.mxu0
    %v2280 = vadd.f32 %v2119, %v2279
    %v2281 = vpop.f32.mrf.mxu0
    %v2282 = vpop.f32.mrf.mxu0
    %v2283 = vadd.f32 %v2122, %v2282
    %v2284 = vpop.f32.mrf.mxu0
    %2285 = vmatprep.mubr.bf16.mxu0 0
    %2286 = vmatmul.mubr.bf16.gmra.mxu0 %v1800
    %v2287 = vpop.f32.mrf.mxu0
    %v2288 = vadd.f32 %v2127, %v2287
    %v2289 = vpop.f32.mrf.mxu0
    %v2290 = vpop.f32.mrf.mxu0
    %v2291 = vadd.f32 %v2130, %v2290
    %v2292 = vpop.f32.mrf.mxu0
    %2293 = vmatprep.mubr.bf16.mxu0 0
    %2294 = vmatmul.mubr.bf16.gmra.mxu0 %v1801
    %v2295 = vpop.f32.mrf.mxu0
    %v2296 = vadd.f32 %v2135, %v2295
    %v2297 = vpop.f32.mrf.mxu0
    %v2298 = vpop.f32.mrf.mxu0
    %v2299 = vadd.f32 %v2138, %v2298
    %v2300 = vpop.f32.mrf.mxu0
    %2301 = vmatprep.mubr.bf16.mxu0 0
    %2302 = vmatmul.mubr.bf16.gmra.mxu0 %v1802
    %v2303 = vpop.f32.mrf.mxu0
    %v2304 = vadd.f32 %v2143, %v2303
    %v2305 = vpop.f32.mrf.mxu0
    %v2306 = vpop.f32.mrf.mxu0
    %v2307 = vadd.f32 %v2146, %v2306
    %v2308 = vpop.f32.mrf.mxu0
    %2309 = vmatprep.mubr.bf16.mxu0 0
    %2310 = vmatmul.mubr.bf16.gmra.mxu0 %v1803
    %v2311 = vpop.f32.mrf.mxu0
    %v2312 = vadd.f32 %v2151, %v2311
    %v2313 = vpop.f32.mrf.mxu0
    %v2314 = vpop.f32.mrf.mxu0
    %v2315 = vadd.f32 %v2154, %v2314
    %v2316 = vpop.f32.mrf.mxu0
    %2317 = vmatprep.mubr.bf16.mxu0 0
    %2318 = vmatmul.mubr.bf16.gmra.mxu0 %v1804
    %v2319 = vpop.f32.mrf.mxu0
    %v2320 = vadd.f32 %v2159, %v2319
    %v2321 = vpop.f32.mrf.mxu0
    %v2322 = vpop.f32.mrf.mxu0
    %v2323 = vadd.f32 %v2162, %v2322
    %v2324 = vpop.f32.mrf.mxu0
    %2325 = vdwg.mxu0
    %v2326 = vld [vmem:[%s7] sm:$0x1]
    %v2327 = vld [vmem:[%s8] sm:$0x1]
    %v2328 = vadd.f32 %v2200, %v2203
    %v2329 = vadd.f32 %v2328, %v2208
    %v2330 = vadd.f32 %v2329, %v2211
    %v2331 = vadd.f32 %v2330, %v2216
    %v2332 = vadd.f32 %v2331, %v2219
    %v2333 = vadd.f32 %v2332, %v2224
    %v2334 = vadd.f32 %v2333, %v2227
    %v2335 = vrot.slane %v2334, 4
    %v2336 = vadd.f32 %v2334, %v2335
    %v2337 = vrot.slane %v2336, 2
    %v2338 = vadd.f32 %v2336, %v2337
    %v2339 = vrot.slane %v2338, 1
    %v2340 = vadd.f32 %v2338, %v2339
    %v2341 = vadd.f32 %v2232, %v2235
    %v2342 = vadd.f32 %v2341, %v2240
    %v2343 = vadd.f32 %v2342, %v2243
    %v2344 = vadd.f32 %v2343, %v2248
    %v2345 = vadd.f32 %v2344, %v2251
    %v2346 = vadd.f32 %v2345, %v2256
    %v2347 = vadd.f32 %v2346, %v2259
    %v2348 = vrot.slane %v2347, 4
    %v2349 = vadd.f32 %v2347, %v2348
    %v2350 = vrot.slane %v2349, 2
    %v2351 = vadd.f32 %v2349, %v2350
    %v2352 = vrot.slane %v2351, 1
    %v2353 = vadd.f32 %v2351, %v2352
    %v2354 = vadd.f32 %v2264, %v2267
    %v2355 = vadd.f32 %v2354, %v2272
    %v2356 = vadd.f32 %v2355, %v2275
    %v2357 = vadd.f32 %v2356, %v2280
    %v2358 = vadd.f32 %v2357, %v2283
    %v2359 = vadd.f32 %v2358, %v2288
    %v2360 = vadd.f32 %v2359, %v2291
    %v2361 = vrot.slane %v2360, 4
    %v2362 = vadd.f32 %v2360, %v2361
    %v2363 = vrot.slane %v2362, 2
    %v2364 = vadd.f32 %v2362, %v2363
    %v2365 = vrot.slane %v2364, 1
    %v2366 = vadd.f32 %v2364, %v2365
    %v2367 = vadd.f32 %v2296, %v2299
    %v2368 = vadd.f32 %v2367, %v2304
    %v2369 = vadd.f32 %v2368, %v2307
    %v2370 = vadd.f32 %v2369, %v2312
    %v2371 = vadd.f32 %v2370, %v2315
    %v2372 = vadd.f32 %v2371, %v2320
    %v2373 = vadd.f32 %v2372, %v2323
    %v2374 = vrot.slane %v2373, 4
    %v2375 = vadd.f32 %v2373, %v2374
    %v2376 = vrot.slane %v2375, 2
    %v2377 = vadd.f32 %v2375, %v2376
    %v2378 = vrot.slane %v2377, 1
    %v2379 = vadd.f32 %v2377, %v2378
    %v2380 = vsel %vm931, %v2340, %v2353
    %v2381 = vsel %vm933, %v2380, %v2366
    %v2382 = vsel %vm935, %v2381, %v2379
    %2383 = vmatprep.subr.mxu0 0.0
    %2384 = vmatpush1.msra.mxu0 %v878
    %2385 = vmatprep.subr.mxu0 0.0
    %2386 = vmatpush1.msra.mxu0 %v877
    %2387 = vmatprep.subr.mxu0 0.0
    %2388 = vmatpush1.msra.mxu0 %v876
    %2389 = vmatprep.subr.mxu0 0.0
    %2390 = vmatpush1.msra.mxu0 %v875
    %2391 = vmatprep.subr.mxu0 0.0
    %2392 = vmatpush1.msra.mxu0 %v874
    %2393 = vmatprep.subr.mxu0 0.0
    %2394 = vmatpush1.msra.mxu0 %v873
    %2395 = vmatprep.subr.mxu0 0.0
    %2396 = vmatpush1.msra.mxu0 %v872
    %2397 = vmatprep.subr.mxu0 0.0
    %2398 = vmatpush1.msra.mxu0 %v871
    %2399 = vmatprep.subr.mxu0 0.0
    %2400 = vmatpush1.msra.mxu0 %v870
    %2401 = vmatprep.subr.mxu0 0.0
    %2402 = vmatpush1.msra.mxu0 %v869
    %2403 = vmatprep.subr.mxu0 0.0
    %2404 = vmatpush1.msra.mxu0 %v868
    %2405 = vmatprep.subr.mxu0 0.0
    %2406 = vmatpush1.msra.mxu0 %v867
    %2407 = vmatprep.subr.mxu0 0.0
    %2408 = vmatpush1.msra.mxu0 %v866
    %2409 = vmatprep.subr.mxu0 0.0
    %2410 = vmatpush1.msra.mxu0 %v865
    %2411 = vmatprep.subr.mxu0 0.0
    %2412 = vmatpush1.msra.mxu0 %v864
    %2413 = vmatprep.subr.mxu0 0.0
    %2414 = vmatpush1.msra.mxu0 %v863
    %2415 = vmatprep.subr.mxu0 0.0
    %2416 = vmatpush2.msra.mxu0 0.0
    %2417 = vmatprep.subr.mxu0 0.0
    %2418 = vmatpush2.msra.mxu0 0.0
    %2419 = vmatprep.subr.mxu0 0.0
    %2420 = vmatpush2.msra.mxu0 0.0
    %2421 = vmatprep.subr.mxu0 0.0
    %2422 = vmatpush2.msra.mxu0 0.0
    %2423 = vmatprep.subr.mxu0 0.0
    %2424 = vmatpush2.msra.mxu0 0.0
    %2425 = vmatprep.subr.mxu0 0.0
    %2426 = vmatpush2.msra.mxu0 0.0
    %2427 = vmatprep.subr.mxu0 0.0
    %2428 = vmatpush2.msra.mxu0 0.0
    %2429 = vmatprep.subr.mxu0 0.0
    %2430 = vmatpush2.msra.mxu0 0.0
    %2431 = vmatprep.subr.mxu0 0.0
    %2432 = vmatpush2.msra.mxu0 0.0
    %2433 = vmatprep.subr.mxu0 0.0
    %2434 = vmatpush2.msra.mxu0 0.0
    %2435 = vmatprep.subr.mxu0 0.0
    %2436 = vmatpush2.msra.mxu0 0.0
    %2437 = vmatprep.subr.mxu0 0.0
    %2438 = vmatpush2.msra.mxu0 0.0
    %2439 = vmatprep.subr.mxu0 0.0
    %2440 = vmatpush2.msra.mxu0 0.0
    %2441 = vmatprep.subr.mxu0 0.0
    %2442 = vmatpush2.msra.mxu0 0.0
    %2443 = vmatprep.subr.mxu0 0.0
    %2444 = vmatpush2.msra.mxu0 0.0
    %2445 = vmatprep.subr.mxu0 0.0
    %2446 = vmatpush2.msra.mxu0 0.0
    %2447 = vmatprep.mubr.f32.mxu0 0.0
    %2448 = vmatmul.mubr.f32.gmra.mxu0 %v2382
    %v2449 = vpop.f32.mrf.mxu0
    %v2450 = vadd.f32 0.0, %v2449
    %v2451 = vpop.f32.mrf.mxu0
    %2452 = vdwg.mxu0
    %v2453 = vmul.f32 %v2450, %v1007
    %v2454 = vlaneseq
    %v2455 = vshrl.u32 %v2454, 7
    %v2456 = vsub.s32 0, %v2455
    %v2457 = vrot.slane %v2453, %v2456
    %v2458 = vsub.f32 %v2200, %v2457
    %v2459 = vsub.f32 %v2203, %v2457
    %v2460 = vsub.f32 %v2208, %v2457
    %v2461 = vsub.f32 %v2211, %v2457
    %v2462 = vsub.f32 %v2216, %v2457
    %v2463 = vsub.f32 %v2219, %v2457
    %v2464 = vsub.f32 %v2224, %v2457
    %v2465 = vsub.f32 %v2227, %v2457
    %v2466 = vlaneseq
    %v2467 = vshrl.u32 %v2466, 7
    %v2468 = vsub.s32 1, %v2467
    %v2469 = vrot.slane %v2453, %v2468
    %v2470 = vsub.f32 %v2232, %v2469
    %v2471 = vsub.f32 %v2235, %v2469
    %v2472 = vsub.f32 %v2240, %v2469
    %v2473 = vsub.f32 %v2243, %v2469
    %v2474 = vsub.f32 %v2248, %v2469
    %v2475 = vsub.f32 %v2251, %v2469
    %v2476 = vsub.f32 %v2256, %v2469
    %v2477 = vsub.f32 %v2259, %v2469
    %v2478 = vlaneseq
    %v2479 = vshrl.u32 %v2478, 7
    %v2480 = vsub.s32 2, %v2479
    %v2481 = vrot.slane %v2453, %v2480
    %v2482 = vsub.f32 %v2264, %v2481
    %v2483 = vsub.f32 %v2267, %v2481
    %v2484 = vsub.f32 %v2272, %v2481
    %v2485 = vsub.f32 %v2275, %v2481
    %v2486 = vsub.f32 %v2280, %v2481
    %v2487 = vsub.f32 %v2283, %v2481
    %v2488 = vsub.f32 %v2288, %v2481
    %v2489 = vsub.f32 %v2291, %v2481
    %v2490 = vlaneseq
    %v2491 = vshrl.u32 %v2490, 7
    %v2492 = vsub.s32 3, %v2491
    %v2493 = vrot.slane %v2453, %v2492
    %v2494 = vsub.f32 %v2296, %v2493
    %v2495 = vsub.f32 %v2299, %v2493
    %v2496 = vsub.f32 %v2304, %v2493
    %v2497 = vsub.f32 %v2307, %v2493
    %v2498 = vsub.f32 %v2312, %v2493
    %v2499 = vsub.f32 %v2315, %v2493
    %v2500 = vsub.f32 %v2320, %v2493
    %v2501 = vsub.f32 %v2323, %v2493
    %v2502 = vmul.f32 %v2458, %v2458
    %v2503 = vmul.f32 %v2459, %v2459
    %v2504 = vmul.f32 %v2460, %v2460
    %v2505 = vmul.f32 %v2461, %v2461
    %v2506 = vmul.f32 %v2462, %v2462
    %v2507 = vmul.f32 %v2463, %v2463
    %v2508 = vmul.f32 %v2464, %v2464
    %v2509 = vmul.f32 %v2465, %v2465
    %v2510 = vadd.f32 %v2502, %v2503
    %v2511 = vadd.f32 %v2510, %v2504
    %v2512 = vadd.f32 %v2511, %v2505
    %v2513 = vadd.f32 %v2512, %v2506
    %v2514 = vadd.f32 %v2513, %v2507
    %v2515 = vadd.f32 %v2514, %v2508
    %v2516 = vadd.f32 %v2515, %v2509
    %v2517 = vrot.slane %v2516, 4
    %v2518 = vadd.f32 %v2516, %v2517
    %v2519 = vrot.slane %v2518, 2
    %v2520 = vadd.f32 %v2518, %v2519
    %v2521 = vrot.slane %v2520, 1
    %v2522 = vadd.f32 %v2520, %v2521
    %v2523 = vmul.f32 %v2470, %v2470
    %v2524 = vmul.f32 %v2471, %v2471
    %v2525 = vmul.f32 %v2472, %v2472
    %v2526 = vmul.f32 %v2473, %v2473
    %v2527 = vmul.f32 %v2474, %v2474
    %v2528 = vmul.f32 %v2475, %v2475
    %v2529 = vmul.f32 %v2476, %v2476
    %v2530 = vmul.f32 %v2477, %v2477
    %v2531 = vadd.f32 %v2523, %v2524
    %v2532 = vadd.f32 %v2531, %v2525
    %v2533 = vadd.f32 %v2532, %v2526
    %v2534 = vadd.f32 %v2533, %v2527
    %v2535 = vadd.f32 %v2534, %v2528
    %v2536 = vadd.f32 %v2535, %v2529
    %v2537 = vadd.f32 %v2536, %v2530
    %v2538 = vrot.slane %v2537, 4
    %v2539 = vadd.f32 %v2537, %v2538
    %v2540 = vrot.slane %v2539, 2
    %v2541 = vadd.f32 %v2539, %v2540
    %v2542 = vrot.slane %v2541, 1
    %v2543 = vadd.f32 %v2541, %v2542
    %v2544 = vmul.f32 %v2482, %v2482
    %v2545 = vmul.f32 %v2483, %v2483
    %v2546 = vmul.f32 %v2484, %v2484
    %v2547 = vmul.f32 %v2485, %v2485
    %v2548 = vmul.f32 %v2486, %v2486
    %v2549 = vmul.f32 %v2487, %v2487
    %v2550 = vmul.f32 %v2488, %v2488
    %v2551 = vmul.f32 %v2489, %v2489
    %v2552 = vadd.f32 %v2544, %v2545
    %v2553 = vadd.f32 %v2552, %v2546
    %v2554 = vadd.f32 %v2553, %v2547
    %v2555 = vadd.f32 %v2554, %v2548
    %v2556 = vadd.f32 %v2555, %v2549
    %v2557 = vadd.f32 %v2556, %v2550
    %v2558 = vadd.f32 %v2557, %v2551
    %v2559 = vrot.slane %v2558, 4
    %v2560 = vadd.f32 %v2558, %v2559
    %v2561 = vrot.slane %v2560, 2
    %v2562 = vadd.f32 %v2560, %v2561
    %v2563 = vrot.slane %v2562, 1
    %v2564 = vadd.f32 %v2562, %v2563
    %v2565 = vmul.f32 %v2494, %v2494
    %v2566 = vmul.f32 %v2495, %v2495
    %v2567 = vmul.f32 %v2496, %v2496
    %v2568 = vmul.f32 %v2497, %v2497
    %v2569 = vmul.f32 %v2498, %v2498
    %v2570 = vmul.f32 %v2499, %v2499
    %v2571 = vmul.f32 %v2500, %v2500
    %v2572 = vmul.f32 %v2501, %v2501
    %v2573 = vadd.f32 %v2565, %v2566
    %v2574 = vadd.f32 %v2573, %v2567
    %v2575 = vadd.f32 %v2574, %v2568
    %v2576 = vadd.f32 %v2575, %v2569
    %v2577 = vadd.f32 %v2576, %v2570
    %v2578 = vadd.f32 %v2577, %v2571
    %v2579 = vadd.f32 %v2578, %v2572
    %v2580 = vrot.slane %v2579, 4
    %v2581 = vadd.f32 %v2579, %v2580
    %v2582 = vrot.slane %v2581, 2
    %v2583 = vadd.f32 %v2581, %v2582
    %v2584 = vrot.slane %v2583, 1
    %v2585 = vadd.f32 %v2583, %v2584
    %v2586 = vsel %vm931, %v2522, %v2543
    %v2587 = vsel %vm933, %v2586, %v2564
    %v2588 = vsel %vm935, %v2587, %v2585
    %2589 = vmatprep.subr.mxu0 0.0
    %2590 = vmatpush1.msra.mxu0 %v878
    %2591 = vmatprep.subr.mxu0 0.0
    %2592 = vmatpush1.msra.mxu0 %v877
    %2593 = vmatprep.subr.mxu0 0.0
    %2594 = vmatpush1.msra.mxu0 %v876
    %2595 = vmatprep.subr.mxu0 0.0
    %2596 = vmatpush1.msra.mxu0 %v875
    %2597 = vmatprep.subr.mxu0 0.0
    %2598 = vmatpush1.msra.mxu0 %v874
    %2599 = vmatprep.subr.mxu0 0.0
    %2600 = vmatpush1.msra.mxu0 %v873
    %2601 = vmatprep.subr.mxu0 0.0
    %2602 = vmatpush1.msra.mxu0 %v872
    %2603 = vmatprep.subr.mxu0 0.0
    %2604 = vmatpush1.msra.mxu0 %v871
    %2605 = vmatprep.subr.mxu0 0.0
    %2606 = vmatpush1.msra.mxu0 %v870
    %2607 = vmatprep.subr.mxu0 0.0
    %2608 = vmatpush1.msra.mxu0 %v869
    %2609 = vmatprep.subr.mxu0 0.0
    %2610 = vmatpush1.msra.mxu0 %v868
    %2611 = vmatprep.subr.mxu0 0.0
    %2612 = vmatpush1.msra.mxu0 %v867
    %2613 = vmatprep.subr.mxu0 0.0
    %2614 = vmatpush1.msra.mxu0 %v866
    %2615 = vmatprep.subr.mxu0 0.0
    %2616 = vmatpush1.msra.mxu0 %v865
    %2617 = vmatprep.subr.mxu0 0.0
    %2618 = vmatpush1.msra.mxu0 %v864
    %2619 = vmatprep.subr.mxu0 0.0
    %2620 = vmatpush1.msra.mxu0 %v863
    %2621 = vmatprep.subr.mxu0 0.0
    %2622 = vmatpush2.msra.mxu0 0.0
    %2623 = vmatprep.subr.mxu0 0.0
    %2624 = vmatpush2.msra.mxu0 0.0
    %2625 = vmatprep.subr.mxu0 0.0
    %2626 = vmatpush2.msra.mxu0 0.0
    %2627 = vmatprep.subr.mxu0 0.0
    %2628 = vmatpush2.msra.mxu0 0.0
    %2629 = vmatprep.subr.mxu0 0.0
    %2630 = vmatpush2.msra.mxu0 0.0
    %2631 = vmatprep.subr.mxu0 0.0
    %2632 = vmatpush2.msra.mxu0 0.0
    %2633 = vmatprep.subr.mxu0 0.0
    %2634 = vmatpush2.msra.mxu0 0.0
    %2635 = vmatprep.subr.mxu0 0.0
    %2636 = vmatpush2.msra.mxu0 0.0
    %2637 = vmatprep.subr.mxu0 0.0
    %2638 = vmatpush2.msra.mxu0 0.0
    %2639 = vmatprep.subr.mxu0 0.0
    %2640 = vmatpush2.msra.mxu0 0.0
    %2641 = vmatprep.subr.mxu0 0.0
    %2642 = vmatpush2.msra.mxu0 0.0
    %2643 = vmatprep.subr.mxu0 0.0
    %2644 = vmatpush2.msra.mxu0 0.0
    %2645 = vmatprep.subr.mxu0 0.0
    %2646 = vmatpush2.msra.mxu0 0.0
    %2647 = vmatprep.subr.mxu0 0.0
    %2648 = vmatpush2.msra.mxu0 0.0
    %2649 = vmatprep.subr.mxu0 0.0
    %2650 = vmatpush2.msra.mxu0 0.0
    %2651 = vmatprep.subr.mxu0 0.0
    %2652 = vmatpush2.msra.mxu0 0.0
    %2653 = vmatprep.mubr.f32.mxu0 0.0
    %2654 = vmatmul.mubr.f32.gmra.mxu0 %v2588
    %v2655 = vpop.f32.mrf.mxu0
    %v2656 = vadd.f32 0.0, %v2655
    %v2657 = vpop.f32.mrf.mxu0
    %2658 = vdwg.mxu0
    %v2659 = vmul.f32 %v2656, %v1007
    %v2660 = vadd.f32 %v2659, 1e-05
    %v2661 = vrsqrt.pop %v2660
    %v2662 = vlaneseq
    %v2663 = vshrl.u32 %v2662, 7
    %v2664 = vsub.s32 0, %v2663
    %v2665 = vrot.slane %v2661, %v2664
    %v2666 = vmul.f32 %v2458, %v2665
    %v2667 = vmul.f32 %v2459, %v2665
    %v2668 = vmul.f32 %v2460, %v2665
    %v2669 = vmul.f32 %v2461, %v2665
    %v2670 = vmul.f32 %v2462, %v2665
    %v2671 = vmul.f32 %v2463, %v2665
    %v2672 = vmul.f32 %v2464, %v2665
    %v2673 = vmul.f32 %v2465, %v2665
    %v2675 = vlaneseq
    %v2676 = vshrl.u32 %v2675, 7
    %v2677 = vsub.s32 0, %v2676
    %v2678 = vrot.slane %v2326, %v2677
    %v2680 = vmul.f32 %v2666, %v2678
    %v2681 = vmul.f32 %v2667, %v2678
    %v2682 = vmul.f32 %v2668, %v2678
    %v2683 = vmul.f32 %v2669, %v2678
    %v2684 = vmul.f32 %v2670, %v2678
    %v2685 = vmul.f32 %v2671, %v2678
    %v2686 = vmul.f32 %v2672, %v2678
    %v2687 = vmul.f32 %v2673, %v2678
    %v2689 = vlaneseq
    %v2690 = vshrl.u32 %v2689, 7
    %v2691 = vsub.s32 0, %v2690
    %v2692 = vrot.slane %v2327, %v2691
    %v2694 = vadd.f32 %v2680, %v2692
    %v2695 = vadd.f32 %v2681, %v2692
    %v2696 = vadd.f32 %v2682, %v2692
    %v2697 = vadd.f32 %v2683, %v2692
    %v2698 = vadd.f32 %v2684, %v2692
    %v2699 = vadd.f32 %v2685, %v2692
    %v2700 = vadd.f32 %v2686, %v2692
    %v2701 = vadd.f32 %v2687, %v2692
    %v2702 = vxor.u32 %v2694, 2147483648
    %v2703 = vxor.u32 %v2695, 2147483648
    %v2704 = vxor.u32 %v2696, 2147483648
    %v2705 = vxor.u32 %v2697, 2147483648
    %v2706 = vxor.u32 %v2698, 2147483648
    %v2707 = vxor.u32 %v2699, 2147483648
    %v2708 = vxor.u32 %v2700, 2147483648
    %v2709 = vxor.u32 %v2701, 2147483648
    %v2710 = vmul.f32 %v2702, 1.442695
    %v2711 = vpow.pop %v2710
    %v2712 = vmul.f32 %v2703, 1.442695
    %v2713 = vpow.pop %v2712
    %v2714 = vmul.f32 %v2704, 1.442695
    %v2715 = vpow.pop %v2714
    %v2716 = vmul.f32 %v2705, 1.442695
    %v2717 = vpow.pop %v2716
    %v2718 = vmul.f32 %v2706, 1.442695
    %v2719 = vpow.pop %v2718
    %v2720 = vmul.f32 %v2707, 1.442695
    %v2721 = vpow.pop %v2720
    %v2722 = vmul.f32 %v2708, 1.442695
    %v2723 = vpow.pop %v2722
    %v2724 = vmul.f32 %v2709, 1.442695
    %v2725 = vpow.pop %v2724
    %v2726 = vadd.f32 %v2711, 1.0
    %v2727 = vadd.f32 %v2713, 1.0
    %v2728 = vadd.f32 %v2715, 1.0
    %v2729 = vadd.f32 %v2717, 1.0
    %v2730 = vadd.f32 %v2719, 1.0
    %v2731 = vadd.f32 %v2721, 1.0
    %v2732 = vadd.f32 %v2723, 1.0
    %v2733 = vadd.f32 %v2725, 1.0
    %v2734 = vrcp.pop %v2726
    %v2735 = vmul.f32 1.0, %v2734
    %v2736 = vrcp.pop %v2727
    %v2737 = vmul.f32 1.0, %v2736
    %v2738 = vrcp.pop %v2728
    %v2739 = vmul.f32 1.0, %v2738
    %v2740 = vrcp.pop %v2729
    %v2741 = vmul.f32 1.0, %v2740
    %v2742 = vrcp.pop %v2730
    %v2743 = vmul.f32 1.0, %v2742
    %v2744 = vrcp.pop %v2731
    %v2745 = vmul.f32 1.0, %v2744
    %v2746 = vrcp.pop %v2732
    %v2747 = vmul.f32 1.0, %v2746
    %v2748 = vrcp.pop %v2733
    %v2749 = vmul.f32 1.0, %v2748
    %v2750 = vmul.f32 %v2694, %v2735
    %v2751 = vmul.f32 %v2695, %v2737
    %v2752 = vmul.f32 %v2696, %v2739
    %v2753 = vmul.f32 %v2697, %v2741
    %v2754 = vmul.f32 %v2698, %v2743
    %v2755 = vmul.f32 %v2699, %v2745
    %v2756 = vmul.f32 %v2700, %v2747
    %v2757 = vmul.f32 %v2701, %v2749
    %v2758 = vlaneseq
    %v2759 = vshrl.u32 %v2758, 7
    %v2760 = vsub.s32 1, %v2759
    %v2761 = vrot.slane %v2661, %v2760
    %v2762 = vmul.f32 %v2470, %v2761
    %v2763 = vmul.f32 %v2471, %v2761
    %v2764 = vmul.f32 %v2472, %v2761
    %v2765 = vmul.f32 %v2473, %v2761
    %v2766 = vmul.f32 %v2474, %v2761
    %v2767 = vmul.f32 %v2475, %v2761
    %v2768 = vmul.f32 %v2476, %v2761
    %v2769 = vmul.f32 %v2477, %v2761
    %v2770 = vmul.f32 %v2762, %v2678
    %v2771 = vmul.f32 %v2763, %v2678
    %v2772 = vmul.f32 %v2764, %v2678
    %v2773 = vmul.f32 %v2765, %v2678
    %v2774 = vmul.f32 %v2766, %v2678
    %v2775 = vmul.f32 %v2767, %v2678
    %v2776 = vmul.f32 %v2768, %v2678
    %v2777 = vmul.f32 %v2769, %v2678
    %v2778 = vadd.f32 %v2770, %v2692
    %v2779 = vadd.f32 %v2771, %v2692
    %v2780 = vadd.f32 %v2772, %v2692
    %v2781 = vadd.f32 %v2773, %v2692
    %v2782 = vadd.f32 %v2774, %v2692
    %v2783 = vadd.f32 %v2775, %v2692
    %v2784 = vadd.f32 %v2776, %v2692
    %v2785 = vadd.f32 %v2777, %v2692
    %v2786 = vxor.u32 %v2778, 2147483648
    %v2787 = vxor.u32 %v2779, 2147483648
    %v2788 = vxor.u32 %v2780, 2147483648
    %v2789 = vxor.u32 %v2781, 2147483648
    %v2790 = vxor.u32 %v2782, 2147483648
    %v2791 = vxor.u32 %v2783, 2147483648
    %v2792 = vxor.u32 %v2784, 2147483648
    %v2793 = vxor.u32 %v2785, 2147483648
    %v2794 = vmul.f32 %v2786, 1.442695
    %v2795 = vpow.pop %v2794
    %v2796 = vmul.f32 %v2787, 1.442695
    %v2797 = vpow.pop %v2796
    %v2798 = vmul.f32 %v2788, 1.442695
    %v2799 = vpow.pop %v2798
    %v2800 = vmul.f32 %v2789, 1.442695
    %v2801 = vpow.pop %v2800
    %v2802 = vmul.f32 %v2790, 1.442695
    %v2803 = vpow.pop %v2802
    %v2804 = vmul.f32 %v2791, 1.442695
    %v2805 = vpow.pop %v2804
    %v2806 = vmul.f32 %v2792, 1.442695
    %v2807 = vpow.pop %v2806
    %v2808 = vmul.f32 %v2793, 1.442695
    %v2809 = vpow.pop %v2808
    %v2810 = vadd.f32 %v2795, 1.0
    %v2811 = vadd.f32 %v2797, 1.0
    %v2812 = vadd.f32 %v2799, 1.0
    %v2813 = vadd.f32 %v2801, 1.0
    %v2814 = vadd.f32 %v2803, 1.0
    %v2815 = vadd.f32 %v2805, 1.0
    %v2816 = vadd.f32 %v2807, 1.0
    %v2817 = vadd.f32 %v2809, 1.0
    %v2818 = vrcp.pop %v2810
    %v2819 = vmul.f32 1.0, %v2818
    %v2820 = vrcp.pop %v2811
    %v2821 = vmul.f32 1.0, %v2820
    %v2822 = vrcp.pop %v2812
    %v2823 = vmul.f32 1.0, %v2822
    %v2824 = vrcp.pop %v2813
    %v2825 = vmul.f32 1.0, %v2824
    %v2826 = vrcp.pop %v2814
    %v2827 = vmul.f32 1.0, %v2826
    %v2828 = vrcp.pop %v2815
    %v2829 = vmul.f32 1.0, %v2828
    %v2830 = vrcp.pop %v2816
    %v2831 = vmul.f32 1.0, %v2830
    %v2832 = vrcp.pop %v2817
    %v2833 = vmul.f32 1.0, %v2832
    %v2834 = vmul.f32 %v2778, %v2819
    %v2835 = vmul.f32 %v2779, %v2821
    %v2836 = vmul.f32 %v2780, %v2823
    %v2837 = vmul.f32 %v2781, %v2825
    %v2838 = vmul.f32 %v2782, %v2827
    %v2839 = vmul.f32 %v2783, %v2829
    %v2840 = vmul.f32 %v2784, %v2831
    %v2841 = vmul.f32 %v2785, %v2833
    %v2842 = vlaneseq
    %v2843 = vshrl.u32 %v2842, 7
    %v2844 = vsub.s32 2, %v2843
    %v2845 = vrot.slane %v2661, %v2844
    %v2846 = vmul.f32 %v2482, %v2845
    %v2847 = vmul.f32 %v2483, %v2845
    %v2848 = vmul.f32 %v2484, %v2845
    %v2849 = vmul.f32 %v2485, %v2845
    %v2850 = vmul.f32 %v2486, %v2845
    %v2851 = vmul.f32 %v2487, %v2845
    %v2852 = vmul.f32 %v2488, %v2845
    %v2853 = vmul.f32 %v2489, %v2845
    %v2854 = vmul.f32 %v2846, %v2678
    %v2855 = vmul.f32 %v2847, %v2678
    %v2856 = vmul.f32 %v2848, %v2678
    %v2857 = vmul.f32 %v2849, %v2678
    %v2858 = vmul.f32 %v2850, %v2678
    %v2859 = vmul.f32 %v2851, %v2678
    %v2860 = vmul.f32 %v2852, %v2678
    %v2861 = vmul.f32 %v2853, %v2678
    %v2862 = vadd.f32 %v2854, %v2692
    %v2863 = vadd.f32 %v2855, %v2692
    %v2864 = vadd.f32 %v2856, %v2692
    %v2865 = vadd.f32 %v2857, %v2692
    %v2866 = vadd.f32 %v2858, %v2692
    %v2867 = vadd.f32 %v2859, %v2692
    %v2868 = vadd.f32 %v2860, %v2692
    %v2869 = vadd.f32 %v2861, %v2692
    %v2870 = vxor.u32 %v2862, 2147483648
    %v2871 = vxor.u32 %v2863, 2147483648
    %v2872 = vxor.u32 %v2864, 2147483648
    %v2873 = vxor.u32 %v2865, 2147483648
    %v2874 = vxor.u32 %v2866, 2147483648
    %v2875 = vxor.u32 %v2867, 2147483648
    %v2876 = vxor.u32 %v2868, 2147483648
    %v2877 = vxor.u32 %v2869, 2147483648
    %v2878 = vmul.f32 %v2870, 1.442695
    %v2879 = vpow.pop %v2878
    %v2880 = vmul.f32 %v2871, 1.442695
    %v2881 = vpow.pop %v2880
    %v2882 = vmul.f32 %v2872, 1.442695
    %v2883 = vpow.pop %v2882
    %v2884 = vmul.f32 %v2873, 1.442695
    %v2885 = vpow.pop %v2884
    %v2886 = vmul.f32 %v2874, 1.442695
    %v2887 = vpow.pop %v2886
    %v2888 = vmul.f32 %v2875, 1.442695
    %v2889 = vpow.pop %v2888
    %v2890 = vmul.f32 %v2876, 1.442695
    %v2891 = vpow.pop %v2890
    %v2892 = vmul.f32 %v2877, 1.442695
    %v2893 = vpow.pop %v2892
    %v2894 = vadd.f32 %v2879, 1.0
    %v2895 = vadd.f32 %v2881, 1.0
    %v2896 = vadd.f32 %v2883, 1.0
    %v2897 = vadd.f32 %v2885, 1.0
    %v2898 = vadd.f32 %v2887, 1.0
    %v2899 = vadd.f32 %v2889, 1.0
    %v2900 = vadd.f32 %v2891, 1.0
    %v2901 = vadd.f32 %v2893, 1.0
    %v2902 = vrcp.pop %v2894
    %v2903 = vmul.f32 1.0, %v2902
    %v2904 = vrcp.pop %v2895
    %v2905 = vmul.f32 1.0, %v2904
    %v2906 = vrcp.pop %v2896
    %v2907 = vmul.f32 1.0, %v2906
    %v2908 = vrcp.pop %v2897
    %v2909 = vmul.f32 1.0, %v2908
    %v2910 = vrcp.pop %v2898
    %v2911 = vmul.f32 1.0, %v2910
    %v2912 = vrcp.pop %v2899
    %v2913 = vmul.f32 1.0, %v2912
    %v2914 = vrcp.pop %v2900
    %v2915 = vmul.f32 1.0, %v2914
    %v2916 = vrcp.pop %v2901
    %v2917 = vmul.f32 1.0, %v2916
    %v2918 = vmul.f32 %v2862, %v2903
    %v2919 = vmul.f32 %v2863, %v2905
    %v2920 = vmul.f32 %v2864, %v2907
    %v2921 = vmul.f32 %v2865, %v2909
    %v2922 = vmul.f32 %v2866, %v2911
    %v2923 = vmul.f32 %v2867, %v2913
    %v2924 = vmul.f32 %v2868, %v2915
    %v2925 = vmul.f32 %v2869, %v2917
    %v2926 = vlaneseq
    %v2927 = vshrl.u32 %v2926, 7
    %v2928 = vsub.s32 3, %v2927
    %v2929 = vrot.slane %v2661, %v2928
    %v2930 = vmul.f32 %v2494, %v2929
    %v2931 = vmul.f32 %v2495, %v2929
    %v2932 = vmul.f32 %v2496, %v2929
    %v2933 = vmul.f32 %v2497, %v2929
    %v2934 = vmul.f32 %v2498, %v2929
    %v2935 = vmul.f32 %v2499, %v2929
    %v2936 = vmul.f32 %v2500, %v2929
    %v2937 = vmul.f32 %v2501, %v2929
    %v2938 = vmul.f32 %v2930, %v2678
    %v2939 = vmul.f32 %v2931, %v2678
    %v2940 = vmul.f32 %v2932, %v2678
    %v2941 = vmul.f32 %v2933, %v2678
    %v2942 = vmul.f32 %v2934, %v2678
    %v2943 = vmul.f32 %v2935, %v2678
    %v2944 = vmul.f32 %v2936, %v2678
    %v2945 = vmul.f32 %v2937, %v2678
    %v2946 = vadd.f32 %v2938, %v2692
    %v2947 = vadd.f32 %v2939, %v2692
    %v2948 = vadd.f32 %v2940, %v2692
    %v2949 = vadd.f32 %v2941, %v2692
    %v2950 = vadd.f32 %v2942, %v2692
    %v2951 = vadd.f32 %v2943, %v2692
    %v2952 = vadd.f32 %v2944, %v2692
    %v2953 = vadd.f32 %v2945, %v2692
    %v2954 = vxor.u32 %v2946, 2147483648
    %v2955 = vxor.u32 %v2947, 2147483648
    %v2956 = vxor.u32 %v2948, 2147483648
    %v2957 = vxor.u32 %v2949, 2147483648
    %v2958 = vxor.u32 %v2950, 2147483648
    %v2959 = vxor.u32 %v2951, 2147483648
    %v2960 = vxor.u32 %v2952, 2147483648
    %v2961 = vxor.u32 %v2953, 2147483648
    %v2962 = vmul.f32 %v2954, 1.442695
    %v2963 = vpow.pop %v2962
    %v2964 = vmul.f32 %v2955, 1.442695
    %v2965 = vpow.pop %v2964
    %v2966 = vmul.f32 %v2956, 1.442695
    %v2967 = vpow.pop %v2966
    %v2968 = vmul.f32 %v2957, 1.442695
    %v2969 = vpow.pop %v2968
    %v2970 = vmul.f32 %v2958, 1.442695
    %v2971 = vpow.pop %v2970
    %v2972 = vmul.f32 %v2959, 1.442695
    %v2973 = vpow.pop %v2972
    %v2974 = vmul.f32 %v2960, 1.442695
    %v2975 = vpow.pop %v2974
    %v2976 = vmul.f32 %v2961, 1.442695
    %v2977 = vpow.pop %v2976
    %v2978 = vadd.f32 %v2963, 1.0
    %v2979 = vadd.f32 %v2965, 1.0
    %v2980 = vadd.f32 %v2967, 1.0
    %v2981 = vadd.f32 %v2969, 1.0
    %v2982 = vadd.f32 %v2971, 1.0
    %v2983 = vadd.f32 %v2973, 1.0
    %v2984 = vadd.f32 %v2975, 1.0
    %v2985 = vadd.f32 %v2977, 1.0
    %v2986 = vrcp.pop %v2978
    %v2987 = vmul.f32 1.0, %v2986
    %v2988 = vrcp.pop %v2979
    %v2989 = vmul.f32 1.0, %v2988
    %v2990 = vrcp.pop %v2980
    %v2991 = vmul.f32 1.0, %v2990
    %v2992 = vrcp.pop %v2981
    %v2993 = vmul.f32 1.0, %v2992
    %v2994 = vrcp.pop %v2982
    %v2995 = vmul.f32 1.0, %v2994
    %v2996 = vrcp.pop %v2983
    %v2997 = vmul.f32 1.0, %v2996
    %v2998 = vrcp.pop %v2984
    %v2999 = vmul.f32 1.0, %v2998
    %v3000 = vrcp.pop %v2985
    %v3001 = vmul.f32 1.0, %v3000
    %v3002 = vmul.f32 %v2946, %v2987
    %v3003 = vmul.f32 %v2947, %v2989
    %v3004 = vmul.f32 %v2948, %v2991
    %v3005 = vmul.f32 %v2949, %v2993
    %v3006 = vmul.f32 %v2950, %v2995
    %v3007 = vmul.f32 %v2951, %v2997
    %v3008 = vmul.f32 %v2952, %v2999
    %v3009 = vmul.f32 %v2953, %v3001
    %v3010 = vld [vmem:[%s9] sm:$0xf]
    %v3011 = vld [vmem:[%s9 + $0x4] sm:$0xf]
    %v3012 = vld [vmem:[%s9 + $0x8] sm:$0xf]
    %v3013 = vld [vmem:[%s9 + $0xc] sm:$0xf]
    %v3014 = vld [vmem:[%s9 + $0x10] sm:$0xf]
    %v3015 = vld [vmem:[%s9 + $0x14] sm:$0xf]
    %v3016 = vld [vmem:[%s9 + $0x18] sm:$0xf]
    %v3017 = vld [vmem:[%s9 + $0x1c] sm:$0xf]
    %v3018 = vld [vmem:[%s10] sm:$0x1]
    %v3020 = vlaneseq
    %v3021 = vshrl.u32 %v3020, 7
    %v3022 = vsub.s32 0, %v3021
    %v3023 = vrot.slane %v3018, %v3022
    %v3033 = vunpack.c.l.b16 %v3010
    %v3034 = vunpack.c.l.b16 %v3011
    %v3035 = vunpack.c.l.b16 %v3012
    %v3036 = vunpack.c.l.b16 %v3013
    %v3037 = vunpack.c.l.b16 %v3014
    %v3038 = vunpack.c.l.b16 %v3015
    %v3039 = vunpack.c.l.b16 %v3016
    %v3040 = vunpack.c.l.b16 %v3017
    %v3041 = vpack.c.b16 %v3034, %v3033
    %v3042 = vpack.c.b16 %v3036, %v3035
    %v3043 = vpack.c.b16 %v3038, %v3037
    %v3044 = vpack.c.b16 %v3040, %v3039
    %v3050 = vsel %vm484, %v267, 0
    %v3053 = vsel %vm484, %v268, 0
    %v3056 = vsel %vm484, %v269, 0
    %v3059 = vsel %vm484, %v270, 0
    %v3062 = vsel %vm484, %v271, 0
    %v3065 = vsel %vm484, %v272, 0
    %v3068 = vsel %vm484, %v273, 0
    %v3071 = vsel %vm484, %v274, 0
    %v3074 = vsel %vm484, %v275, 0
    %v3077 = vsel %vm484, %v276, 0
    %v3080 = vsel %vm484, %v277, 0
    %v3083 = vsel %vm484, %v278, 0
    %v3086 = vsel %vm484, %v279, 0
    %v3089 = vsel %vm484, %v280, 0
    %v3092 = vsel %vm484, %v281, 0
    %v3095 = vsel %vm484, %v282, 0
    %3097 = vmatprep.subr.bf16.mxu0 0
    %3098 = vmatpush1.bf16.msra.mxu0 0
    %3099 = vmatprep.subr.bf16.mxu0 0
    %3100 = vmatpush1.bf16.msra.mxu0 0
    %3101 = vmatprep.subr.bf16.mxu0 0
    %3102 = vmatpush1.bf16.msra.mxu0 0
    %3103 = vmatprep.subr.bf16.mxu0 0
    %3104 = vmatpush1.bf16.msra.mxu0 0
    %3105 = vmatprep.subr.bf16.mxu0 0
    %3106 = vmatpush1.bf16.msra.mxu0 %v3044
    %3107 = vmatprep.subr.bf16.mxu0 0
    %3108 = vmatpush1.bf16.msra.mxu0 %v3043
    %3109 = vmatprep.subr.bf16.mxu0 0
    %3110 = vmatpush1.bf16.msra.mxu0 %v3042
    %3111 = vmatprep.subr.bf16.mxu0 0
    %3112 = vmatpush1.bf16.msra.mxu0 %v3041
    %3113 = vmatprep.subr.bf16.mxu0 0
    %3114 = vmatpush2.bf16.msra.mxu0 0
    %3115 = vmatprep.subr.bf16.mxu0 0
    %3116 = vmatpush2.bf16.msra.mxu0 0
    %3117 = vmatprep.subr.bf16.mxu0 0
    %3118 = vmatpush2.bf16.msra.mxu0 0
    %3119 = vmatprep.subr.bf16.mxu0 0
    %3120 = vmatpush2.bf16.msra.mxu0 0
    %3121 = vmatprep.subr.bf16.mxu0 0
    %3122 = vmatpush2.bf16.msra.mxu0 0
    %3123 = vmatprep.subr.bf16.mxu0 0
    %3124 = vmatpush2.bf16.msra.mxu0 0
    %3125 = vmatprep.subr.bf16.mxu0 0
    %3126 = vmatpush2.bf16.msra.mxu0 0
    %3127 = vmatprep.subr.bf16.mxu0 0
    %3128 = vmatpush2.bf16.msra.mxu0 0
    %3129 = vmatprep.mubr.bf16.mxu0 0
    %3130 = vmatmul.mubr.bf16.gmra.mxu0 %v3050
    %v3131 = vpop.f32.mrf.mxu0
    %v3132 = vadd.f32 %v3023, %v3131
    %v3133 = vpop.f32.mrf.mxu0
    %v3134 = vpop.f32.mrf.mxu0
    %v3135 = vadd.f32 %v3023, %v3134
    %v3136 = vpop.f32.mrf.mxu0
    %3137 = vmatprep.mubr.bf16.mxu0 0
    %3138 = vmatmul.mubr.bf16.gmra.mxu0 %v3053
    %v3139 = vpop.f32.mrf.mxu0
    %v3140 = vadd.f32 %v3023, %v3139
    %v3141 = vpop.f32.mrf.mxu0
    %v3142 = vpop.f32.mrf.mxu0
    %v3143 = vadd.f32 %v3023, %v3142
    %v3144 = vpop.f32.mrf.mxu0
    %3145 = vmatprep.mubr.bf16.mxu0 0
    %3146 = vmatmul.mubr.bf16.gmra.mxu0 %v3056
    %v3147 = vpop.f32.mrf.mxu0
    %v3148 = vadd.f32 %v3023, %v3147
    %v3149 = vpop.f32.mrf.mxu0
    %v3150 = vpop.f32.mrf.mxu0
    %v3151 = vadd.f32 %v3023, %v3150
    %v3152 = vpop.f32.mrf.mxu0
    %3153 = vmatprep.mubr.bf16.mxu0 0
    %3154 = vmatmul.mubr.bf16.gmra.mxu0 %v3059
    %v3155 = vpop.f32.mrf.mxu0
    %v3156 = vadd.f32 %v3023, %v3155
    %v3157 = vpop.f32.mrf.mxu0
    %v3158 = vpop.f32.mrf.mxu0
    %v3159 = vadd.f32 %v3023, %v3158
    %v3160 = vpop.f32.mrf.mxu0
    %3161 = vmatprep.mubr.bf16.mxu0 0
    %3162 = vmatmul.mubr.bf16.gmra.mxu0 %v3062
    %v3163 = vpop.f32.mrf.mxu0
    %v3164 = vadd.f32 %v3023, %v3163
    %v3165 = vpop.f32.mrf.mxu0
    %v3166 = vpop.f32.mrf.mxu0
    %v3167 = vadd.f32 %v3023, %v3166
    %v3168 = vpop.f32.mrf.mxu0
    %3169 = vmatprep.mubr.bf16.mxu0 0
    %3170 = vmatmul.mubr.bf16.gmra.mxu0 %v3065
    %v3171 = vpop.f32.mrf.mxu0
    %v3172 = vadd.f32 %v3023, %v3171
    %v3173 = vpop.f32.mrf.mxu0
    %v3174 = vpop.f32.mrf.mxu0
    %v3175 = vadd.f32 %v3023, %v3174
    %v3176 = vpop.f32.mrf.mxu0
    %3177 = vmatprep.mubr.bf16.mxu0 0
    %3178 = vmatmul.mubr.bf16.gmra.mxu0 %v3068
    %v3179 = vpop.f32.mrf.mxu0
    %v3180 = vadd.f32 %v3023, %v3179
    %v3181 = vpop.f32.mrf.mxu0
    %v3182 = vpop.f32.mrf.mxu0
    %v3183 = vadd.f32 %v3023, %v3182
    %v3184 = vpop.f32.mrf.mxu0
    %3185 = vmatprep.mubr.bf16.mxu0 0
    %3186 = vmatmul.mubr.bf16.gmra.mxu0 %v3071
    %v3187 = vpop.f32.mrf.mxu0
    %v3188 = vadd.f32 %v3023, %v3187
    %v3189 = vpop.f32.mrf.mxu0
    %v3190 = vpop.f32.mrf.mxu0
    %v3191 = vadd.f32 %v3023, %v3190
    %v3192 = vpop.f32.mrf.mxu0
    %3193 = vmatprep.mubr.bf16.mxu0 0
    %3194 = vmatmul.mubr.bf16.gmra.mxu0 %v3074
    %v3195 = vpop.f32.mrf.mxu0
    %v3196 = vadd.f32 %v3023, %v3195
    %v3197 = vpop.f32.mrf.mxu0
    %v3198 = vpop.f32.mrf.mxu0
    %v3199 = vadd.f32 %v3023, %v3198
    %v3200 = vpop.f32.mrf.mxu0
    %3201 = vmatprep.mubr.bf16.mxu0 0
    %3202 = vmatmul.mubr.bf16.gmra.mxu0 %v3077
    %v3203 = vpop.f32.mrf.mxu0
    %v3204 = vadd.f32 %v3023, %v3203
    %v3205 = vpop.f32.mrf.mxu0
    %v3206 = vpop.f32.mrf.mxu0
    %v3207 = vadd.f32 %v3023, %v3206
    %v3208 = vpop.f32.mrf.mxu0
    %3209 = vmatprep.mubr.bf16.mxu0 0
    %3210 = vmatmul.mubr.bf16.gmra.mxu0 %v3080
    %v3211 = vpop.f32.mrf.mxu0
    %v3212 = vadd.f32 %v3023, %v3211
    %v3213 = vpop.f32.mrf.mxu0
    %v3214 = vpop.f32.mrf.mxu0
    %v3215 = vadd.f32 %v3023, %v3214
    %v3216 = vpop.f32.mrf.mxu0
    %3217 = vmatprep.mubr.bf16.mxu0 0
    %3218 = vmatmul.mubr.bf16.gmra.mxu0 %v3083
    %v3219 = vpop.f32.mrf.mxu0
    %v3220 = vadd.f32 %v3023, %v3219
    %v3221 = vpop.f32.mrf.mxu0
    %v3222 = vpop.f32.mrf.mxu0
    %v3223 = vadd.f32 %v3023, %v3222
    %v3224 = vpop.f32.mrf.mxu0
    %3225 = vmatprep.mubr.bf16.mxu0 0
    %3226 = vmatmul.mubr.bf16.gmra.mxu0 %v3086
    %v3227 = vpop.f32.mrf.mxu0
    %v3228 = vadd.f32 %v3023, %v3227
    %v3229 = vpop.f32.mrf.mxu0
    %v3230 = vpop.f32.mrf.mxu0
    %v3231 = vadd.f32 %v3023, %v3230
    %v3232 = vpop.f32.mrf.mxu0
    %3233 = vmatprep.mubr.bf16.mxu0 0
    %3234 = vmatmul.mubr.bf16.gmra.mxu0 %v3089
    %v3235 = vpop.f32.mrf.mxu0
    %v3236 = vadd.f32 %v3023, %v3235
    %v3237 = vpop.f32.mrf.mxu0
    %v3238 = vpop.f32.mrf.mxu0
    %v3239 = vadd.f32 %v3023, %v3238
    %v3240 = vpop.f32.mrf.mxu0
    %3241 = vmatprep.mubr.bf16.mxu0 0
    %3242 = vmatmul.mubr.bf16.gmra.mxu0 %v3092
    %v3243 = vpop.f32.mrf.mxu0
    %v3244 = vadd.f32 %v3023, %v3243
    %v3245 = vpop.f32.mrf.mxu0
    %v3246 = vpop.f32.mrf.mxu0
    %v3247 = vadd.f32 %v3023, %v3246
    %v3248 = vpop.f32.mrf.mxu0
    %3249 = vmatprep.mubr.bf16.mxu0 0
    %3250 = vmatmul.mubr.bf16.gmra.mxu0 %v3095
    %v3251 = vpop.f32.mrf.mxu0
    %v3252 = vadd.f32 %v3023, %v3251
    %v3253 = vpop.f32.mrf.mxu0
    %v3254 = vpop.f32.mrf.mxu0
    %v3255 = vadd.f32 %v3023, %v3254
    %v3256 = vpop.f32.mrf.mxu0
    %3257 = vdwg.mxu0
    %v3258 = vadd.f32 %v2750, %v3132
    %v3259 = vadd.f32 %v2751, %v3135
    %v3260 = vadd.f32 %v2752, %v3140
    %v3261 = vadd.f32 %v2753, %v3143
    %v3262 = vadd.f32 %v2754, %v3148
    %v3263 = vadd.f32 %v2755, %v3151
    %v3264 = vadd.f32 %v2756, %v3156
    %v3265 = vadd.f32 %v2757, %v3159
    %v3266 = vadd.f32 %v2834, %v3164
    %v3267 = vadd.f32 %v2835, %v3167
    %v3268 = vadd.f32 %v2836, %v3172
    %v3269 = vadd.f32 %v2837, %v3175
    %v3270 = vadd.f32 %v2838, %v3180
    %v3271 = vadd.f32 %v2839, %v3183
    %v3272 = vadd.f32 %v2840, %v3188
    %v3273 = vadd.f32 %v2841, %v3191
    %v3274 = vadd.f32 %v2918, %v3196
    %v3275 = vadd.f32 %v2919, %v3199
    %v3276 = vadd.f32 %v2920, %v3204
    %v3277 = vadd.f32 %v2921, %v3207
    %v3278 = vadd.f32 %v2922, %v3212
    %v3279 = vadd.f32 %v2923, %v3215
    %v3280 = vadd.f32 %v2924, %v3220
    %v3281 = vadd.f32 %v2925, %v3223
    %v3282 = vadd.f32 %v3002, %v3228
    %v3283 = vadd.f32 %v3003, %v3231
    %v3284 = vadd.f32 %v3004, %v3236
    %v3285 = vadd.f32 %v3005, %v3239
    %v3286 = vadd.f32 %v3006, %v3244
    %v3287 = vadd.f32 %v3007, %v3247
    %v3288 = vadd.f32 %v3008, %v3252
    %v3289 = vadd.f32 %v3009, %v3255
    %3290 = vst [vmem:[#allocation5] sm:$0xff] %v3258
    %3291 = vst [vmem:[#allocation5 + $0x8] sm:$0xff] %v3259
    %3292 = vst [vmem:[#allocation5 + $0x10] sm:$0xff] %v3260
    %3293 = vst [vmem:[#allocation5 + $0x18] sm:$0xff] %v3261
    %3294 = vst [vmem:[#allocation5 + $0x20] sm:$0xff] %v3262
    %3295 = vst [vmem:[#allocation5 + $0x28] sm:$0xff] %v3263
    %3296 = vst [vmem:[#allocation5 + $0x30] sm:$0xff] %v3264
    %3297 = vst [vmem:[#allocation5 + $0x38] sm:$0xff] %v3265
    %3298 = vst [vmem:[#allocation5 + $0x40] sm:$0xff] %v3266
    %3299 = vst [vmem:[#allocation5 + $0x48] sm:$0xff] %v3267
    %3300 = vst [vmem:[#allocation5 + $0x50] sm:$0xff] %v3268
    %3301 = vst [vmem:[#allocation5 + $0x58] sm:$0xff] %v3269
    %3302 = vst [vmem:[#allocation5 + $0x60] sm:$0xff] %v3270
    %3303 = vst [vmem:[#allocation5 + $0x68] sm:$0xff] %v3271
    %3304 = vst [vmem:[#allocation5 + $0x70] sm:$0xff] %v3272
    %3305 = vst [vmem:[#allocation5 + $0x78] sm:$0xff] %v3273
    %3306 = vst [vmem:[#allocation5 + $0x80] sm:$0xff] %v3274
    %3307 = vst [vmem:[#allocation5 + $0x88] sm:$0xff] %v3275
    %3308 = vst [vmem:[#allocation5 + $0x90] sm:$0xff] %v3276
    %3309 = vst [vmem:[#allocation5 + $0x98] sm:$0xff] %v3277
    %3310 = vst [vmem:[#allocation5 + $0xa0] sm:$0xff] %v3278
    %3311 = vst [vmem:[#allocation5 + $0xa8] sm:$0xff] %v3279
    %3312 = vst [vmem:[#allocation5 + $0xb0] sm:$0xff] %v3280
    %3313 = vst [vmem:[#allocation5 + $0xb8] sm:$0xff] %v3281
    %3314 = vst [vmem:[#allocation5 + $0xc0] sm:$0xff] %v3282
    %3315 = vst [vmem:[#allocation5 + $0xc8] sm:$0xff] %v3283
    %3316 = vst [vmem:[#allocation5 + $0xd0] sm:$0xff] %v3284
    %3317 = vst [vmem:[#allocation5 + $0xd8] sm:$0xff] %v3285
    %3318 = vst [vmem:[#allocation5 + $0xe0] sm:$0xff] %v3286
    %3319 = vst [vmem:[#allocation5 + $0xe8] sm:$0xff] %v3287
    %3320 = vst [vmem:[#allocation5 + $0xf0] sm:$0xff] %v3288
    %3321 = vst [vmem:[#allocation5 + $0xf8] sm:$0xff] %v3289
    // Predicated region
    $region54: #{tpu_custom_call.1} parent=1 // pred_check
      _
    $region55: #{tpu_custom_call.1} parent=1 // pred_check_branch
      %3323 = sbr.rel (0) target = $region57
    $region56: #{tpu_custom_call.1} parent=1 // pred_region
      %s3325 = ssub.s32 4096, 4096
      %3326 = vsyncadd [#allocation4], %s3325
      %s3327 = sshll.u32 [#allocation5], 4
      %s3328 = int_to_ptr.vmem [resolvable:$true] %s3327
      %3333 = dma.vmem_to_hbm [thread:$0]  %s3328, 4096, %s12, [#allocation4], 128, 128, 8
    $region57: #{tpu_custom_call.1} parent=1 // pred_fallthru
      _
    // Predicated region
    $region58: #{tpu_custom_call.1} parent=1 // pred_check
      _
    $region59: #{tpu_custom_call.1} parent=1 // pred_check_branch
      %3335 = sbr.rel (0) target = $region61
    $region60: #{tpu_custom_call.1} parent=1 // pred_region
      %3336 = dma.done [#allocation4], 4096
    $region61: #{tpu_custom_call.1} parent=1 // pred_fallthru
      _
    %3337 = vsyncpa [#allocation3], 1
    %3338 = vsyncpa [#allocation4], 1

</llo_original>
